<compile_context>
chip_gen: v7x
topology: tpu7x:2x2x1
jax: 0.10.0
libtpu: 0.0.40
codegen_flags: <defaults>
</compile_context>

<pallas_src>
import math

import jax
import jax.numpy as jnp
from jax import lax
from jax.experimental import pallas as pl
from jax.experimental.pallas import tpu as pltpu


# ---------------------------------------------------------------------------
# Kernel
# ---------------------------------------------------------------------------
def make_smha_kernel(scale: float, Bt: int, S: int, D: int, compute_dtype):
    inv_scale = 1.0 / scale
    cdt = compute_dtype

    def kernel(q_ref, k_ref, v_ref,
               wq_ref, bq_ref, wk_ref, bk_ref, wv_ref, bv_ref,
               wot_ref, bot_ref, out_ref):
        # ---- folded input projections: one (Bt*S, in) @ (in, D) matmul each ----
        q = jnp.dot(q_ref[...], wq_ref[...],
                    preferred_element_type=jnp.float32) + bq_ref[...]
        k = jnp.dot(k_ref[...], wk_ref[...],
                    preferred_element_type=jnp.float32) + bk_ref[...]
        v = jnp.dot(v_ref[...], wv_ref[...],
                    preferred_element_type=jnp.float32) + bv_ref[...]

        # 1/scale only feeds the scores, so fold it into q (Bt*S*D elements)
        # rather than the 4x larger (Bt, D, D) scores tensor.
        # NOTE: the (Bt*S, D) -> (Bt, S, D) reshape is a free retile when S is a
        # multiple of 8 (16 for bf16); for other S it costs one relayout copy.
        qb = (q * inv_scale).reshape(Bt, S, D).astype(cdt)
        kb = k.reshape(Bt, S, D).astype(cdt)
        vb = v.reshape(Bt, S, D).astype(cdt)

        # scores[b, d, e] = (1/scale) * sum_s q[b, s, d] * k[b, s, e]
        # Contract both operands over the sequence axis (batched over b): no
        # explicit swapaxes; Mosaic folds the orientation into the MXU feed.
        scores = lax.dot_general(
            qb, kb, (((1,), (1,)), ((0,), (0,))),
            preferred_element_type=jnp.float32)

        # TODO(synk): attn_mask path not implemented (attn_mask=None path only).

        # Softmax over the last (lane) axis, all in f32 (v5e has no bf16
        # VPU/EUP); the approx reciprocal runs on the EUP -> VALU-free.
        m = jnp.max(scores, axis=-1, keepdims=True)
        e = jnp.exp(scores - m)
        denom = jnp.sum(e, axis=-1, keepdims=True)
        probs = e * pl.reciprocal(denom, approx=True)

        # attn[b, s, d] = sum_e v[b, s, e] * probs[b, d, e]
        # (transpose_rhs contraction: no v.T and no output transpose needed)
        attn = lax.dot_general(
            vb, probs.astype(cdt), (((2,), (2,)), ((0,), (0,))),
            preferred_element_type=jnp.float32)

        # Output projection, emitted transposed so the store is lane-dense:
        #   out_t[o, n] = sum_d wo_t[o, d] * attn_flat[n, d] + bo_t[o, 0]
        attn_flat = attn.reshape(Bt * S, D).astype(cdt)
        out_t = lax.dot_general(
            wot_ref[...], attn_flat, (((1,), (1,)), ((), ())),
            preferred_element_type=jnp.float32) + bot_ref[...]
        out_ref[...] = out_t                              # (out_dim, Bt*S)

    return kernel


# ---------------------------------------------------------------------------
# Tiling helpers
# ---------------------------------------------------------------------------
def _num_tensorcores():
    """Best-effort TensorCores-per-chip count (v5e/v6e: 1, v7x: 2)."""
    try:
        dev = jax.devices()[0]
        if dev.platform != "tpu":
            return 1
        nc = getattr(dev, "num_cores", None)
        if isinstance(nc, int) and nc > 0:
            return nc
        kind = (getattr(dev, "device_kind", "") or "").lower()
        return 2 if "v7" in kind else 1
    except Exception:   # conservative fallback
        return 1


def _max_batches_per_step(S, H, D, out_dim, act_itemsize, budget_bytes):
    """Rough per-batch VMEM footprint (128-lane / 8-sublane padded) used to cap
    how many batches are folded into one grid step."""
    pad_l = lambda n: -(-n // 128) * 128
    pad_s = lambda n: -(-n // 8) * 8
    s_pad = pad_s(S)
    per_batch = 0
    # double-buffered input tiles (activation dtype)
    per_batch += 2 * s_pad * (pad_l(H) + 2 * pad_l(D)) * act_itemsize
    # f32 q/k/v projections (+ compute-dtype copies fed back to the MXU)
    per_batch += 3 * s_pad * pad_l(D) * (4 + act_itemsize)
    # f32 scores / exp / probs (budget all three even if the compiler aliases)
    per_batch += pad_s(D) * pad_l(D) * (3 * 4 + act_itemsize)
    # f32 attn (+ compute-dtype copy) and double-buffered f32 output tile
    per_batch += s_pad * pad_l(D) * (4 + act_itemsize) + 2 * pad_s(out_dim) * s_pad * 4
    return max(1, int(budget_bytes) // per_batch)


def _batch_tiling(B, S, num_cores, max_bt):
    """Pick (n_tiles, Bt); the caller zero-pads B up to n_tiles * Bt.

    * 1-TC chips (v5e/v6e): one fat step whenever the whole batch fits the VMEM
      budget -- splitting only adds ~0.35us/step of grid overhead.
    * 2-TC chips (v7x): exactly two steps, but only if each half still stores a
      full 128-lane-aligned tile (Bt*S % 128 == 0); otherwise one fat step.
    * Oversized batches fall back to lane-aligned tiles (never Bt=1), which may
      slightly exceed the (conservative) VMEM cap to preserve alignment.
    """
    if num_cores >= 2 and B > 1:
        half = -(-B // 2)
        if (half * S) % 128 == 0 and half <= max_bt:
            return 2, half
    if B <= max_bt:
        return 1, B
    align = 128 // math.gcd(128, S)
    Bt = max(align, (max_bt // align) * align)
    return -(-B // Bt), Bt


# ---------------------------------------------------------------------------
# Wrapper
# ---------------------------------------------------------------------------
def spiking_mha_forward(query, key, value, params, num_heads,
                        compute_dtype=jnp.bfloat16,
                        max_batches_per_step=None,
                        num_cores=None):
    B, Sq, H = query.shape
    Bk, Sk, D = key.shape
    Bv, Sv, Dv = value.shape
    assert Sq == Sk == Sv, "scores contract over the sequence axis: Sq == Sk == Sv required"
    assert B == Bk == Bv and D == Dv
    S = Sq
    out_dim = params["wo"].shape[1]
    head_dim = D // num_heads
    scale = math.sqrt(head_dim)
    cdt = jnp.dtype(compute_dtype)

    if num_cores is None:
        num_cores = _num_tensorcores()
    if max_batches_per_step is None:
        # Budget against the tightest scoped-VMEM default (v5e: 16 MiB); the
        # scoped limit itself is raised to 32 MiB below (within v7x's 64 MiB
        # physical VMEM).  Re-derive if D or S are scaled up (scores ~ D^2).
        max_batches_per_step = _max_batches_per_step(
            S, H, D, out_dim, cdt.itemsize, budget_bytes=24 * 1024 * 1024)

    n_tiles, Bt = _batch_tiling(B, S, num_cores, max_batches_per_step)
    B_pad = n_tiles * Bt

    # Wrapper-side flatten (and zero-pad awkward batch counts): one contiguous
    # (B_pad*S, feat) slab per tensor, activations cast to the MXU dtype.
    def pad_flatten(x, feat):
        if B_pad != B:
            x = jnp.pad(x, ((0, B_pad - B), (0, 0), (0, 0)))
        return x.reshape(B_pad * S, feat).astype(cdt)

    q2 = pad_flatten(query, H)
    k2 = pad_flatten(key, D)
    v2 = pad_flatten(value, D)

    # Weight prep (XLA-side, tiny): MXU operands in compute dtype, biases f32;
    # output projection pre-transposed so the kernel's final matmul produces a
    # lane-dense (out_dim, Bt*S) tile.
    wq = params["wq"].astype(cdt)
    wk = params["wk"].astype(cdt)
    wv = params["wv"].astype(cdt)
    bq = params["bq"].astype(jnp.float32)
    bk = params["bk"].astype(jnp.float32)
    bv = params["bv"].astype(jnp.float32)
    wo_t = params["wo"].T.astype(cdt)             # (out_dim, D)
    bo_t = params["bo"].T.astype(jnp.float32)     # (out_dim, 1)

    kernel = make_smha_kernel(scale, Bt, S, D, cdt)

    def full_spec(arr):
        nd = arr.ndim
        return pl.BlockSpec(arr.shape, lambda b, _nd=nd: (0,) * _nd)

    in_specs = [
        pl.BlockSpec((Bt * S, H), lambda b: (b, 0)),   # query slab
        pl.BlockSpec((Bt * S, D), lambda b: (b, 0)),   # key slab
        pl.BlockSpec((Bt * S, D), lambda b: (b, 0)),   # value slab
        full_spec(wq), full_spec(bq),
        full_spec(wk), full_spec(bk),
        full_spec(wv), full_spec(bv),
        full_spec(wo_t), full_spec(bo_t),
    ]
    out_specs = pl.BlockSpec((out_dim, Bt * S), lambda b: (0, b))

    # Advisory cost estimate so XLA does not over-serialize around the call.
    flops = (2 * B_pad * S * (H * D + 2 * D * D)      # q/k/v projections
             + 4 * B_pad * S * D * D                  # scores + attn
             + 2 * B_pad * S * D * out_dim)           # output projection
    transcendentals = B_pad * D * D + B_pad * D       # exp + reciprocal
    bytes_accessed = (cdt.itemsize * (B_pad * S * (H + 2 * D)
                                      + H * D + 2 * D * D + D * out_dim)
                      + 4 * (B_pad * S * out_dim + 3 * D + out_dim))

    out_t = pl.pallas_call(
        kernel,
        out_shape=jax.ShapeDtypeStruct((out_dim, B_pad * S), jnp.float32),
        grid=(n_tiles,),
        in_specs=in_specs,
        out_specs=out_specs,
        compiler_params=pltpu.CompilerParams(
            dimension_semantics=("parallel",),
            vmem_limit_bytes=32 * 1024 * 1024),
        cost_estimate=pl.CostEstimate(flops=flops,
                                      transcendentals=transcendentals,
                                      bytes_accessed=bytes_accessed),
    )(q2, k2, v2, wq, bq, wk, bk, wv, bv, wo_t, bo_t)

    # (out_dim, B_pad*S) -> (B, S, out_dim): pure layout plumbing in XLA.
    out = out_t[:, :B * S].T.reshape(B, S, out_dim)
    return out


# ---------------------------------------------------------------------------
# Pure-JAX reference (module semantics) + init
# ---------------------------------------------------------------------------
def reference_forward(query, key, value, params, num_heads):
    D = params["wk"].shape[1]
    scale = math.sqrt(D // num_heads)
    q = query @ params["wq"] + params["bq"]
    k = key @ params["wk"] + params["bk"]
    v = value @ params["wv"] + params["bv"]
    qh = jnp.swapaxes(q, 1, 2)            # (B, D, Sq)
    kh = jnp.swapaxes(k, 1, 2)            # (B, D, Sk)
    vh = jnp.swapaxes(v, 1, 2)            # (B, D, Sv)
    scores = jnp.einsum("bds,bes->bde", qh, kh) / scale   # (B, D, D)
    probs = jax.nn.softmax(scores, axis=-1)
    attn = jnp.einsum("bde,bes->bds", probs, vh)           # (B, D, Sv)
    attn = jnp.swapaxes(attn, 1, 2)                        # (B, Sv, D)
    return attn @ params["wo"] + params["bo"]


def init_params(key, d_model, n_hidden_RNN, cross_last=True):
    """Deterministic PyTorch-Linear-style init. Weights stored as (in, out)."""
    out_last = 1 if cross_last else d_model
    specs = {
        "q": (n_hidden_RNN, d_model),
        "k": (d_model, d_model),
        "v": (d_model, d_model),
        "o": (d_model, out_last),
    }
    params = {}
    keys = jax.random.split(key, 2 * len(specs))
    for i, (name, (fan_in, fan_out)) in enumerate(specs.items()):
        bound = 1.0 / math.sqrt(fan_in)
        w = jax.random.uniform(keys[2 * i], (fan_in, fan_out),
                               minval=-bound, maxval=bound, dtype=jnp.float32)
        b = jax.random.uniform(keys[2 * i + 1], (1, fan_out),
                               minval=-bound, maxval=bound, dtype=jnp.float32)
        params["w" + name] = w
        params["b" + name] = b
    return params


if __name__ == "__main__":
    d_model = 32
    num_heads = 4
    n_hidden_RNN = 16
    S = 8

    root = jax.random.PRNGKey(0)
    k_params, kq, kk, kv, k_params2 = jax.random.split(root, 5)

    # --- demo 1: cross_last=True; B chosen so one folded step gives B*S = 128
    # (full 128-lane stores).  f32 checked tightly, then the default bf16 path.
    B = 16
    params = init_params(k_params, d_model, n_hidden_RNN, cross_last=True)
    query = jax.random.normal(kq, (B, S, n_hidden_RNN), dtype=jnp.float32)
    key_in = jax.random.normal(kk, (B, S, d_model), dtype=jnp.float32)
    value = jax.random.normal(kv, (B, S, d_model), dtype=jnp.float32)

    ref = reference_forward(query, key_in, value, params, num_heads)

    out_f32 = spiking_mha_forward(query, key_in, value, params, num_heads,
                                  compute_dtype=jnp.float32)
    out_f32 = jax.block_until_ready(out_f32)
    assert out_f32.shape == (B, S, 1), out_f32.shape
    err_f32 = float(jnp.max(jnp.abs(out_f32 - ref)))
    # approx (EUP) reciprocal in the softmax -> slightly looser than exact f32.
    assert err_f32 < 3e-3, err_f32

    out_bf16 = spiking_mha_forward(query, key_in, value, params, num_heads)
    out_bf16 = jax.block_until_ready(out_bf16)
    err_bf16 = float(jnp.max(jnp.abs(out_bf16 - ref)))
    # bf16 MXU operands (f32 accumulate / f32 softmax) + approx reciprocal;
    # tight parity with the module is established by the f32 run above.
    assert err_bf16 < 1e-1, err_bf16

    # --- demo 2: cross_last=False, batch not divisible by the forced per-step
    # cap -> exercises wrapper padding + the lane-aligned multi-tile grid path.
    B2 = 24
    params2 = init_params(k_params2, d_model, n_hidden_RNN, cross_last=False)
    kq2, kk2, kv2 = jax.random.split(jax.random.PRNGKey(1), 3)
    query2 = jax.random.normal(kq2, (B2, S, n_hidden_RNN), dtype=jnp.float32)
    key2 = jax.random.normal(kk2, (B2, S, d_model), dtype=jnp.float32)
    value2 = jax.random.normal(kv2, (B2, S, d_model), dtype=jnp.float32)

    ref2 = reference_forward(query2, key2, value2, params2, num_heads)
    out2 = spiking_mha_forward(query2, key2, value2, params2, num_heads,
                               compute_dtype=jnp.float32,
                               max_batches_per_step=16)
    out2 = jax.block_until_ready(out2)
    assert out2.shape == (B2, S, d_model), out2.shape
    err2 = float(jnp.max(jnp.abs(out2 - ref2)))
    assert err2 < 5e-3, err2

    print("KERNEL_OK")
</pallas_src>

<mosaic_0001>
module attributes {stable_mosaic.version = 11 : i64} {
  func.func @kernel(%arg0: i32, %arg1: memref<128x16xf32, #tpu.memory_space<vmem>>, %arg2: memref<128x32xf32, #tpu.memory_space<vmem>>, %arg3: memref<128x32xf32, #tpu.memory_space<vmem>>, %arg4: memref<16x32xf32, #tpu.memory_space<vmem>>, %arg5: memref<1x32xf32, #tpu.memory_space<vmem>>, %arg6: memref<32x32xf32, #tpu.memory_space<vmem>>, %arg7: memref<1x32xf32, #tpu.memory_space<vmem>>, %arg8: memref<32x32xf32, #tpu.memory_space<vmem>>, %arg9: memref<1x32xf32, #tpu.memory_space<vmem>>, %arg10: memref<1x32xf32, #tpu.memory_space<vmem>>, %arg11: memref<1x1xf32, #tpu.memory_space<vmem>>, %arg12: memref<1x128xf32, #tpu.memory_space<vmem>>) attributes {dimension_semantics = [#tpu.dimension_semantics<parallel>], iteration_bounds = array<i64: 1>, scalar_prefetch = 0 : i64, scratch_operands = 0 : i64, tpu.core_type = #tpu.core_type<tc>, window_params = [{transform_indices = @transform_0, window_bounds = array<i64: 128, 16>}, {transform_indices = @transform_1, window_bounds = array<i64: 128, 32>}, {transform_indices = @transform_2, window_bounds = array<i64: 128, 32>}, {pipeline_mode = #tpu.pipeline_mode<synchronous>, transform_indices = @transform_3, window_bounds = array<i64: 16, 32>}, {pipeline_mode = #tpu.pipeline_mode<synchronous>, transform_indices = @transform_4, window_bounds = array<i64: 1, 32>}, {pipeline_mode = #tpu.pipeline_mode<synchronous>, transform_indices = @transform_5, window_bounds = array<i64: 32, 32>}, {pipeline_mode = #tpu.pipeline_mode<synchronous>, transform_indices = @transform_6, window_bounds = array<i64: 1, 32>}, {pipeline_mode = #tpu.pipeline_mode<synchronous>, transform_indices = @transform_7, window_bounds = array<i64: 32, 32>}, {pipeline_mode = #tpu.pipeline_mode<synchronous>, transform_indices = @transform_8, window_bounds = array<i64: 1, 32>}, {pipeline_mode = #tpu.pipeline_mode<synchronous>, transform_indices = @transform_9, window_bounds = array<i64: 1, 32>}, {pipeline_mode = #tpu.pipeline_mode<synchronous>, transform_indices = @transform_10, window_bounds = array<i64: 1, 1>}, {transform_indices = @transform_11, window_bounds = array<i64: 1, 128>}]} {
    %c0 = arith.constant 0 : index
    %c0_0 = arith.constant 0 : index
    %0 = vector.load %arg1[%c0, %c0_0] : memref<128x16xf32, #tpu.memory_space<vmem>>, vector<128x16xf32>
    %c0_1 = arith.constant 0 : index
    %c0_2 = arith.constant 0 : index
    %1 = vector.load %arg4[%c0_1, %c0_2] : memref<16x32xf32, #tpu.memory_space<vmem>>, vector<16x32xf32>
    %cst = arith.constant dense<0.000000e+00> : vector<128x32xf32>
    %2 = tpu.matmul %0, %1, %cst {dimension_numbers = #tpu.dot_dimension_numbers<[1], [0], [0], [1], [0, 0, 1, 1], [], []>} : vector<128x16xf32>, vector<16x32xf32>, vector<128x32xf32> -> vector<128x32xf32>
    %c0_3 = arith.constant 0 : index
    %c0_4 = arith.constant 0 : index
    %3 = vector.load %arg5[%c0_3, %c0_4] : memref<1x32xf32, #tpu.memory_space<vmem>>, vector<1x32xf32>
    %4 = vector.broadcast %3 : vector<1x32xf32> to vector<128x32xf32>
    %5 = arith.addf %2, %4 : vector<128x32xf32>
    %c0_5 = arith.constant 0 : index
    %c0_6 = arith.constant 0 : index
    %6 = vector.load %arg2[%c0_5, %c0_6] : memref<128x32xf32, #tpu.memory_space<vmem>>, vector<128x32xf32>
    %c0_7 = arith.constant 0 : index
    %c0_8 = arith.constant 0 : index
    %7 = vector.load %arg6[%c0_7, %c0_8] : memref<32x32xf32, #tpu.memory_space<vmem>>, vector<32x32xf32>
    %cst_9 = arith.constant dense<0.000000e+00> : vector<128x32xf32>
    %8 = tpu.matmul %6, %7, %cst_9 {dimension_numbers = #tpu.dot_dimension_numbers<[1], [0], [0], [1], [0, 0, 1, 1], [], []>} : vector<128x32xf32>, vector<32x32xf32>, vector<128x32xf32> -> vector<128x32xf32>
    %c0_10 = arith.constant 0 : index
    %c0_11 = arith.constant 0 : index
    %9 = vector.load %arg7[%c0_10, %c0_11] : memref<1x32xf32, #tpu.memory_space<vmem>>, vector<1x32xf32>
    %10 = vector.broadcast %9 : vector<1x32xf32> to vector<128x32xf32>
    %11 = arith.addf %8, %10 : vector<128x32xf32>
    %c0_12 = arith.constant 0 : index
    %c0_13 = arith.constant 0 : index
    %12 = vector.load %arg3[%c0_12, %c0_13] : memref<128x32xf32, #tpu.memory_space<vmem>>, vector<128x32xf32>
    %c0_14 = arith.constant 0 : index
    %c0_15 = arith.constant 0 : index
    %13 = vector.load %arg8[%c0_14, %c0_15] : memref<32x32xf32, #tpu.memory_space<vmem>>, vector<32x32xf32>
    %cst_16 = arith.constant dense<0.000000e+00> : vector<128x32xf32>
    %14 = tpu.matmul %12, %13, %cst_16 {dimension_numbers = #tpu.dot_dimension_numbers<[1], [0], [0], [1], [0, 0, 1, 1], [], []>} : vector<128x32xf32>, vector<32x32xf32>, vector<128x32xf32> -> vector<128x32xf32>
    %c0_17 = arith.constant 0 : index
    %c0_18 = arith.constant 0 : index
    %15 = vector.load %arg9[%c0_17, %c0_18] : memref<1x32xf32, #tpu.memory_space<vmem>>, vector<1x32xf32>
    %16 = vector.broadcast %15 : vector<1x32xf32> to vector<128x32xf32>
    %17 = arith.addf %14, %16 : vector<128x32xf32>
    %cst_19 = arith.constant 0.353553385 : f32
    %18 = vector.broadcast %cst_19 : f32 to vector<128x32xf32>
    %19 = arith.mulf %5, %18 : vector<128x32xf32>
    %20 = vector.shape_cast %19 : vector<128x32xf32> to vector<16x8x32xf32>
    %21 = vector.shape_cast %11 : vector<128x32xf32> to vector<16x8x32xf32>
    %22 = vector.shape_cast %17 : vector<128x32xf32> to vector<16x8x32xf32>
    %cst_20 = arith.constant dense<0.000000e+00> : vector<16x32x32xf32>
    %23 = tpu.matmul %20, %21, %cst_20 {dimension_numbers = #tpu.dot_dimension_numbers<[1], [1], [2], [2], [0, 0, 0, 2, 1, 2], [0], [0]>} : vector<16x8x32xf32>, vector<16x8x32xf32>, vector<16x32x32xf32> -> vector<16x32x32xf32>
    %cst_21 = arith.constant dense<0xFF800000> : vector<16x32xf32>
    %24 = vector.multi_reduction <maximumf>, %23, %cst_21 [2] : vector<16x32x32xf32> to vector<16x32xf32>
    %25 = vector.shape_cast %24 : vector<16x32xf32> to vector<16x32x1xf32>
    %26 = vector.broadcast %25 : vector<16x32x1xf32> to vector<16x32x32xf32>
    %27 = arith.subf %23, %26 : vector<16x32x32xf32>
    %28 = math.exp %27 : vector<16x32x32xf32>
    %cst_22 = arith.constant dense<0.000000e+00> : vector<16x32xf32>
    %29 = vector.multi_reduction <add>, %28, %cst_22 [2] : vector<16x32x32xf32> to vector<16x32xf32>
    %30 = vector.shape_cast %29 : vector<16x32xf32> to vector<16x32x1xf32>
    %31 = tpu.reciprocal %30 {approx = true} : vector<16x32x1xf32> -> vector<16x32x1xf32>
    %32 = vector.broadcast %31 : vector<16x32x1xf32> to vector<16x32x32xf32>
    %33 = arith.mulf %28, %32 : vector<16x32x32xf32>
    %cst_23 = arith.constant dense<0.000000e+00> : vector<16x8x32xf32>
    %34 = tpu.matmul %22, %33, %cst_23 {dimension_numbers = #tpu.dot_dimension_numbers<[2], [2], [1], [1], [0, 0, 0, 1, 1, 1], [0], [0]>} : vector<16x8x32xf32>, vector<16x32x32xf32>, vector<16x8x32xf32> -> vector<16x8x32xf32>
    %35 = vector.shape_cast %34 : vector<16x8x32xf32> to vector<128x32xf32>
    %c0_24 = arith.constant 0 : index
    %c0_25 = arith.constant 0 : index
    %36 = vector.load %arg10[%c0_24, %c0_25] : memref<1x32xf32, #tpu.memory_space<vmem>>, vector<1x32xf32>
    %cst_26 = arith.constant dense<0.000000e+00> : vector<1x128xf32>
    %37 = tpu.matmul %36, %35, %cst_26 {dimension_numbers = #tpu.dot_dimension_numbers<[1], [1], [0], [0], [0, 0, 1, 0], [], []>} : vector<1x32xf32>, vector<128x32xf32>, vector<1x128xf32> -> vector<1x128xf32>
    %c0_27 = arith.constant 0 : index
    %c0_28 = arith.constant 0 : index
    %38 = vector.load %arg11[%c0_27, %c0_28] : memref<1x1xf32, #tpu.memory_space<vmem>>, vector<1x1xf32>
    %39 = vector.broadcast %38 : vector<1x1xf32> to vector<1x128xf32>
    %40 = arith.addf %37, %39 : vector<1x128xf32>
    %c0_29 = arith.constant 0 : index
    %c0_30 = arith.constant 0 : index
    %41 = vector.load %arg12[%c0_29, %c0_30] : memref<1x128xf32, #tpu.memory_space<vmem>>, vector<1x128xf32>
    tpu.vector_store %arg12[%c0_29, %c0_30], %40 {strides = array<i32>} : memref<1x128xf32, #tpu.memory_space<vmem>>, vector<1x128xf32>,
    return
  }
  func.func @transform_0(%arg0: i32) -> (i32, i32) {
    %c0_i32 = arith.constant 0 : i32
    %c0_i32_0 = arith.constant 0 : i32
    return %arg0, %c0_i32 : i32, i32
  }
  func.func @transform_1(%arg0: i32) -> (i32, i32) {
    %c0_i32 = arith.constant 0 : i32
    %c0_i32_0 = arith.constant 0 : i32
    return %arg0, %c0_i32 : i32, i32
  }
  func.func @transform_2(%arg0: i32) -> (i32, i32) {
    %c0_i32 = arith.constant 0 : i32
    %c0_i32_0 = arith.constant 0 : i32
    return %arg0, %c0_i32 : i32, i32
  }
  func.func @transform_3(%arg0: i32) -> (i32, i32) {
    %c0_i32 = arith.constant 0 : i32
    %c0_i32_0 = arith.constant 0 : i32
    %c0_i32_1 = arith.constant 0 : i32
    return %c0_i32, %c0_i32_0 : i32, i32
  }
  func.func @transform_4(%arg0: i32) -> (i32, i32) {
    %c0_i32 = arith.constant 0 : i32
    %c0_i32_0 = arith.constant 0 : i32
    %c0_i32_1 = arith.constant 0 : i32
    return %c0_i32, %c0_i32_0 : i32, i32
  }
  func.func @transform_5(%arg0: i32) -> (i32, i32) {
    %c0_i32 = arith.constant 0 : i32
    %c0_i32_0 = arith.constant 0 : i32
    %c0_i32_1 = arith.constant 0 : i32
    return %c0_i32, %c0_i32_0 : i32, i32
  }
  func.func @transform_6(%arg0: i32) -> (i32, i32) {
    %c0_i32 = arith.constant 0 : i32
    %c0_i32_0 = arith.constant 0 : i32
    %c0_i32_1 = arith.constant 0 : i32
    return %c0_i32, %c0_i32_0 : i32, i32
  }
  func.func @transform_7(%arg0: i32) -> (i32, i32) {
    %c0_i32 = arith.constant 0 : i32
    %c0_i32_0 = arith.constant 0 : i32
    %c0_i32_1 = arith.constant 0 : i32
    return %c0_i32, %c0_i32_0 : i32, i32
  }
  func.func @transform_8(%arg0: i32) -> (i32, i32) {
    %c0_i32 = arith.constant 0 : i32
    %c0_i32_0 = arith.constant 0 : i32
    %c0_i32_1 = arith.constant 0 : i32
    return %c0_i32, %c0_i32_0 : i32, i32
  }
  func.func @transform_9(%arg0: i32) -> (i32, i32) {
    %c0_i32 = arith.constant 0 : i32
    %c0_i32_0 = arith.constant 0 : i32
    %c0_i32_1 = arith.constant 0 : i32
    return %c0_i32, %c0_i32_0 : i32, i32
  }
  func.func @transform_10(%arg0: i32) -> (i32, i32) {
    %c0_i32 = arith.constant 0 : i32
    %c0_i32_0 = arith.constant 0 : i32
    %c0_i32_1 = arith.constant 0 : i32
    return %c0_i32, %c0_i32_0 : i32, i32
  }
  func.func @transform_11(%arg0: i32) -> (i32, i32) {
    %c0_i32 = arith.constant 0 : i32
    %c0_i32_0 = arith.constant 0 : i32
    return %c0_i32, %arg0 : i32, i32
  }
}

</mosaic_0001>

<llo_original>
// kernel: tpu_custom_call.1
$region0: #{tpu_custom_call.1}
  #allocation0 [shape = 'u32[]', space=smem, size = 0x4, offset = 0x4, fixed_abs, tag = 'smem constant byte address 0x4 - core index']
  #allocation1 [shape = 'u32[144,128]{1,0:T(1,128)}', space=vmem, size = 0x12000, scoped, tag = 'internal scratch']
  #allocation2 [shape = 'f32[1,1]{1,0:T(1,128)S(1)}', space=vmem, size = 0x200, scoped, tag = 'scoped memory for tpu_custom_call.1']
  %s0 = inlined_call_operand.vmem [shape: f32[128,16], index: 0, kind: input, shape index: {}]
  %s1 = inlined_call_operand.vmem [shape: f32[128,32], index: 1, kind: input, shape index: {}]
  %s2 = inlined_call_operand.vmem [shape: f32[128,32], index: 2, kind: input, shape index: {}]
  %s3 = inlined_call_operand.vmem [shape: f32[16,32], index: 3, kind: input, shape index: {}]
  %s4 = inlined_call_operand.vmem [shape: f32[1,32], index: 4, kind: input, shape index: {}]
  %s5 = inlined_call_operand.vmem [shape: f32[32,32], index: 5, kind: input, shape index: {}]
  %s6 = inlined_call_operand.vmem [shape: f32[1,32], index: 6, kind: input, shape index: {}]
  %s7 = inlined_call_operand.vmem [shape: f32[32,32], index: 7, kind: input, shape index: {}]
  %s8 = inlined_call_operand.vmem [shape: f32[1,32], index: 8, kind: input, shape index: {}]
  %s9 = inlined_call_operand.vmem [shape: f32[1,32], index: 9, kind: input, shape index: {}]
  %s10 = inlined_call_operand.<no memory space> [shape: f32[1,1], index: 10, kind: input, shape index: {}]
  %s11 = inlined_call_operand.hbm [shape: f32[1,128], index: 11, kind: output, shape index: {}]
  %s12 = sld [smem:[#allocation0]]
  $region54: #{tpu_custom_call.1} parent=0
    _
  %s14 = ssub.s32 1, %s12
  %s15 = scalar_select 0, %s14, %s12
  %v16 = vstv %s10
  %17 = vst [vmem:[#allocation2] sm:$0x1] %v16
  $region1: #{tpu_custom_call.1} parent=0
    #allocation3 [shape = 'u8[512]{0}', space=vmem, size = 0x400, scoped, tag = 'output window, operand 0, single buffered']
    #allocation4 [shape = 's32[1]{0}', space=sflag, size = 0x4, scoped, tag = 'scoped memory for tpu_custom_call.1']
    %18 = vsyncpa [#allocation4], 0
    // Predicated region
    $region2: #{tpu_custom_call.1} parent=1 // pred_check
      _
    $region3: #{tpu_custom_call.1} parent=1 // pred_check_branch
      %20 = sbr.rel (0) target = $region5
    $region4: #{tpu_custom_call.1} parent=1 // pred_region
      _
    $region5: #{tpu_custom_call.1} parent=1 // pred_fallthru
      _
    // Predicated region
    $region6: #{tpu_custom_call.1} parent=1 // pred_check
      _
    $region7: #{tpu_custom_call.1} parent=1 // pred_check_branch
      %22 = sbr.rel (0) target = $region9
    $region8: #{tpu_custom_call.1} parent=1 // pred_region
      _
    $region9: #{tpu_custom_call.1} parent=1 // pred_fallthru
      _
    // Predicated region
    $region10: #{tpu_custom_call.1} parent=1 // pred_check
      _
    $region11: #{tpu_custom_call.1} parent=1 // pred_check_branch
      %24 = sbr.rel (0) target = $region13
    $region12: #{tpu_custom_call.1} parent=1 // pred_region
      _
    $region13: #{tpu_custom_call.1} parent=1 // pred_fallthru
      _
    // Predicated region
    $region14: #{tpu_custom_call.1} parent=1 // pred_check
      _
    $region15: #{tpu_custom_call.1} parent=1 // pred_check_branch
      %26 = sbr.rel (0) target = $region17
    $region16: #{tpu_custom_call.1} parent=1 // pred_region
      _
    $region17: #{tpu_custom_call.1} parent=1 // pred_fallthru
      _
    // Predicated region
    $region18: #{tpu_custom_call.1} parent=1 // pred_check
      _
    $region19: #{tpu_custom_call.1} parent=1 // pred_check_branch
      %28 = sbr.rel (0) target = $region21
    $region20: #{tpu_custom_call.1} parent=1 // pred_region
      _
    $region21: #{tpu_custom_call.1} parent=1 // pred_fallthru
      _
    // Predicated region
    $region22: #{tpu_custom_call.1} parent=1 // pred_check
      _
    $region23: #{tpu_custom_call.1} parent=1 // pred_check_branch
      %30 = sbr.rel (0) target = $region25
    $region24: #{tpu_custom_call.1} parent=1 // pred_region
      _
    $region25: #{tpu_custom_call.1} parent=1 // pred_fallthru
      _
    // Predicated region
    $region26: #{tpu_custom_call.1} parent=1 // pred_check
      _
    $region27: #{tpu_custom_call.1} parent=1 // pred_check_branch
      %32 = sbr.rel (0) target = $region29
    $region28: #{tpu_custom_call.1} parent=1 // pred_region
      _
    $region29: #{tpu_custom_call.1} parent=1 // pred_fallthru
      _
    // Predicated region
    $region30: #{tpu_custom_call.1} parent=1 // pred_check
      _
    $region31: #{tpu_custom_call.1} parent=1 // pred_check_branch
      %34 = sbr.rel (0) target = $region33
    $region32: #{tpu_custom_call.1} parent=1 // pred_region
      _
    $region33: #{tpu_custom_call.1} parent=1 // pred_fallthru
      _
    // Predicated region
    $region34: #{tpu_custom_call.1} parent=1 // pred_check
      _
    $region35: #{tpu_custom_call.1} parent=1 // pred_check_branch
      %36 = sbr.rel (0) target = $region37
    $region36: #{tpu_custom_call.1} parent=1 // pred_region
      _
    $region37: #{tpu_custom_call.1} parent=1 // pred_fallthru
      _
    // Predicated region
    $region38: #{tpu_custom_call.1} parent=1 // pred_check
      _
    $region39: #{tpu_custom_call.1} parent=1 // pred_check_branch
      %38 = sbr.rel (0) target = $region41
    $region40: #{tpu_custom_call.1} parent=1 // pred_region
      _
    $region41: #{tpu_custom_call.1} parent=1 // pred_fallthru
      _
    // Predicated region
    $region42: #{tpu_custom_call.1} parent=1 // pred_check
      _
    $region43: #{tpu_custom_call.1} parent=1 // pred_check_branch
      %40 = sbr.rel (0) target = $region45
    $region44: #{tpu_custom_call.1} parent=1 // pred_region
      _
    $region45: #{tpu_custom_call.1} parent=1 // pred_fallthru
      _
    %v41 = vld [vmem:[%s0] sm:$0xff]
    %v42 = vld [vmem:[%s0 + $0x8] sm:$0xff]
    %v43 = vld [vmem:[%s0 + $0x10] sm:$0xff]
    %v44 = vld [vmem:[%s0 + $0x18] sm:$0xff]
    %v45 = vld [vmem:[%s0 + $0x20] sm:$0xff]
    %v46 = vld [vmem:[%s0 + $0x28] sm:$0xff]
    %v47 = vld [vmem:[%s0 + $0x30] sm:$0xff]
    %v48 = vld [vmem:[%s0 + $0x38] sm:$0xff]
    %v49 = vld [vmem:[%s0 + $0x40] sm:$0xff]
    %v50 = vld [vmem:[%s0 + $0x48] sm:$0xff]
    %v51 = vld [vmem:[%s0 + $0x50] sm:$0xff]
    %v52 = vld [vmem:[%s0 + $0x58] sm:$0xff]
    %v53 = vld [vmem:[%s0 + $0x60] sm:$0xff]
    %v54 = vld [vmem:[%s0 + $0x68] sm:$0xff]
    %v55 = vld [vmem:[%s0 + $0x70] sm:$0xff]
    %v56 = vld [vmem:[%s0 + $0x78] sm:$0xff]
    %v57 = vld [vmem:[%s3] sm:$0xff]
    %v58 = vld [vmem:[%s3 + $0x8] sm:$0xff]
    %v59 = vld [vmem:[%s4] sm:$0x1]
    %v61 = vlaneseq
    %v62 = vshrl.u32 %v61, 7
    %v63 = vsub.s32 0, %v62
    %v64 = vrot.slane %v59, %v63
    %vm66 = vcmask 130048
    %v68 = vsel %vm66, %v41, 0
    %v71 = vsel %vm66, %v42, 0
    %v74 = vsel %vm66, %v43, 0
    %v77 = vsel %vm66, %v44, 0
    %v80 = vsel %vm66, %v45, 0
    %v83 = vsel %vm66, %v46, 0
    %v86 = vsel %vm66, %v47, 0
    %v89 = vsel %vm66, %v48, 0
    %v92 = vsel %vm66, %v49, 0
    %v95 = vsel %vm66, %v50, 0
    %v98 = vsel %vm66, %v51, 0
    %v101 = vsel %vm66, %v52, 0
    %v104 = vsel %vm66, %v53, 0
    %v107 = vsel %vm66, %v54, 0
    %v110 = vsel %vm66, %v55, 0
    %v113 = vsel %vm66, %v56, 0
    %115 = vmatprep.subr.mxu0 0.0
    %116 = vmatpush1.msra.mxu0 %v57
    %117 = vmatprep.subr.mxu0 0.0
    %118 = vmatpush1.msra.mxu0 %v58
    %119 = vmatprep.subr.mxu0 0.0
    %120 = vmatpush1.msra.mxu0 0.0
    %121 = vmatprep.subr.mxu0 0.0
    %122 = vmatpush1.msra.mxu0 0.0
    %123 = vmatprep.subr.mxu0 0.0
    %124 = vmatpush1.msra.mxu0 0.0
    %125 = vmatprep.subr.mxu0 0.0
    %126 = vmatpush1.msra.mxu0 0.0
    %127 = vmatprep.subr.mxu0 0.0
    %128 = vmatpush1.msra.mxu0 0.0
    %129 = vmatprep.subr.mxu0 0.0
    %130 = vmatpush1.msra.mxu0 0.0
    %131 = vmatprep.subr.mxu0 0.0
    %132 = vmatpush1.msra.mxu0 0.0
    %133 = vmatprep.subr.mxu0 0.0
    %134 = vmatpush1.msra.mxu0 0.0
    %135 = vmatprep.subr.mxu0 0.0
    %136 = vmatpush1.msra.mxu0 0.0
    %137 = vmatprep.subr.mxu0 0.0
    %138 = vmatpush1.msra.mxu0 0.0
    %139 = vmatprep.subr.mxu0 0.0
    %140 = vmatpush1.msra.mxu0 0.0
    %141 = vmatprep.subr.mxu0 0.0
    %142 = vmatpush1.msra.mxu0 0.0
    %143 = vmatprep.subr.mxu0 0.0
    %144 = vmatpush1.msra.mxu0 0.0
    %145 = vmatprep.subr.mxu0 0.0
    %146 = vmatpush1.msra.mxu0 0.0
    %147 = vmatprep.subr.mxu0 0.0
    %148 = vmatpush1.msra.mxu0 0.0
    %149 = vmatprep.subr.mxu0 0.0
    %150 = vmatpush1.msra.mxu0 0.0
    %151 = vmatprep.subr.mxu0 0.0
    %152 = vmatpush1.msra.mxu0 0.0
    %153 = vmatprep.subr.mxu0 0.0
    %154 = vmatpush1.msra.mxu0 0.0
    %155 = vmatprep.subr.mxu0 0.0
    %156 = vmatpush1.msra.mxu0 0.0
    %157 = vmatprep.subr.mxu0 0.0
    %158 = vmatpush1.msra.mxu0 0.0
    %159 = vmatprep.subr.mxu0 0.0
    %160 = vmatpush1.msra.mxu0 0.0
    %161 = vmatprep.subr.mxu0 0.0
    %162 = vmatpush1.msra.mxu0 0.0
    %163 = vmatprep.subr.mxu0 0.0
    %164 = vmatpush1.msra.mxu0 0.0
    %165 = vmatprep.subr.mxu0 0.0
    %166 = vmatpush1.msra.mxu0 0.0
    %167 = vmatprep.subr.mxu0 0.0
    %168 = vmatpush1.msra.mxu0 0.0
    %169 = vmatprep.subr.mxu0 0.0
    %170 = vmatpush1.msra.mxu0 0.0
    %171 = vmatprep.subr.mxu0 0.0
    %172 = vmatpush1.msra.mxu0 0.0
    %173 = vmatprep.subr.mxu0 0.0
    %174 = vmatpush1.msra.mxu0 0.0
    %175 = vmatprep.subr.mxu0 0.0
    %176 = vmatpush1.msra.mxu0 0.0
    %177 = vmatprep.subr.mxu0 0.0
    %178 = vmatpush1.msra.mxu0 0.0
    %179 = vmatprep.mubr.f32.mxu0 0.0
    %180 = vmatmul.mubr.f32.gmra.mrb[0].mxu0 %v68
    %v181 = vpop.f32.mrb[0].mxu0
    %v182 = vadd.f32 %v64, %v181
    %v183 = vpop.f32.mrb[0].mxu0
    %184 = vmatprep.mubr.f32.mxu0 0.0
    %185 = vmatmul.mubr.f32.gmra.mrb[0].mxu0 %v71
    %v186 = vpop.f32.mrb[0].mxu0
    %v187 = vadd.f32 %v64, %v186
    %v188 = vpop.f32.mrb[0].mxu0
    %189 = vmatprep.mubr.f32.mxu0 0.0
    %190 = vmatmul.mubr.f32.gmra.mrb[0].mxu0 %v74
    %v191 = vpop.f32.mrb[0].mxu0
    %v192 = vadd.f32 %v64, %v191
    %v193 = vpop.f32.mrb[0].mxu0
    %194 = vmatprep.mubr.f32.mxu0 0.0
    %195 = vmatmul.mubr.f32.gmra.mrb[0].mxu0 %v77
    %v196 = vpop.f32.mrb[0].mxu0
    %v197 = vadd.f32 %v64, %v196
    %v198 = vpop.f32.mrb[0].mxu0
    %199 = vmatprep.mubr.f32.mxu0 0.0
    %200 = vmatmul.mubr.f32.gmra.mrb[0].mxu0 %v80
    %v201 = vpop.f32.mrb[0].mxu0
    %v202 = vadd.f32 %v64, %v201
    %v203 = vpop.f32.mrb[0].mxu0
    %204 = vmatprep.mubr.f32.mxu0 0.0
    %205 = vmatmul.mubr.f32.gmra.mrb[0].mxu0 %v83
    %v206 = vpop.f32.mrb[0].mxu0
    %v207 = vadd.f32 %v64, %v206
    %v208 = vpop.f32.mrb[0].mxu0
    %209 = vmatprep.mubr.f32.mxu0 0.0
    %210 = vmatmul.mubr.f32.gmra.mrb[0].mxu0 %v86
    %v211 = vpop.f32.mrb[0].mxu0
    %v212 = vadd.f32 %v64, %v211
    %v213 = vpop.f32.mrb[0].mxu0
    %214 = vmatprep.mubr.f32.mxu0 0.0
    %215 = vmatmul.mubr.f32.gmra.mrb[0].mxu0 %v89
    %v216 = vpop.f32.mrb[0].mxu0
    %v217 = vadd.f32 %v64, %v216
    %v218 = vpop.f32.mrb[0].mxu0
    %219 = vmatprep.mubr.f32.mxu0 0.0
    %220 = vmatmul.mubr.f32.gmra.mrb[0].mxu0 %v92
    %v221 = vpop.f32.mrb[0].mxu0
    %v222 = vadd.f32 %v64, %v221
    %v223 = vpop.f32.mrb[0].mxu0
    %224 = vmatprep.mubr.f32.mxu0 0.0
    %225 = vmatmul.mubr.f32.gmra.mrb[0].mxu0 %v95
    %v226 = vpop.f32.mrb[0].mxu0
    %v227 = vadd.f32 %v64, %v226
    %v228 = vpop.f32.mrb[0].mxu0
    %229 = vmatprep.mubr.f32.mxu0 0.0
    %230 = vmatmul.mubr.f32.gmra.mrb[0].mxu0 %v98
    %v231 = vpop.f32.mrb[0].mxu0
    %v232 = vadd.f32 %v64, %v231
    %v233 = vpop.f32.mrb[0].mxu0
    %234 = vmatprep.mubr.f32.mxu0 0.0
    %235 = vmatmul.mubr.f32.gmra.mrb[0].mxu0 %v101
    %v236 = vpop.f32.mrb[0].mxu0
    %v237 = vadd.f32 %v64, %v236
    %v238 = vpop.f32.mrb[0].mxu0
    %239 = vmatprep.mubr.f32.mxu0 0.0
    %240 = vmatmul.mubr.f32.gmra.mrb[0].mxu0 %v104
    %v241 = vpop.f32.mrb[0].mxu0
    %v242 = vadd.f32 %v64, %v241
    %v243 = vpop.f32.mrb[0].mxu0
    %244 = vmatprep.mubr.f32.mxu0 0.0
    %245 = vmatmul.mubr.f32.gmra.mrb[0].mxu0 %v107
    %v246 = vpop.f32.mrb[0].mxu0
    %v247 = vadd.f32 %v64, %v246
    %v248 = vpop.f32.mrb[0].mxu0
    %249 = vmatprep.mubr.f32.mxu0 0.0
    %250 = vmatmul.mubr.f32.gmra.mrb[0].mxu0 %v110
    %v251 = vpop.f32.mrb[0].mxu0
    %v252 = vadd.f32 %v64, %v251
    %v253 = vpop.f32.mrb[0].mxu0
    %254 = vmatprep.mubr.f32.mxu0 0.0
    %255 = vmatmul.mubr.f32.gmra.mrb[0].mxu0 %v113
    %v256 = vpop.f32.mrb[0].mxu0
    %v257 = vadd.f32 %v64, %v256
    %v258 = vpop.f32.mrb[0].mxu0
    %259 = vdwg.mxu0
    %v260 = vld [vmem:[%s1] sm:$0xff]
    %v261 = vld [vmem:[%s1 + $0x8] sm:$0xff]
    %v262 = vld [vmem:[%s1 + $0x10] sm:$0xff]
    %v263 = vld [vmem:[%s1 + $0x18] sm:$0xff]
    %v264 = vld [vmem:[%s1 + $0x20] sm:$0xff]
    %v265 = vld [vmem:[%s1 + $0x28] sm:$0xff]
    %v266 = vld [vmem:[%s1 + $0x30] sm:$0xff]
    %v267 = vld [vmem:[%s1 + $0x38] sm:$0xff]
    %v268 = vld [vmem:[%s1 + $0x40] sm:$0xff]
    %v269 = vld [vmem:[%s1 + $0x48] sm:$0xff]
    %v270 = vld [vmem:[%s1 + $0x50] sm:$0xff]
    %v271 = vld [vmem:[%s1 + $0x58] sm:$0xff]
    %v272 = vld [vmem:[%s1 + $0x60] sm:$0xff]
    %v273 = vld [vmem:[%s1 + $0x68] sm:$0xff]
    %v274 = vld [vmem:[%s1 + $0x70] sm:$0xff]
    %v275 = vld [vmem:[%s1 + $0x78] sm:$0xff]
    %v276 = vld [vmem:[%s5] sm:$0xff]
    %v277 = vld [vmem:[%s5 + $0x8] sm:$0xff]
    %v278 = vld [vmem:[%s5 + $0x10] sm:$0xff]
    %v279 = vld [vmem:[%s5 + $0x18] sm:$0xff]
    %v280 = vld [vmem:[%s6] sm:$0x1]
    %v282 = vlaneseq
    %v283 = vshrl.u32 %v282, 7
    %v284 = vsub.s32 0, %v283
    %v285 = vrot.slane %v280, %v284
    %vm287 = vcmask 261120
    %v289 = vsel %vm287, %v260, 0
    %v292 = vsel %vm287, %v261, 0
    %v295 = vsel %vm287, %v262, 0
    %v298 = vsel %vm287, %v263, 0
    %v301 = vsel %vm287, %v264, 0
    %v304 = vsel %vm287, %v265, 0
    %v307 = vsel %vm287, %v266, 0
    %v310 = vsel %vm287, %v267, 0
    %v313 = vsel %vm287, %v268, 0
    %v316 = vsel %vm287, %v269, 0
    %v319 = vsel %vm287, %v270, 0
    %v322 = vsel %vm287, %v271, 0
    %v325 = vsel %vm287, %v272, 0
    %v328 = vsel %vm287, %v273, 0
    %v331 = vsel %vm287, %v274, 0
    %v334 = vsel %vm287, %v275, 0
    %336 = vmatprep.subr.mxu0 0.0
    %337 = vmatpush1.msra.mxu0 %v276
    %338 = vmatprep.subr.mxu0 0.0
    %339 = vmatpush1.msra.mxu0 %v277
    %340 = vmatprep.subr.mxu0 0.0
    %341 = vmatpush1.msra.mxu0 %v278
    %342 = vmatprep.subr.mxu0 0.0
    %343 = vmatpush1.msra.mxu0 %v279
    %344 = vmatprep.subr.mxu0 0.0
    %345 = vmatpush1.msra.mxu0 0.0
    %346 = vmatprep.subr.mxu0 0.0
    %347 = vmatpush1.msra.mxu0 0.0
    %348 = vmatprep.subr.mxu0 0.0
    %349 = vmatpush1.msra.mxu0 0.0
    %350 = vmatprep.subr.mxu0 0.0
    %351 = vmatpush1.msra.mxu0 0.0
    %352 = vmatprep.subr.mxu0 0.0
    %353 = vmatpush1.msra.mxu0 0.0
    %354 = vmatprep.subr.mxu0 0.0
    %355 = vmatpush1.msra.mxu0 0.0
    %356 = vmatprep.subr.mxu0 0.0
    %357 = vmatpush1.msra.mxu0 0.0
    %358 = vmatprep.subr.mxu0 0.0
    %359 = vmatpush1.msra.mxu0 0.0
    %360 = vmatprep.subr.mxu0 0.0
    %361 = vmatpush1.msra.mxu0 0.0
    %362 = vmatprep.subr.mxu0 0.0
    %363 = vmatpush1.msra.mxu0 0.0
    %364 = vmatprep.subr.mxu0 0.0
    %365 = vmatpush1.msra.mxu0 0.0
    %366 = vmatprep.subr.mxu0 0.0
    %367 = vmatpush1.msra.mxu0 0.0
    %368 = vmatprep.subr.mxu0 0.0
    %369 = vmatpush1.msra.mxu0 0.0
    %370 = vmatprep.subr.mxu0 0.0
    %371 = vmatpush1.msra.mxu0 0.0
    %372 = vmatprep.subr.mxu0 0.0
    %373 = vmatpush1.msra.mxu0 0.0
    %374 = vmatprep.subr.mxu0 0.0
    %375 = vmatpush1.msra.mxu0 0.0
    %376 = vmatprep.subr.mxu0 0.0
    %377 = vmatpush1.msra.mxu0 0.0
    %378 = vmatprep.subr.mxu0 0.0
    %379 = vmatpush1.msra.mxu0 0.0
    %380 = vmatprep.subr.mxu0 0.0
    %381 = vmatpush1.msra.mxu0 0.0
    %382 = vmatprep.subr.mxu0 0.0
    %383 = vmatpush1.msra.mxu0 0.0
    %384 = vmatprep.subr.mxu0 0.0
    %385 = vmatpush1.msra.mxu0 0.0
    %386 = vmatprep.subr.mxu0 0.0
    %387 = vmatpush1.msra.mxu0 0.0
    %388 = vmatprep.subr.mxu0 0.0
    %389 = vmatpush1.msra.mxu0 0.0
    %390 = vmatprep.subr.mxu0 0.0
    %391 = vmatpush1.msra.mxu0 0.0
    %392 = vmatprep.subr.mxu0 0.0
    %393 = vmatpush1.msra.mxu0 0.0
    %394 = vmatprep.subr.mxu0 0.0
    %395 = vmatpush1.msra.mxu0 0.0
    %396 = vmatprep.subr.mxu0 0.0
    %397 = vmatpush1.msra.mxu0 0.0
    %398 = vmatprep.subr.mxu0 0.0
    %399 = vmatpush1.msra.mxu0 0.0
    %400 = vmatprep.mubr.f32.mxu0 0.0
    %401 = vmatmul.mubr.f32.gmra.mrb[0].mxu0 %v289
    %v402 = vpop.f32.mrb[0].mxu0
    %v403 = vadd.f32 %v285, %v402
    %v404 = vpop.f32.mrb[0].mxu0
    %405 = vmatprep.mubr.f32.mxu0 0.0
    %406 = vmatmul.mubr.f32.gmra.mrb[0].mxu0 %v292
    %v407 = vpop.f32.mrb[0].mxu0
    %v408 = vadd.f32 %v285, %v407
    %v409 = vpop.f32.mrb[0].mxu0
    %410 = vmatprep.mubr.f32.mxu0 0.0
    %411 = vmatmul.mubr.f32.gmra.mrb[0].mxu0 %v295
    %v412 = vpop.f32.mrb[0].mxu0
    %v413 = vadd.f32 %v285, %v412
    %v414 = vpop.f32.mrb[0].mxu0
    %415 = vmatprep.mubr.f32.mxu0 0.0
    %416 = vmatmul.mubr.f32.gmra.mrb[0].mxu0 %v298
    %v417 = vpop.f32.mrb[0].mxu0
    %v418 = vadd.f32 %v285, %v417
    %v419 = vpop.f32.mrb[0].mxu0
    %420 = vmatprep.mubr.f32.mxu0 0.0
    %421 = vmatmul.mubr.f32.gmra.mrb[0].mxu0 %v301
    %v422 = vpop.f32.mrb[0].mxu0
    %v423 = vadd.f32 %v285, %v422
    %v424 = vpop.f32.mrb[0].mxu0
    %425 = vmatprep.mubr.f32.mxu0 0.0
    %426 = vmatmul.mubr.f32.gmra.mrb[0].mxu0 %v304
    %v427 = vpop.f32.mrb[0].mxu0
    %v428 = vadd.f32 %v285, %v427
    %v429 = vpop.f32.mrb[0].mxu0
    %430 = vmatprep.mubr.f32.mxu0 0.0
    %431 = vmatmul.mubr.f32.gmra.mrb[0].mxu0 %v307
    %v432 = vpop.f32.mrb[0].mxu0
    %v433 = vadd.f32 %v285, %v432
    %v434 = vpop.f32.mrb[0].mxu0
    %435 = vmatprep.mubr.f32.mxu0 0.0
    %436 = vmatmul.mubr.f32.gmra.mrb[0].mxu0 %v310
    %v437 = vpop.f32.mrb[0].mxu0
    %v438 = vadd.f32 %v285, %v437
    %v439 = vpop.f32.mrb[0].mxu0
    %440 = vmatprep.mubr.f32.mxu0 0.0
    %441 = vmatmul.mubr.f32.gmra.mrb[0].mxu0 %v313
    %v442 = vpop.f32.mrb[0].mxu0
    %v443 = vadd.f32 %v285, %v442
    %v444 = vpop.f32.mrb[0].mxu0
    %445 = vmatprep.mubr.f32.mxu0 0.0
    %446 = vmatmul.mubr.f32.gmra.mrb[0].mxu0 %v316
    %v447 = vpop.f32.mrb[0].mxu0
    %v448 = vadd.f32 %v285, %v447
    %v449 = vpop.f32.mrb[0].mxu0
    %450 = vmatprep.mubr.f32.mxu0 0.0
    %451 = vmatmul.mubr.f32.gmra.mrb[0].mxu0 %v319
    %v452 = vpop.f32.mrb[0].mxu0
    %v453 = vadd.f32 %v285, %v452
    %v454 = vpop.f32.mrb[0].mxu0
    %455 = vmatprep.mubr.f32.mxu0 0.0
    %456 = vmatmul.mubr.f32.gmra.mrb[0].mxu0 %v322
    %v457 = vpop.f32.mrb[0].mxu0
    %v458 = vadd.f32 %v285, %v457
    %v459 = vpop.f32.mrb[0].mxu0
    %460 = vmatprep.mubr.f32.mxu0 0.0
    %461 = vmatmul.mubr.f32.gmra.mrb[0].mxu0 %v325
    %v462 = vpop.f32.mrb[0].mxu0
    %v463 = vadd.f32 %v285, %v462
    %v464 = vpop.f32.mrb[0].mxu0
    %465 = vmatprep.mubr.f32.mxu0 0.0
    %466 = vmatmul.mubr.f32.gmra.mrb[0].mxu0 %v328
    %v467 = vpop.f32.mrb[0].mxu0
    %v468 = vadd.f32 %v285, %v467
    %v469 = vpop.f32.mrb[0].mxu0
    %470 = vmatprep.mubr.f32.mxu0 0.0
    %471 = vmatmul.mubr.f32.gmra.mrb[0].mxu0 %v331
    %v472 = vpop.f32.mrb[0].mxu0
    %v473 = vadd.f32 %v285, %v472
    %v474 = vpop.f32.mrb[0].mxu0
    %475 = vmatprep.mubr.f32.mxu0 0.0
    %476 = vmatmul.mubr.f32.gmra.mrb[0].mxu0 %v334
    %v477 = vpop.f32.mrb[0].mxu0
    %v478 = vadd.f32 %v285, %v477
    %v479 = vpop.f32.mrb[0].mxu0
    %480 = vdwg.mxu0
    %v481 = vld [vmem:[%s2] sm:$0xff]
    %v482 = vld [vmem:[%s2 + $0x8] sm:$0xff]
    %v483 = vld [vmem:[%s2 + $0x10] sm:$0xff]
    %v484 = vld [vmem:[%s2 + $0x18] sm:$0xff]
    %v485 = vld [vmem:[%s2 + $0x20] sm:$0xff]
    %v486 = vld [vmem:[%s2 + $0x28] sm:$0xff]
    %v487 = vld [vmem:[%s2 + $0x30] sm:$0xff]
    %v488 = vld [vmem:[%s2 + $0x38] sm:$0xff]
    %v489 = vld [vmem:[%s2 + $0x40] sm:$0xff]
    %v490 = vld [vmem:[%s2 + $0x48] sm:$0xff]
    %v491 = vld [vmem:[%s2 + $0x50] sm:$0xff]
    %v492 = vld [vmem:[%s2 + $0x58] sm:$0xff]
    %v493 = vld [vmem:[%s2 + $0x60] sm:$0xff]
    %v494 = vld [vmem:[%s2 + $0x68] sm:$0xff]
    %v495 = vld [vmem:[%s2 + $0x70] sm:$0xff]
    %v496 = vld [vmem:[%s2 + $0x78] sm:$0xff]
    %v497 = vld [vmem:[%s7] sm:$0xff]
    %v498 = vld [vmem:[%s7 + $0x8] sm:$0xff]
    %v499 = vld [vmem:[%s7 + $0x10] sm:$0xff]
    %v500 = vld [vmem:[%s7 + $0x18] sm:$0xff]
    %v501 = vld [vmem:[%s8] sm:$0x1]
    %v503 = vlaneseq
    %v504 = vshrl.u32 %v503, 7
    %v505 = vsub.s32 0, %v504
    %v506 = vrot.slane %v501, %v505
    %v509 = vsel %vm287, %v481, 0
    %v512 = vsel %vm287, %v482, 0
    %v515 = vsel %vm287, %v483, 0
    %v518 = vsel %vm287, %v484, 0
    %v521 = vsel %vm287, %v485, 0
    %v524 = vsel %vm287, %v486, 0
    %v527 = vsel %vm287, %v487, 0
    %v530 = vsel %vm287, %v488, 0
    %v533 = vsel %vm287, %v489, 0
    %v536 = vsel %vm287, %v490, 0
    %v539 = vsel %vm287, %v491, 0
    %v542 = vsel %vm287, %v492, 0
    %v545 = vsel %vm287, %v493, 0
    %v548 = vsel %vm287, %v494, 0
    %v551 = vsel %vm287, %v495, 0
    %v554 = vsel %vm287, %v496, 0
    %556 = vmatprep.subr.mxu0 0.0
    %557 = vmatpush1.msra.mxu0 %v497
    %558 = vmatprep.subr.mxu0 0.0
    %559 = vmatpush1.msra.mxu0 %v498
    %560 = vmatprep.subr.mxu0 0.0
    %561 = vmatpush1.msra.mxu0 %v499
    %562 = vmatprep.subr.mxu0 0.0
    %563 = vmatpush1.msra.mxu0 %v500
    %564 = vmatprep.subr.mxu0 0.0
    %565 = vmatpush1.msra.mxu0 0.0
    %566 = vmatprep.subr.mxu0 0.0
    %567 = vmatpush1.msra.mxu0 0.0
    %568 = vmatprep.subr.mxu0 0.0
    %569 = vmatpush1.msra.mxu0 0.0
    %570 = vmatprep.subr.mxu0 0.0
    %571 = vmatpush1.msra.mxu0 0.0
    %572 = vmatprep.subr.mxu0 0.0
    %573 = vmatpush1.msra.mxu0 0.0
    %574 = vmatprep.subr.mxu0 0.0
    %575 = vmatpush1.msra.mxu0 0.0
    %576 = vmatprep.subr.mxu0 0.0
    %577 = vmatpush1.msra.mxu0 0.0
    %578 = vmatprep.subr.mxu0 0.0
    %579 = vmatpush1.msra.mxu0 0.0
    %580 = vmatprep.subr.mxu0 0.0
    %581 = vmatpush1.msra.mxu0 0.0
    %582 = vmatprep.subr.mxu0 0.0
    %583 = vmatpush1.msra.mxu0 0.0
    %584 = vmatprep.subr.mxu0 0.0
    %585 = vmatpush1.msra.mxu0 0.0
    %586 = vmatprep.subr.mxu0 0.0
    %587 = vmatpush1.msra.mxu0 0.0
    %588 = vmatprep.subr.mxu0 0.0
    %589 = vmatpush1.msra.mxu0 0.0
    %590 = vmatprep.subr.mxu0 0.0
    %591 = vmatpush1.msra.mxu0 0.0
    %592 = vmatprep.subr.mxu0 0.0
    %593 = vmatpush1.msra.mxu0 0.0
    %594 = vmatprep.subr.mxu0 0.0
    %595 = vmatpush1.msra.mxu0 0.0
    %596 = vmatprep.subr.mxu0 0.0
    %597 = vmatpush1.msra.mxu0 0.0
    %598 = vmatprep.subr.mxu0 0.0
    %599 = vmatpush1.msra.mxu0 0.0
    %600 = vmatprep.subr.mxu0 0.0
    %601 = vmatpush1.msra.mxu0 0.0
    %602 = vmatprep.subr.mxu0 0.0
    %603 = vmatpush1.msra.mxu0 0.0
    %604 = vmatprep.subr.mxu0 0.0
    %605 = vmatpush1.msra.mxu0 0.0
    %606 = vmatprep.subr.mxu0 0.0
    %607 = vmatpush1.msra.mxu0 0.0
    %608 = vmatprep.subr.mxu0 0.0
    %609 = vmatpush1.msra.mxu0 0.0
    %610 = vmatprep.subr.mxu0 0.0
    %611 = vmatpush1.msra.mxu0 0.0
    %612 = vmatprep.subr.mxu0 0.0
    %613 = vmatpush1.msra.mxu0 0.0
    %614 = vmatprep.subr.mxu0 0.0
    %615 = vmatpush1.msra.mxu0 0.0
    %616 = vmatprep.subr.mxu0 0.0
    %617 = vmatpush1.msra.mxu0 0.0
    %618 = vmatprep.subr.mxu0 0.0
    %619 = vmatpush1.msra.mxu0 0.0
    %620 = vmatprep.mubr.f32.mxu0 0.0
    %621 = vmatmul.mubr.f32.gmra.mrb[0].mxu0 %v509
    %v622 = vpop.f32.mrb[0].mxu0
    %v623 = vadd.f32 %v506, %v622
    %v624 = vpop.f32.mrb[0].mxu0
    %625 = vmatprep.mubr.f32.mxu0 0.0
    %626 = vmatmul.mubr.f32.gmra.mrb[0].mxu0 %v512
    %v627 = vpop.f32.mrb[0].mxu0
    %v628 = vadd.f32 %v506, %v627
    %v629 = vpop.f32.mrb[0].mxu0
    %630 = vmatprep.mubr.f32.mxu0 0.0
    %631 = vmatmul.mubr.f32.gmra.mrb[0].mxu0 %v515
    %v632 = vpop.f32.mrb[0].mxu0
    %v633 = vadd.f32 %v506, %v632
    %v634 = vpop.f32.mrb[0].mxu0
    %635 = vmatprep.mubr.f32.mxu0 0.0
    %636 = vmatmul.mubr.f32.gmra.mrb[0].mxu0 %v518
    %v637 = vpop.f32.mrb[0].mxu0
    %v638 = vadd.f32 %v506, %v637
    %v639 = vpop.f32.mrb[0].mxu0
    %640 = vmatprep.mubr.f32.mxu0 0.0
    %641 = vmatmul.mubr.f32.gmra.mrb[0].mxu0 %v521
    %v642 = vpop.f32.mrb[0].mxu0
    %v643 = vadd.f32 %v506, %v642
    %v644 = vpop.f32.mrb[0].mxu0
    %645 = vmatprep.mubr.f32.mxu0 0.0
    %646 = vmatmul.mubr.f32.gmra.mrb[0].mxu0 %v524
    %v647 = vpop.f32.mrb[0].mxu0
    %v648 = vadd.f32 %v506, %v647
    %v649 = vpop.f32.mrb[0].mxu0
    %650 = vmatprep.mubr.f32.mxu0 0.0
    %651 = vmatmul.mubr.f32.gmra.mrb[0].mxu0 %v527
    %v652 = vpop.f32.mrb[0].mxu0
    %v653 = vadd.f32 %v506, %v652
    %v654 = vpop.f32.mrb[0].mxu0
    %655 = vmatprep.mubr.f32.mxu0 0.0
    %656 = vmatmul.mubr.f32.gmra.mrb[0].mxu0 %v530
    %v657 = vpop.f32.mrb[0].mxu0
    %v658 = vadd.f32 %v506, %v657
    %v659 = vpop.f32.mrb[0].mxu0
    %660 = vmatprep.mubr.f32.mxu0 0.0
    %661 = vmatmul.mubr.f32.gmra.mrb[0].mxu0 %v533
    %v662 = vpop.f32.mrb[0].mxu0
    %v663 = vadd.f32 %v506, %v662
    %v664 = vpop.f32.mrb[0].mxu0
    %665 = vmatprep.mubr.f32.mxu0 0.0
    %666 = vmatmul.mubr.f32.gmra.mrb[0].mxu0 %v536
    %v667 = vpop.f32.mrb[0].mxu0
    %v668 = vadd.f32 %v506, %v667
    %v669 = vpop.f32.mrb[0].mxu0
    %670 = vmatprep.mubr.f32.mxu0 0.0
    %671 = vmatmul.mubr.f32.gmra.mrb[0].mxu0 %v539
    %v672 = vpop.f32.mrb[0].mxu0
    %v673 = vadd.f32 %v506, %v672
    %v674 = vpop.f32.mrb[0].mxu0
    %675 = vmatprep.mubr.f32.mxu0 0.0
    %676 = vmatmul.mubr.f32.gmra.mrb[0].mxu0 %v542
    %v677 = vpop.f32.mrb[0].mxu0
    %v678 = vadd.f32 %v506, %v677
    %v679 = vpop.f32.mrb[0].mxu0
    %680 = vmatprep.mubr.f32.mxu0 0.0
    %681 = vmatmul.mubr.f32.gmra.mrb[0].mxu0 %v545
    %v682 = vpop.f32.mrb[0].mxu0
    %v683 = vadd.f32 %v506, %v682
    %v684 = vpop.f32.mrb[0].mxu0
    %685 = vmatprep.mubr.f32.mxu0 0.0
    %686 = vmatmul.mubr.f32.gmra.mrb[0].mxu0 %v548
    %v687 = vpop.f32.mrb[0].mxu0
    %v688 = vadd.f32 %v506, %v687
    %v689 = vpop.f32.mrb[0].mxu0
    %690 = vmatprep.mubr.f32.mxu0 0.0
    %691 = vmatmul.mubr.f32.gmra.mrb[0].mxu0 %v551
    %v692 = vpop.f32.mrb[0].mxu0
    %v693 = vadd.f32 %v506, %v692
    %v694 = vpop.f32.mrb[0].mxu0
    %695 = vmatprep.mubr.f32.mxu0 0.0
    %696 = vmatmul.mubr.f32.gmra.mrb[0].mxu0 %v554
    %v697 = vpop.f32.mrb[0].mxu0
    %v698 = vadd.f32 %v506, %v697
    %v699 = vpop.f32.mrb[0].mxu0
    %700 = vdwg.mxu0
    %v701 = vmul.f32 %v182, 0.35355338
    %v702 = vmul.f32 %v187, 0.35355338
    %v703 = vmul.f32 %v192, 0.35355338
    %v704 = vmul.f32 %v197, 0.35355338
    %v705 = vmul.f32 %v202, 0.35355338
    %v706 = vmul.f32 %v207, 0.35355338
    %v707 = vmul.f32 %v212, 0.35355338
    %v708 = vmul.f32 %v217, 0.35355338
    %v709 = vmul.f32 %v222, 0.35355338
    %v710 = vmul.f32 %v227, 0.35355338
    %v711 = vmul.f32 %v232, 0.35355338
    %v712 = vmul.f32 %v237, 0.35355338
    %v713 = vmul.f32 %v242, 0.35355338
    %v714 = vmul.f32 %v247, 0.35355338
    %v715 = vmul.f32 %v252, 0.35355338
    %v716 = vmul.f32 %v257, 0.35355338
    %717 = vxpose.xlu0.b32.start [1/16] %v701, 128
    %718 = vxpose.xlu0.b32.cont [2/16] 0.0, 128
    %719 = vxpose.xlu0.b32.cont [3/16] 0.0, 128
    %720 = vxpose.xlu0.b32.cont [4/16] 0.0, 128
    %721 = vxpose.xlu0.b32.cont [5/16] 0.0, 128
    %722 = vxpose.xlu0.b32.cont [6/16] 0.0, 128
    %723 = vxpose.xlu0.b32.cont [7/16] 0.0, 128
    %724 = vxpose.xlu0.b32.cont [8/16] 0.0, 128
    %725 = vxpose.xlu0.b32.cont [9/16] 0.0, 128
    %726 = vxpose.xlu0.b32.cont [10/16] 0.0, 128
    %727 = vxpose.xlu0.b32.cont [11/16] 0.0, 128
    %728 = vxpose.xlu0.b32.cont [12/16] 0.0, 128
    %729 = vxpose.xlu0.b32.cont [13/16] 0.0, 128
    %730 = vxpose.xlu0.b32.cont [14/16] 0.0, 128
    %731 = vxpose.xlu0.b32.cont [15/16] 0.0, 128
    %732 = vxpose.xlu0.b32.end [16/16] 0.0, 128
    %v733 = vpop.trf.xlu0
    %v734 = vpop.trf.xlu0
    %v735 = vpop.trf.xlu0
    %v736 = vpop.trf.xlu0
    %v737 = vpop.trf.xlu0
    %v738 = vpop.trf.xlu0
    %v739 = vpop.trf.xlu0
    %v740 = vpop.trf.xlu0
    %v741 = vpop.trf.xlu0
    %v742 = vpop.trf.xlu0
    %v743 = vpop.trf.xlu0
    %v744 = vpop.trf.xlu0
    %v745 = vpop.trf.xlu0
    %v746 = vpop.trf.xlu0
    %v747 = vpop.trf.xlu0
    %v748 = vpop.trf.xlu0
    %vm749 = vcmask 64512
    %v751 = vsel %vm749, %v733, 0
    %v754 = vsel %vm749, %v734, 0
    %v757 = vsel %vm749, %v735, 0
    %v760 = vsel %vm749, %v736, 0
    %762 = vmatprep.subr.mxu0 0.0
    %763 = vmatpush1.msra.mxu0 %v403
    %764 = vmatprep.subr.mxu0 0.0
    %765 = vmatpush1.msra.mxu0 0.0
    %766 = vmatprep.subr.mxu0 0.0
    %767 = vmatpush1.msra.mxu0 0.0
    %768 = vmatprep.subr.mxu0 0.0
    %769 = vmatpush1.msra.mxu0 0.0
    %770 = vmatprep.subr.mxu0 0.0
    %771 = vmatpush1.msra.mxu0 0.0
    %772 = vmatprep.subr.mxu0 0.0
    %773 = vmatpush1.msra.mxu0 0.0
    %774 = vmatprep.subr.mxu0 0.0
    %775 = vmatpush1.msra.mxu0 0.0
    %776 = vmatprep.subr.mxu0 0.0
    %777 = vmatpush1.msra.mxu0 0.0
    %778 = vmatprep.subr.mxu0 0.0
    %779 = vmatpush1.msra.mxu0 0.0
    %780 = vmatprep.subr.mxu0 0.0
    %781 = vmatpush1.msra.mxu0 0.0
    %782 = vmatprep.subr.mxu0 0.0
    %783 = vmatpush1.msra.mxu0 0.0
    %784 = vmatprep.subr.mxu0 0.0
    %785 = vmatpush1.msra.mxu0 0.0
    %786 = vmatprep.subr.mxu0 0.0
    %787 = vmatpush1.msra.mxu0 0.0
    %788 = vmatprep.subr.mxu0 0.0
    %789 = vmatpush1.msra.mxu0 0.0
    %790 = vmatprep.subr.mxu0 0.0
    %791 = vmatpush1.msra.mxu0 0.0
    %792 = vmatprep.subr.mxu0 0.0
    %793 = vmatpush1.msra.mxu0 0.0
    %794 = vmatprep.subr.mxu0 0.0
    %795 = vmatpush1.msra.mxu0 0.0
    %796 = vmatprep.subr.mxu0 0.0
    %797 = vmatpush1.msra.mxu0 0.0
    %798 = vmatprep.subr.mxu0 0.0
    %799 = vmatpush1.msra.mxu0 0.0
    %800 = vmatprep.subr.mxu0 0.0
    %801 = vmatpush1.msra.mxu0 0.0
    %802 = vmatprep.subr.mxu0 0.0
    %803 = vmatpush1.msra.mxu0 0.0
    %804 = vmatprep.subr.mxu0 0.0
    %805 = vmatpush1.msra.mxu0 0.0
    %806 = vmatprep.subr.mxu0 0.0
    %807 = vmatpush1.msra.mxu0 0.0
    %808 = vmatprep.subr.mxu0 0.0
    %809 = vmatpush1.msra.mxu0 0.0
    %810 = vmatprep.subr.mxu0 0.0
    %811 = vmatpush1.msra.mxu0 0.0
    %812 = vmatprep.subr.mxu0 0.0
    %813 = vmatpush1.msra.mxu0 0.0
    %814 = vmatprep.subr.mxu0 0.0
    %815 = vmatpush1.msra.mxu0 0.0
    %816 = vmatprep.subr.mxu0 0.0
    %817 = vmatpush1.msra.mxu0 0.0
    %818 = vmatprep.subr.mxu0 0.0
    %819 = vmatpush1.msra.mxu0 0.0
    %820 = vmatprep.subr.mxu0 0.0
    %821 = vmatpush1.msra.mxu0 0.0
    %822 = vmatprep.subr.mxu0 0.0
    %823 = vmatpush1.msra.mxu0 0.0
    %824 = vmatprep.subr.mxu0 0.0
    %825 = vmatpush1.msra.mxu0 0.0
    %826 = vmatprep.mubr.f32.mxu0 0.0
    %827 = vmatmul.mubr.f32.gmra.mrb[0].mxu0 %v751
    %v828 = vpop.f32.mrb[0].mxu0
    %v829 = vadd.f32 0.0, %v828
    %v830 = vpop.f32.mrb[0].mxu0
    %831 = vmatprep.mubr.f32.mxu0 0.0
    %832 = vmatmul.mubr.f32.gmra.mrb[0].mxu0 %v754
    %v833 = vpop.f32.mrb[0].mxu0
    %v834 = vadd.f32 0.0, %v833
    %v835 = vpop.f32.mrb[0].mxu0
    %836 = vmatprep.mubr.f32.mxu0 0.0
    %837 = vmatmul.mubr.f32.gmra.mrb[0].mxu0 %v757
    %v838 = vpop.f32.mrb[0].mxu0
    %v839 = vadd.f32 0.0, %v838
    %v840 = vpop.f32.mrb[0].mxu0
    %841 = vmatprep.mubr.f32.mxu0 0.0
    %842 = vmatmul.mubr.f32.gmra.mrb[0].mxu0 %v760
    %v843 = vpop.f32.mrb[0].mxu0
    %v844 = vadd.f32 0.0, %v843
    %v845 = vpop.f32.mrb[0].mxu0
    %846 = vdwg.mxu0
    %847 = vxpose.xlu0.b32.start [1/16] %v702, 128
    %848 = vxpose.xlu0.b32.cont [2/16] 0.0, 128
    %849 = vxpose.xlu0.b32.cont [3/16] 0.0, 128
    %850 = vxpose.xlu0.b32.cont [4/16] 0.0, 128
    %851 = vxpose.xlu0.b32.cont [5/16] 0.0, 128
    %852 = vxpose.xlu0.b32.cont [6/16] 0.0, 128
    %853 = vxpose.xlu0.b32.cont [7/16] 0.0, 128
    %854 = vxpose.xlu0.b32.cont [8/16] 0.0, 128
    %855 = vxpose.xlu0.b32.cont [9/16] 0.0, 128
    %856 = vxpose.xlu0.b32.cont [10/16] 0.0, 128
    %857 = vxpose.xlu0.b32.cont [11/16] 0.0, 128
    %858 = vxpose.xlu0.b32.cont [12/16] 0.0, 128
    %859 = vxpose.xlu0.b32.cont [13/16] 0.0, 128
    %860 = vxpose.xlu0.b32.cont [14/16] 0.0, 128
    %861 = vxpose.xlu0.b32.cont [15/16] 0.0, 128
    %862 = vxpose.xlu0.b32.end [16/16] 0.0, 128
    %v863 = vpop.trf.xlu0
    %v864 = vpop.trf.xlu0
    %v865 = vpop.trf.xlu0
    %v866 = vpop.trf.xlu0
    %v867 = vpop.trf.xlu0
    %v868 = vpop.trf.xlu0
    %v869 = vpop.trf.xlu0
    %v870 = vpop.trf.xlu0
    %v871 = vpop.trf.xlu0
    %v872 = vpop.trf.xlu0
    %v873 = vpop.trf.xlu0
    %v874 = vpop.trf.xlu0
    %v875 = vpop.trf.xlu0
    %v876 = vpop.trf.xlu0
    %v877 = vpop.trf.xlu0
    %v878 = vpop.trf.xlu0
    %v880 = vsel %vm749, %v863, 0
    %v883 = vsel %vm749, %v864, 0
    %v886 = vsel %vm749, %v865, 0
    %v889 = vsel %vm749, %v866, 0
    %891 = vmatprep.subr.mxu0 0.0
    %892 = vmatpush1.msra.mxu0 %v408
    %893 = vmatprep.subr.mxu0 0.0
    %894 = vmatpush1.msra.mxu0 0.0
    %895 = vmatprep.subr.mxu0 0.0
    %896 = vmatpush1.msra.mxu0 0.0
    %897 = vmatprep.subr.mxu0 0.0
    %898 = vmatpush1.msra.mxu0 0.0
    %899 = vmatprep.subr.mxu0 0.0
    %900 = vmatpush1.msra.mxu0 0.0
    %901 = vmatprep.subr.mxu0 0.0
    %902 = vmatpush1.msra.mxu0 0.0
    %903 = vmatprep.subr.mxu0 0.0
    %904 = vmatpush1.msra.mxu0 0.0
    %905 = vmatprep.subr.mxu0 0.0
    %906 = vmatpush1.msra.mxu0 0.0
    %907 = vmatprep.subr.mxu0 0.0
    %908 = vmatpush1.msra.mxu0 0.0
    %909 = vmatprep.subr.mxu0 0.0
    %910 = vmatpush1.msra.mxu0 0.0
    %911 = vmatprep.subr.mxu0 0.0
    %912 = vmatpush1.msra.mxu0 0.0
    %913 = vmatprep.subr.mxu0 0.0
    %914 = vmatpush1.msra.mxu0 0.0
    %915 = vmatprep.subr.mxu0 0.0
    %916 = vmatpush1.msra.mxu0 0.0
    %917 = vmatprep.subr.mxu0 0.0
    %918 = vmatpush1.msra.mxu0 0.0
    %919 = vmatprep.subr.mxu0 0.0
    %920 = vmatpush1.msra.mxu0 0.0
    %921 = vmatprep.subr.mxu0 0.0
    %922 = vmatpush1.msra.mxu0 0.0
    %923 = vmatprep.subr.mxu0 0.0
    %924 = vmatpush1.msra.mxu0 0.0
    %925 = vmatprep.subr.mxu0 0.0
    %926 = vmatpush1.msra.mxu0 0.0
    %927 = vmatprep.subr.mxu0 0.0
    %928 = vmatpush1.msra.mxu0 0.0
    %929 = vmatprep.subr.mxu0 0.0
    %930 = vmatpush1.msra.mxu0 0.0
    %931 = vmatprep.subr.mxu0 0.0
    %932 = vmatpush1.msra.mxu0 0.0
    %933 = vmatprep.subr.mxu0 0.0
    %934 = vmatpush1.msra.mxu0 0.0
    %935 = vmatprep.subr.mxu0 0.0
    %936 = vmatpush1.msra.mxu0 0.0
    %937 = vmatprep.subr.mxu0 0.0
    %938 = vmatpush1.msra.mxu0 0.0
    %939 = vmatprep.subr.mxu0 0.0
    %940 = vmatpush1.msra.mxu0 0.0
    %941 = vmatprep.subr.mxu0 0.0
    %942 = vmatpush1.msra.mxu0 0.0
    %943 = vmatprep.subr.mxu0 0.0
    %944 = vmatpush1.msra.mxu0 0.0
    %945 = vmatprep.subr.mxu0 0.0
    %946 = vmatpush1.msra.mxu0 0.0
    %947 = vmatprep.subr.mxu0 0.0
    %948 = vmatpush1.msra.mxu0 0.0
    %949 = vmatprep.subr.mxu0 0.0
    %950 = vmatpush1.msra.mxu0 0.0
    %951 = vmatprep.subr.mxu0 0.0
    %952 = vmatpush1.msra.mxu0 0.0
    %953 = vmatprep.subr.mxu0 0.0
    %954 = vmatpush1.msra.mxu0 0.0
    %955 = vmatprep.mubr.f32.mxu0 0.0
    %956 = vmatmul.mubr.f32.gmra.mrb[0].mxu0 %v880
    %v957 = vpop.f32.mrb[0].mxu0
    %v958 = vadd.f32 0.0, %v957
    %v959 = vpop.f32.mrb[0].mxu0
    %960 = vmatprep.mubr.f32.mxu0 0.0
    %961 = vmatmul.mubr.f32.gmra.mrb[0].mxu0 %v883
    %v962 = vpop.f32.mrb[0].mxu0
    %v963 = vadd.f32 0.0, %v962
    %v964 = vpop.f32.mrb[0].mxu0
    %965 = vmatprep.mubr.f32.mxu0 0.0
    %966 = vmatmul.mubr.f32.gmra.mrb[0].mxu0 %v886
    %v967 = vpop.f32.mrb[0].mxu0
    %v968 = vadd.f32 0.0, %v967
    %v969 = vpop.f32.mrb[0].mxu0
    %970 = vmatprep.mubr.f32.mxu0 0.0
    %971 = vmatmul.mubr.f32.gmra.mrb[0].mxu0 %v889
    %v972 = vpop.f32.mrb[0].mxu0
    %v973 = vadd.f32 0.0, %v972
    %v974 = vpop.f32.mrb[0].mxu0
    %975 = vdwg.mxu0
    %976 = vxpose.xlu0.b32.start [1/16] %v703, 128
    %977 = vxpose.xlu0.b32.cont [2/16] 0.0, 128
    %978 = vxpose.xlu0.b32.cont [3/16] 0.0, 128
    %979 = vxpose.xlu0.b32.cont [4/16] 0.0, 128
    %980 = vxpose.xlu0.b32.cont [5/16] 0.0, 128
    %981 = vxpose.xlu0.b32.cont [6/16] 0.0, 128
    %982 = vxpose.xlu0.b32.cont [7/16] 0.0, 128
    %983 = vxpose.xlu0.b32.cont [8/16] 0.0, 128
    %984 = vxpose.xlu0.b32.cont [9/16] 0.0, 128
    %985 = vxpose.xlu0.b32.cont [10/16] 0.0, 128
    %986 = vxpose.xlu0.b32.cont [11/16] 0.0, 128
    %987 = vxpose.xlu0.b32.cont [12/16] 0.0, 128
    %988 = vxpose.xlu0.b32.cont [13/16] 0.0, 128
    %989 = vxpose.xlu0.b32.cont [14/16] 0.0, 128
    %990 = vxpose.xlu0.b32.cont [15/16] 0.0, 128
    %991 = vxpose.xlu0.b32.end [16/16] 0.0, 128
    %v992 = vpop.trf.xlu0
    %v993 = vpop.trf.xlu0
    %v994 = vpop.trf.xlu0
    %v995 = vpop.trf.xlu0
    %v996 = vpop.trf.xlu0
    %v997 = vpop.trf.xlu0
    %v998 = vpop.trf.xlu0
    %v999 = vpop.trf.xlu0
    %v1000 = vpop.trf.xlu0
    %v1001 = vpop.trf.xlu0
    %v1002 = vpop.trf.xlu0
    %v1003 = vpop.trf.xlu0
    %v1004 = vpop.trf.xlu0
    %v1005 = vpop.trf.xlu0
    %v1006 = vpop.trf.xlu0
    %v1007 = vpop.trf.xlu0
    %v1009 = vsel %vm749, %v992, 0
    %v1012 = vsel %vm749, %v993, 0
    %v1015 = vsel %vm749, %v994, 0
    %v1018 = vsel %vm749, %v995, 0
    %1020 = vmatprep.subr.mxu0 0.0
    %1021 = vmatpush1.msra.mxu0 %v413
    %1022 = vmatprep.subr.mxu0 0.0
    %1023 = vmatpush1.msra.mxu0 0.0
    %1024 = vmatprep.subr.mxu0 0.0
    %1025 = vmatpush1.msra.mxu0 0.0
    %1026 = vmatprep.subr.mxu0 0.0
    %1027 = vmatpush1.msra.mxu0 0.0
    %1028 = vmatprep.subr.mxu0 0.0
    %1029 = vmatpush1.msra.mxu0 0.0
    %1030 = vmatprep.subr.mxu0 0.0
    %1031 = vmatpush1.msra.mxu0 0.0
    %1032 = vmatprep.subr.mxu0 0.0
    %1033 = vmatpush1.msra.mxu0 0.0
    %1034 = vmatprep.subr.mxu0 0.0
    %1035 = vmatpush1.msra.mxu0 0.0
    %1036 = vmatprep.subr.mxu0 0.0
    %1037 = vmatpush1.msra.mxu0 0.0
    %1038 = vmatprep.subr.mxu0 0.0
    %1039 = vmatpush1.msra.mxu0 0.0
    %1040 = vmatprep.subr.mxu0 0.0
    %1041 = vmatpush1.msra.mxu0 0.0
    %1042 = vmatprep.subr.mxu0 0.0
    %1043 = vmatpush1.msra.mxu0 0.0
    %1044 = vmatprep.subr.mxu0 0.0
    %1045 = vmatpush1.msra.mxu0 0.0
    %1046 = vmatprep.subr.mxu0 0.0
    %1047 = vmatpush1.msra.mxu0 0.0
    %1048 = vmatprep.subr.mxu0 0.0
    %1049 = vmatpush1.msra.mxu0 0.0
    %1050 = vmatprep.subr.mxu0 0.0
    %1051 = vmatpush1.msra.mxu0 0.0
    %1052 = vmatprep.subr.mxu0 0.0
    %1053 = vmatpush1.msra.mxu0 0.0
    %1054 = vmatprep.subr.mxu0 0.0
    %1055 = vmatpush1.msra.mxu0 0.0
    %1056 = vmatprep.subr.mxu0 0.0
    %1057 = vmatpush1.msra.mxu0 0.0
    %1058 = vmatprep.subr.mxu0 0.0
    %1059 = vmatpush1.msra.mxu0 0.0
    %1060 = vmatprep.subr.mxu0 0.0
    %1061 = vmatpush1.msra.mxu0 0.0
    %1062 = vmatprep.subr.mxu0 0.0
    %1063 = vmatpush1.msra.mxu0 0.0
    %1064 = vmatprep.subr.mxu0 0.0
    %1065 = vmatpush1.msra.mxu0 0.0
    %1066 = vmatprep.subr.mxu0 0.0
    %1067 = vmatpush1.msra.mxu0 0.0
    %1068 = vmatprep.subr.mxu0 0.0
    %1069 = vmatpush1.msra.mxu0 0.0
    %1070 = vmatprep.subr.mxu0 0.0
    %1071 = vmatpush1.msra.mxu0 0.0
    %1072 = vmatprep.subr.mxu0 0.0
    %1073 = vmatpush1.msra.mxu0 0.0
    %1074 = vmatprep.subr.mxu0 0.0
    %1075 = vmatpush1.msra.mxu0 0.0
    %1076 = vmatprep.subr.mxu0 0.0
    %1077 = vmatpush1.msra.mxu0 0.0
    %1078 = vmatprep.subr.mxu0 0.0
    %1079 = vmatpush1.msra.mxu0 0.0
    %1080 = vmatprep.subr.mxu0 0.0
    %1081 = vmatpush1.msra.mxu0 0.0
    %1082 = vmatprep.subr.mxu0 0.0
    %1083 = vmatpush1.msra.mxu0 0.0
    %1084 = vmatprep.mubr.f32.mxu0 0.0
    %1085 = vmatmul.mubr.f32.gmra.mrb[0].mxu0 %v1009
    %v1086 = vpop.f32.mrb[0].mxu0
    %v1087 = vadd.f32 0.0, %v1086
    %v1088 = vpop.f32.mrb[0].mxu0
    %1089 = vmatprep.mubr.f32.mxu0 0.0
    %1090 = vmatmul.mubr.f32.gmra.mrb[0].mxu0 %v1012
    %v1091 = vpop.f32.mrb[0].mxu0
    %v1092 = vadd.f32 0.0, %v1091
    %v1093 = vpop.f32.mrb[0].mxu0
    %1094 = vmatprep.mubr.f32.mxu0 0.0
    %1095 = vmatmul.mubr.f32.gmra.mrb[0].mxu0 %v1015
    %v1096 = vpop.f32.mrb[0].mxu0
    %v1097 = vadd.f32 0.0, %v1096
    %v1098 = vpop.f32.mrb[0].mxu0
    %1099 = vmatprep.mubr.f32.mxu0 0.0
    %1100 = vmatmul.mubr.f32.gmra.mrb[0].mxu0 %v1018
    %v1101 = vpop.f32.mrb[0].mxu0
    %v1102 = vadd.f32 0.0, %v1101
    %v1103 = vpop.f32.mrb[0].mxu0
    %1104 = vdwg.mxu0
    %1105 = vxpose.xlu0.b32.start [1/16] %v704, 128
    %1106 = vxpose.xlu0.b32.cont [2/16] 0.0, 128
    %1107 = vxpose.xlu0.b32.cont [3/16] 0.0, 128
    %1108 = vxpose.xlu0.b32.cont [4/16] 0.0, 128
    %1109 = vxpose.xlu0.b32.cont [5/16] 0.0, 128
    %1110 = vxpose.xlu0.b32.cont [6/16] 0.0, 128
    %1111 = vxpose.xlu0.b32.cont [7/16] 0.0, 128
    %1112 = vxpose.xlu0.b32.cont [8/16] 0.0, 128
    %1113 = vxpose.xlu0.b32.cont [9/16] 0.0, 128
    %1114 = vxpose.xlu0.b32.cont [10/16] 0.0, 128
    %1115 = vxpose.xlu0.b32.cont [11/16] 0.0, 128
    %1116 = vxpose.xlu0.b32.cont [12/16] 0.0, 128
    %1117 = vxpose.xlu0.b32.cont [13/16] 0.0, 128
    %1118 = vxpose.xlu0.b32.cont [14/16] 0.0, 128
    %1119 = vxpose.xlu0.b32.cont [15/16] 0.0, 128
    %1120 = vxpose.xlu0.b32.end [16/16] 0.0, 128
    %v1121 = vpop.trf.xlu0
    %v1122 = vpop.trf.xlu0
    %v1123 = vpop.trf.xlu0
    %v1124 = vpop.trf.xlu0
    %v1125 = vpop.trf.xlu0
    %v1126 = vpop.trf.xlu0
    %v1127 = vpop.trf.xlu0
    %v1128 = vpop.trf.xlu0
    %v1129 = vpop.trf.xlu0
    %v1130 = vpop.trf.xlu0
    %v1131 = vpop.trf.xlu0
    %v1132 = vpop.trf.xlu0
    %v1133 = vpop.trf.xlu0
    %v1134 = vpop.trf.xlu0
    %v1135 = vpop.trf.xlu0
    %v1136 = vpop.trf.xlu0
    %v1138 = vsel %vm749, %v1121, 0
    %v1141 = vsel %vm749, %v1122, 0
    %v1144 = vsel %vm749, %v1123, 0
    %v1147 = vsel %vm749, %v1124, 0
    %1149 = vmatprep.subr.mxu0 0.0
    %1150 = vmatpush1.msra.mxu0 %v418
    %1151 = vmatprep.subr.mxu0 0.0
    %1152 = vmatpush1.msra.mxu0 0.0
    %1153 = vmatprep.subr.mxu0 0.0
    %1154 = vmatpush1.msra.mxu0 0.0
    %1155 = vmatprep.subr.mxu0 0.0
    %1156 = vmatpush1.msra.mxu0 0.0
    %1157 = vmatprep.subr.mxu0 0.0
    %1158 = vmatpush1.msra.mxu0 0.0
    %1159 = vmatprep.subr.mxu0 0.0
    %1160 = vmatpush1.msra.mxu0 0.0
    %1161 = vmatprep.subr.mxu0 0.0
    %1162 = vmatpush1.msra.mxu0 0.0
    %1163 = vmatprep.subr.mxu0 0.0
    %1164 = vmatpush1.msra.mxu0 0.0
    %1165 = vmatprep.subr.mxu0 0.0
    %1166 = vmatpush1.msra.mxu0 0.0
    %1167 = vmatprep.subr.mxu0 0.0
    %1168 = vmatpush1.msra.mxu0 0.0
    %1169 = vmatprep.subr.mxu0 0.0
    %1170 = vmatpush1.msra.mxu0 0.0
    %1171 = vmatprep.subr.mxu0 0.0
    %1172 = vmatpush1.msra.mxu0 0.0
    %1173 = vmatprep.subr.mxu0 0.0
    %1174 = vmatpush1.msra.mxu0 0.0
    %1175 = vmatprep.subr.mxu0 0.0
    %1176 = vmatpush1.msra.mxu0 0.0
    %1177 = vmatprep.subr.mxu0 0.0
    %1178 = vmatpush1.msra.mxu0 0.0
    %1179 = vmatprep.subr.mxu0 0.0
    %1180 = vmatpush1.msra.mxu0 0.0
    %1181 = vmatprep.subr.mxu0 0.0
    %1182 = vmatpush1.msra.mxu0 0.0
    %1183 = vmatprep.subr.mxu0 0.0
    %1184 = vmatpush1.msra.mxu0 0.0
    %1185 = vmatprep.subr.mxu0 0.0
    %1186 = vmatpush1.msra.mxu0 0.0
    %1187 = vmatprep.subr.mxu0 0.0
    %1188 = vmatpush1.msra.mxu0 0.0
    %1189 = vmatprep.subr.mxu0 0.0
    %1190 = vmatpush1.msra.mxu0 0.0
    %1191 = vmatprep.subr.mxu0 0.0
    %1192 = vmatpush1.msra.mxu0 0.0
    %1193 = vmatprep.subr.mxu0 0.0
    %1194 = vmatpush1.msra.mxu0 0.0
    %1195 = vmatprep.subr.mxu0 0.0
    %1196 = vmatpush1.msra.mxu0 0.0
    %1197 = vmatprep.subr.mxu0 0.0
    %1198 = vmatpush1.msra.mxu0 0.0
    %1199 = vmatprep.subr.mxu0 0.0
    %1200 = vmatpush1.msra.mxu0 0.0
    %1201 = vmatprep.subr.mxu0 0.0
    %1202 = vmatpush1.msra.mxu0 0.0
    %1203 = vmatprep.subr.mxu0 0.0
    %1204 = vmatpush1.msra.mxu0 0.0
    %1205 = vmatprep.subr.mxu0 0.0
    %1206 = vmatpush1.msra.mxu0 0.0
    %1207 = vmatprep.subr.mxu0 0.0
    %1208 = vmatpush1.msra.mxu0 0.0
    %1209 = vmatprep.subr.mxu0 0.0
    %1210 = vmatpush1.msra.mxu0 0.0
    %1211 = vmatprep.subr.mxu0 0.0
    %1212 = vmatpush1.msra.mxu0 0.0
    %1213 = vmatprep.mubr.f32.mxu0 0.0
    %1214 = vmatmul.mubr.f32.gmra.mrb[0].mxu0 %v1138
    %v1215 = vpop.f32.mrb[0].mxu0
    %v1216 = vadd.f32 0.0, %v1215
    %v1217 = vpop.f32.mrb[0].mxu0
    %1218 = vmatprep.mubr.f32.mxu0 0.0
    %1219 = vmatmul.mubr.f32.gmra.mrb[0].mxu0 %v1141
    %v1220 = vpop.f32.mrb[0].mxu0
    %v1221 = vadd.f32 0.0, %v1220
    %v1222 = vpop.f32.mrb[0].mxu0
    %1223 = vmatprep.mubr.f32.mxu0 0.0
    %1224 = vmatmul.mubr.f32.gmra.mrb[0].mxu0 %v1144
    %v1225 = vpop.f32.mrb[0].mxu0
    %v1226 = vadd.f32 0.0, %v1225
    %v1227 = vpop.f32.mrb[0].mxu0
    %1228 = vmatprep.mubr.f32.mxu0 0.0
    %1229 = vmatmul.mubr.f32.gmra.mrb[0].mxu0 %v1147
    %v1230 = vpop.f32.mrb[0].mxu0
    %v1231 = vadd.f32 0.0, %v1230
    %v1232 = vpop.f32.mrb[0].mxu0
    %1233 = vdwg.mxu0
    %1234 = vxpose.xlu0.b32.start [1/16] %v705, 128
    %1235 = vxpose.xlu0.b32.cont [2/16] 0.0, 128
    %1236 = vxpose.xlu0.b32.cont [3/16] 0.0, 128
    %1237 = vxpose.xlu0.b32.cont [4/16] 0.0, 128
    %1238 = vxpose.xlu0.b32.cont [5/16] 0.0, 128
    %1239 = vxpose.xlu0.b32.cont [6/16] 0.0, 128
    %1240 = vxpose.xlu0.b32.cont [7/16] 0.0, 128
    %1241 = vxpose.xlu0.b32.cont [8/16] 0.0, 128
    %1242 = vxpose.xlu0.b32.cont [9/16] 0.0, 128
    %1243 = vxpose.xlu0.b32.cont [10/16] 0.0, 128
    %1244 = vxpose.xlu0.b32.cont [11/16] 0.0, 128
    %1245 = vxpose.xlu0.b32.cont [12/16] 0.0, 128
    %1246 = vxpose.xlu0.b32.cont [13/16] 0.0, 128
    %1247 = vxpose.xlu0.b32.cont [14/16] 0.0, 128
    %1248 = vxpose.xlu0.b32.cont [15/16] 0.0, 128
    %1249 = vxpose.xlu0.b32.end [16/16] 0.0, 128
    %v1250 = vpop.trf.xlu0
    %v1251 = vpop.trf.xlu0
    %v1252 = vpop.trf.xlu0
    %v1253 = vpop.trf.xlu0
    %v1254 = vpop.trf.xlu0
    %v1255 = vpop.trf.xlu0
    %v1256 = vpop.trf.xlu0
    %v1257 = vpop.trf.xlu0
    %v1258 = vpop.trf.xlu0
    %v1259 = vpop.trf.xlu0
    %v1260 = vpop.trf.xlu0
    %v1261 = vpop.trf.xlu0
    %v1262 = vpop.trf.xlu0
    %v1263 = vpop.trf.xlu0
    %v1264 = vpop.trf.xlu0
    %v1265 = vpop.trf.xlu0
    %v1267 = vsel %vm749, %v1250, 0
    %v1270 = vsel %vm749, %v1251, 0
    %v1273 = vsel %vm749, %v1252, 0
    %v1276 = vsel %vm749, %v1253, 0
    %1278 = vmatprep.subr.mxu0 0.0
    %1279 = vmatpush1.msra.mxu0 %v423
    %1280 = vmatprep.subr.mxu0 0.0
    %1281 = vmatpush1.msra.mxu0 0.0
    %1282 = vmatprep.subr.mxu0 0.0
    %1283 = vmatpush1.msra.mxu0 0.0
    %1284 = vmatprep.subr.mxu0 0.0
    %1285 = vmatpush1.msra.mxu0 0.0
    %1286 = vmatprep.subr.mxu0 0.0
    %1287 = vmatpush1.msra.mxu0 0.0
    %1288 = vmatprep.subr.mxu0 0.0
    %1289 = vmatpush1.msra.mxu0 0.0
    %1290 = vmatprep.subr.mxu0 0.0
    %1291 = vmatpush1.msra.mxu0 0.0
    %1292 = vmatprep.subr.mxu0 0.0
    %1293 = vmatpush1.msra.mxu0 0.0
    %1294 = vmatprep.subr.mxu0 0.0
    %1295 = vmatpush1.msra.mxu0 0.0
    %1296 = vmatprep.subr.mxu0 0.0
    %1297 = vmatpush1.msra.mxu0 0.0
    %1298 = vmatprep.subr.mxu0 0.0
    %1299 = vmatpush1.msra.mxu0 0.0
    %1300 = vmatprep.subr.mxu0 0.0
    %1301 = vmatpush1.msra.mxu0 0.0
    %1302 = vmatprep.subr.mxu0 0.0
    %1303 = vmatpush1.msra.mxu0 0.0
    %1304 = vmatprep.subr.mxu0 0.0
    %1305 = vmatpush1.msra.mxu0 0.0
    %1306 = vmatprep.subr.mxu0 0.0
    %1307 = vmatpush1.msra.mxu0 0.0
    %1308 = vmatprep.subr.mxu0 0.0
    %1309 = vmatpush1.msra.mxu0 0.0
    %1310 = vmatprep.subr.mxu0 0.0
    %1311 = vmatpush1.msra.mxu0 0.0
    %1312 = vmatprep.subr.mxu0 0.0
    %1313 = vmatpush1.msra.mxu0 0.0
    %1314 = vmatprep.subr.mxu0 0.0
    %1315 = vmatpush1.msra.mxu0 0.0
    %1316 = vmatprep.subr.mxu0 0.0
    %1317 = vmatpush1.msra.mxu0 0.0
    %1318 = vmatprep.subr.mxu0 0.0
    %1319 = vmatpush1.msra.mxu0 0.0
    %1320 = vmatprep.subr.mxu0 0.0
    %1321 = vmatpush1.msra.mxu0 0.0
    %1322 = vmatprep.subr.mxu0 0.0
    %1323 = vmatpush1.msra.mxu0 0.0
    %1324 = vmatprep.subr.mxu0 0.0
    %1325 = vmatpush1.msra.mxu0 0.0
    %1326 = vmatprep.subr.mxu0 0.0
    %1327 = vmatpush1.msra.mxu0 0.0
    %1328 = vmatprep.subr.mxu0 0.0
    %1329 = vmatpush1.msra.mxu0 0.0
    %1330 = vmatprep.subr.mxu0 0.0
    %1331 = vmatpush1.msra.mxu0 0.0
    %1332 = vmatprep.subr.mxu0 0.0
    %1333 = vmatpush1.msra.mxu0 0.0
    %1334 = vmatprep.subr.mxu0 0.0
    %1335 = vmatpush1.msra.mxu0 0.0
    %1336 = vmatprep.subr.mxu0 0.0
    %1337 = vmatpush1.msra.mxu0 0.0
    %1338 = vmatprep.subr.mxu0 0.0
    %1339 = vmatpush1.msra.mxu0 0.0
    %1340 = vmatprep.subr.mxu0 0.0
    %1341 = vmatpush1.msra.mxu0 0.0
    %1342 = vmatprep.mubr.f32.mxu0 0.0
    %1343 = vmatmul.mubr.f32.gmra.mrb[0].mxu0 %v1267
    %v1344 = vpop.f32.mrb[0].mxu0
    %v1345 = vadd.f32 0.0, %v1344
    %v1346 = vpop.f32.mrb[0].mxu0
    %1347 = vmatprep.mubr.f32.mxu0 0.0
    %1348 = vmatmul.mubr.f32.gmra.mrb[0].mxu0 %v1270
    %v1349 = vpop.f32.mrb[0].mxu0
    %v1350 = vadd.f32 0.0, %v1349
    %v1351 = vpop.f32.mrb[0].mxu0
    %1352 = vmatprep.mubr.f32.mxu0 0.0
    %1353 = vmatmul.mubr.f32.gmra.mrb[0].mxu0 %v1273
    %v1354 = vpop.f32.mrb[0].mxu0
    %v1355 = vadd.f32 0.0, %v1354
    %v1356 = vpop.f32.mrb[0].mxu0
    %1357 = vmatprep.mubr.f32.mxu0 0.0
    %1358 = vmatmul.mubr.f32.gmra.mrb[0].mxu0 %v1276
    %v1359 = vpop.f32.mrb[0].mxu0
    %v1360 = vadd.f32 0.0, %v1359
    %v1361 = vpop.f32.mrb[0].mxu0
    %1362 = vdwg.mxu0
    %1363 = vxpose.xlu0.b32.start [1/16] %v706, 128
    %1364 = vxpose.xlu0.b32.cont [2/16] 0.0, 128
    %1365 = vxpose.xlu0.b32.cont [3/16] 0.0, 128
    %1366 = vxpose.xlu0.b32.cont [4/16] 0.0, 128
    %1367 = vxpose.xlu0.b32.cont [5/16] 0.0, 128
    %1368 = vxpose.xlu0.b32.cont [6/16] 0.0, 128
    %1369 = vxpose.xlu0.b32.cont [7/16] 0.0, 128
    %1370 = vxpose.xlu0.b32.cont [8/16] 0.0, 128
    %1371 = vxpose.xlu0.b32.cont [9/16] 0.0, 128
    %1372 = vxpose.xlu0.b32.cont [10/16] 0.0, 128
    %1373 = vxpose.xlu0.b32.cont [11/16] 0.0, 128
    %1374 = vxpose.xlu0.b32.cont [12/16] 0.0, 128
    %1375 = vxpose.xlu0.b32.cont [13/16] 0.0, 128
    %1376 = vxpose.xlu0.b32.cont [14/16] 0.0, 128
    %1377 = vxpose.xlu0.b32.cont [15/16] 0.0, 128
    %1378 = vxpose.xlu0.b32.end [16/16] 0.0, 128
    %v1379 = vpop.trf.xlu0
    %v1380 = vpop.trf.xlu0
    %v1381 = vpop.trf.xlu0
    %v1382 = vpop.trf.xlu0
    %v1383 = vpop.trf.xlu0
    %v1384 = vpop.trf.xlu0
    %v1385 = vpop.trf.xlu0
    %v1386 = vpop.trf.xlu0
    %v1387 = vpop.trf.xlu0
    %v1388 = vpop.trf.xlu0
    %v1389 = vpop.trf.xlu0
    %v1390 = vpop.trf.xlu0
    %v1391 = vpop.trf.xlu0
    %v1392 = vpop.trf.xlu0
    %v1393 = vpop.trf.xlu0
    %v1394 = vpop.trf.xlu0
    %v1396 = vsel %vm749, %v1379, 0
    %v1399 = vsel %vm749, %v1380, 0
    %v1402 = vsel %vm749, %v1381, 0
    %v1405 = vsel %vm749, %v1382, 0
    %1407 = vmatprep.subr.mxu0 0.0
    %1408 = vmatpush1.msra.mxu0 %v428
    %1409 = vmatprep.subr.mxu0 0.0
    %1410 = vmatpush1.msra.mxu0 0.0
    %1411 = vmatprep.subr.mxu0 0.0
    %1412 = vmatpush1.msra.mxu0 0.0
    %1413 = vmatprep.subr.mxu0 0.0
    %1414 = vmatpush1.msra.mxu0 0.0
    %1415 = vmatprep.subr.mxu0 0.0
    %1416 = vmatpush1.msra.mxu0 0.0
    %1417 = vmatprep.subr.mxu0 0.0
    %1418 = vmatpush1.msra.mxu0 0.0
    %1419 = vmatprep.subr.mxu0 0.0
    %1420 = vmatpush1.msra.mxu0 0.0
    %1421 = vmatprep.subr.mxu0 0.0
    %1422 = vmatpush1.msra.mxu0 0.0
    %1423 = vmatprep.subr.mxu0 0.0
    %1424 = vmatpush1.msra.mxu0 0.0
    %1425 = vmatprep.subr.mxu0 0.0
    %1426 = vmatpush1.msra.mxu0 0.0
    %1427 = vmatprep.subr.mxu0 0.0
    %1428 = vmatpush1.msra.mxu0 0.0
    %1429 = vmatprep.subr.mxu0 0.0
    %1430 = vmatpush1.msra.mxu0 0.0
    %1431 = vmatprep.subr.mxu0 0.0
    %1432 = vmatpush1.msra.mxu0 0.0
    %1433 = vmatprep.subr.mxu0 0.0
    %1434 = vmatpush1.msra.mxu0 0.0
    %1435 = vmatprep.subr.mxu0 0.0
    %1436 = vmatpush1.msra.mxu0 0.0
    %1437 = vmatprep.subr.mxu0 0.0
    %1438 = vmatpush1.msra.mxu0 0.0
    %1439 = vmatprep.subr.mxu0 0.0
    %1440 = vmatpush1.msra.mxu0 0.0
    %1441 = vmatprep.subr.mxu0 0.0
    %1442 = vmatpush1.msra.mxu0 0.0
    %1443 = vmatprep.subr.mxu0 0.0
    %1444 = vmatpush1.msra.mxu0 0.0
    %1445 = vmatprep.subr.mxu0 0.0
    %1446 = vmatpush1.msra.mxu0 0.0
    %1447 = vmatprep.subr.mxu0 0.0
    %1448 = vmatpush1.msra.mxu0 0.0
    %1449 = vmatprep.subr.mxu0 0.0
    %1450 = vmatpush1.msra.mxu0 0.0
    %1451 = vmatprep.subr.mxu0 0.0
    %1452 = vmatpush1.msra.mxu0 0.0
    %1453 = vmatprep.subr.mxu0 0.0
    %1454 = vmatpush1.msra.mxu0 0.0
    %1455 = vmatprep.subr.mxu0 0.0
    %1456 = vmatpush1.msra.mxu0 0.0
    %1457 = vmatprep.subr.mxu0 0.0
    %1458 = vmatpush1.msra.mxu0 0.0
    %1459 = vmatprep.subr.mxu0 0.0
    %1460 = vmatpush1.msra.mxu0 0.0
    %1461 = vmatprep.subr.mxu0 0.0
    %1462 = vmatpush1.msra.mxu0 0.0
    %1463 = vmatprep.subr.mxu0 0.0
    %1464 = vmatpush1.msra.mxu0 0.0
    %1465 = vmatprep.subr.mxu0 0.0
    %1466 = vmatpush1.msra.mxu0 0.0
    %1467 = vmatprep.subr.mxu0 0.0
    %1468 = vmatpush1.msra.mxu0 0.0
    %1469 = vmatprep.subr.mxu0 0.0
    %1470 = vmatpush1.msra.mxu0 0.0
    %1471 = vmatprep.mubr.f32.mxu0 0.0
    %1472 = vmatmul.mubr.f32.gmra.mrb[0].mxu0 %v1396
    %v1473 = vpop.f32.mrb[0].mxu0
    %v1474 = vadd.f32 0.0, %v1473
    %v1475 = vpop.f32.mrb[0].mxu0
    %1476 = vmatprep.mubr.f32.mxu0 0.0
    %1477 = vmatmul.mubr.f32.gmra.mrb[0].mxu0 %v1399
    %v1478 = vpop.f32.mrb[0].mxu0
    %v1479 = vadd.f32 0.0, %v1478
    %v1480 = vpop.f32.mrb[0].mxu0
    %1481 = vmatprep.mubr.f32.mxu0 0.0
    %1482 = vmatmul.mubr.f32.gmra.mrb[0].mxu0 %v1402
    %v1483 = vpop.f32.mrb[0].mxu0
    %v1484 = vadd.f32 0.0, %v1483
    %v1485 = vpop.f32.mrb[0].mxu0
    %1486 = vmatprep.mubr.f32.mxu0 0.0
    %1487 = vmatmul.mubr.f32.gmra.mrb[0].mxu0 %v1405
    %v1488 = vpop.f32.mrb[0].mxu0
    %v1489 = vadd.f32 0.0, %v1488
    %v1490 = vpop.f32.mrb[0].mxu0
    %1491 = vdwg.mxu0
    %1492 = vxpose.xlu0.b32.start [1/16] %v707, 128
    %1493 = vxpose.xlu0.b32.cont [2/16] 0.0, 128
    %1494 = vxpose.xlu0.b32.cont [3/16] 0.0, 128
    %1495 = vxpose.xlu0.b32.cont [4/16] 0.0, 128
    %1496 = vxpose.xlu0.b32.cont [5/16] 0.0, 128
    %1497 = vxpose.xlu0.b32.cont [6/16] 0.0, 128
    %1498 = vxpose.xlu0.b32.cont [7/16] 0.0, 128
    %1499 = vxpose.xlu0.b32.cont [8/16] 0.0, 128
    %1500 = vxpose.xlu0.b32.cont [9/16] 0.0, 128
    %1501 = vxpose.xlu0.b32.cont [10/16] 0.0, 128
    %1502 = vxpose.xlu0.b32.cont [11/16] 0.0, 128
    %1503 = vxpose.xlu0.b32.cont [12/16] 0.0, 128
    %1504 = vxpose.xlu0.b32.cont [13/16] 0.0, 128
    %1505 = vxpose.xlu0.b32.cont [14/16] 0.0, 128
    %1506 = vxpose.xlu0.b32.cont [15/16] 0.0, 128
    %1507 = vxpose.xlu0.b32.end [16/16] 0.0, 128
    %v1508 = vpop.trf.xlu0
    %v1509 = vpop.trf.xlu0
    %v1510 = vpop.trf.xlu0
    %v1511 = vpop.trf.xlu0
    %v1512 = vpop.trf.xlu0
    %v1513 = vpop.trf.xlu0
    %v1514 = vpop.trf.xlu0
    %v1515 = vpop.trf.xlu0
    %v1516 = vpop.trf.xlu0
    %v1517 = vpop.trf.xlu0
    %v1518 = vpop.trf.xlu0
    %v1519 = vpop.trf.xlu0
    %v1520 = vpop.trf.xlu0
    %v1521 = vpop.trf.xlu0
    %v1522 = vpop.trf.xlu0
    %v1523 = vpop.trf.xlu0
    %v1525 = vsel %vm749, %v1508, 0
    %v1528 = vsel %vm749, %v1509, 0
    %v1531 = vsel %vm749, %v1510, 0
    %v1534 = vsel %vm749, %v1511, 0
    %1536 = vmatprep.subr.mxu0 0.0
    %1537 = vmatpush1.msra.mxu0 %v433
    %1538 = vmatprep.subr.mxu0 0.0
    %1539 = vmatpush1.msra.mxu0 0.0
    %1540 = vmatprep.subr.mxu0 0.0
    %1541 = vmatpush1.msra.mxu0 0.0
    %1542 = vmatprep.subr.mxu0 0.0
    %1543 = vmatpush1.msra.mxu0 0.0
    %1544 = vmatprep.subr.mxu0 0.0
    %1545 = vmatpush1.msra.mxu0 0.0
    %1546 = vmatprep.subr.mxu0 0.0
    %1547 = vmatpush1.msra.mxu0 0.0
    %1548 = vmatprep.subr.mxu0 0.0
    %1549 = vmatpush1.msra.mxu0 0.0
    %1550 = vmatprep.subr.mxu0 0.0
    %1551 = vmatpush1.msra.mxu0 0.0
    %1552 = vmatprep.subr.mxu0 0.0
    %1553 = vmatpush1.msra.mxu0 0.0
    %1554 = vmatprep.subr.mxu0 0.0
    %1555 = vmatpush1.msra.mxu0 0.0
    %1556 = vmatprep.subr.mxu0 0.0
    %1557 = vmatpush1.msra.mxu0 0.0
    %1558 = vmatprep.subr.mxu0 0.0
    %1559 = vmatpush1.msra.mxu0 0.0
    %1560 = vmatprep.subr.mxu0 0.0
    %1561 = vmatpush1.msra.mxu0 0.0
    %1562 = vmatprep.subr.mxu0 0.0
    %1563 = vmatpush1.msra.mxu0 0.0
    %1564 = vmatprep.subr.mxu0 0.0
    %1565 = vmatpush1.msra.mxu0 0.0
    %1566 = vmatprep.subr.mxu0 0.0
    %1567 = vmatpush1.msra.mxu0 0.0
    %1568 = vmatprep.subr.mxu0 0.0
    %1569 = vmatpush1.msra.mxu0 0.0
    %1570 = vmatprep.subr.mxu0 0.0
    %1571 = vmatpush1.msra.mxu0 0.0
    %1572 = vmatprep.subr.mxu0 0.0
    %1573 = vmatpush1.msra.mxu0 0.0
    %1574 = vmatprep.subr.mxu0 0.0
    %1575 = vmatpush1.msra.mxu0 0.0
    %1576 = vmatprep.subr.mxu0 0.0
    %1577 = vmatpush1.msra.mxu0 0.0
    %1578 = vmatprep.subr.mxu0 0.0
    %1579 = vmatpush1.msra.mxu0 0.0
    %1580 = vmatprep.subr.mxu0 0.0
    %1581 = vmatpush1.msra.mxu0 0.0
    %1582 = vmatprep.subr.mxu0 0.0
    %1583 = vmatpush1.msra.mxu0 0.0
    %1584 = vmatprep.subr.mxu0 0.0
    %1585 = vmatpush1.msra.mxu0 0.0
    %1586 = vmatprep.subr.mxu0 0.0
    %1587 = vmatpush1.msra.mxu0 0.0
    %1588 = vmatprep.subr.mxu0 0.0
    %1589 = vmatpush1.msra.mxu0 0.0
    %1590 = vmatprep.subr.mxu0 0.0
    %1591 = vmatpush1.msra.mxu0 0.0
    %1592 = vmatprep.subr.mxu0 0.0
    %1593 = vmatpush1.msra.mxu0 0.0
    %1594 = vmatprep.subr.mxu0 0.0
    %1595 = vmatpush1.msra.mxu0 0.0
    %1596 = vmatprep.subr.mxu0 0.0
    %1597 = vmatpush1.msra.mxu0 0.0
    %1598 = vmatprep.subr.mxu0 0.0
    %1599 = vmatpush1.msra.mxu0 0.0
    %1600 = vmatprep.mubr.f32.mxu0 0.0
    %1601 = vmatmul.mubr.f32.gmra.mrb[0].mxu0 %v1525
    %v1602 = vpop.f32.mrb[0].mxu0
    %v1603 = vadd.f32 0.0, %v1602
    %v1604 = vpop.f32.mrb[0].mxu0
    %1605 = vmatprep.mubr.f32.mxu0 0.0
    %1606 = vmatmul.mubr.f32.gmra.mrb[0].mxu0 %v1528
    %v1607 = vpop.f32.mrb[0].mxu0
    %v1608 = vadd.f32 0.0, %v1607
    %v1609 = vpop.f32.mrb[0].mxu0
    %1610 = vmatprep.mubr.f32.mxu0 0.0
    %1611 = vmatmul.mubr.f32.gmra.mrb[0].mxu0 %v1531
    %v1612 = vpop.f32.mrb[0].mxu0
    %v1613 = vadd.f32 0.0, %v1612
    %v1614 = vpop.f32.mrb[0].mxu0
    %1615 = vmatprep.mubr.f32.mxu0 0.0
    %1616 = vmatmul.mubr.f32.gmra.mrb[0].mxu0 %v1534
    %v1617 = vpop.f32.mrb[0].mxu0
    %v1618 = vadd.f32 0.0, %v1617
    %v1619 = vpop.f32.mrb[0].mxu0
    %1620 = vdwg.mxu0
    %1621 = vxpose.xlu0.b32.start [1/16] %v708, 128
    %1622 = vxpose.xlu0.b32.cont [2/16] 0.0, 128
    %1623 = vxpose.xlu0.b32.cont [3/16] 0.0, 128
    %1624 = vxpose.xlu0.b32.cont [4/16] 0.0, 128
    %1625 = vxpose.xlu0.b32.cont [5/16] 0.0, 128
    %1626 = vxpose.xlu0.b32.cont [6/16] 0.0, 128
    %1627 = vxpose.xlu0.b32.cont [7/16] 0.0, 128
    %1628 = vxpose.xlu0.b32.cont [8/16] 0.0, 128
    %1629 = vxpose.xlu0.b32.cont [9/16] 0.0, 128
    %1630 = vxpose.xlu0.b32.cont [10/16] 0.0, 128
    %1631 = vxpose.xlu0.b32.cont [11/16] 0.0, 128
    %1632 = vxpose.xlu0.b32.cont [12/16] 0.0, 128
    %1633 = vxpose.xlu0.b32.cont [13/16] 0.0, 128
    %1634 = vxpose.xlu0.b32.cont [14/16] 0.0, 128
    %1635 = vxpose.xlu0.b32.cont [15/16] 0.0, 128
    %1636 = vxpose.xlu0.b32.end [16/16] 0.0, 128
    %v1637 = vpop.trf.xlu0
    %v1638 = vpop.trf.xlu0
    %v1639 = vpop.trf.xlu0
    %v1640 = vpop.trf.xlu0
    %v1641 = vpop.trf.xlu0
    %v1642 = vpop.trf.xlu0
    %v1643 = vpop.trf.xlu0
    %v1644 = vpop.trf.xlu0
    %v1645 = vpop.trf.xlu0
    %v1646 = vpop.trf.xlu0
    %v1647 = vpop.trf.xlu0
    %v1648 = vpop.trf.xlu0
    %v1649 = vpop.trf.xlu0
    %v1650 = vpop.trf.xlu0
    %v1651 = vpop.trf.xlu0
    %v1652 = vpop.trf.xlu0
    %v1654 = vsel %vm749, %v1637, 0
    %v1657 = vsel %vm749, %v1638, 0
    %v1660 = vsel %vm749, %v1639, 0
    %v1663 = vsel %vm749, %v1640, 0
    %1665 = vmatprep.subr.mxu0 0.0
    %1666 = vmatpush1.msra.mxu0 %v438
    %1667 = vmatprep.subr.mxu0 0.0
    %1668 = vmatpush1.msra.mxu0 0.0
    %1669 = vmatprep.subr.mxu0 0.0
    %1670 = vmatpush1.msra.mxu0 0.0
    %1671 = vmatprep.subr.mxu0 0.0
    %1672 = vmatpush1.msra.mxu0 0.0
    %1673 = vmatprep.subr.mxu0 0.0
    %1674 = vmatpush1.msra.mxu0 0.0
    %1675 = vmatprep.subr.mxu0 0.0
    %1676 = vmatpush1.msra.mxu0 0.0
    %1677 = vmatprep.subr.mxu0 0.0
    %1678 = vmatpush1.msra.mxu0 0.0
    %1679 = vmatprep.subr.mxu0 0.0
    %1680 = vmatpush1.msra.mxu0 0.0
    %1681 = vmatprep.subr.mxu0 0.0
    %1682 = vmatpush1.msra.mxu0 0.0
    %1683 = vmatprep.subr.mxu0 0.0
    %1684 = vmatpush1.msra.mxu0 0.0
    %1685 = vmatprep.subr.mxu0 0.0
    %1686 = vmatpush1.msra.mxu0 0.0
    %1687 = vmatprep.subr.mxu0 0.0
    %1688 = vmatpush1.msra.mxu0 0.0
    %1689 = vmatprep.subr.mxu0 0.0
    %1690 = vmatpush1.msra.mxu0 0.0
    %1691 = vmatprep.subr.mxu0 0.0
    %1692 = vmatpush1.msra.mxu0 0.0
    %1693 = vmatprep.subr.mxu0 0.0
    %1694 = vmatpush1.msra.mxu0 0.0
    %1695 = vmatprep.subr.mxu0 0.0
    %1696 = vmatpush1.msra.mxu0 0.0
    %1697 = vmatprep.subr.mxu0 0.0
    %1698 = vmatpush1.msra.mxu0 0.0
    %1699 = vmatprep.subr.mxu0 0.0
    %1700 = vmatpush1.msra.mxu0 0.0
    %1701 = vmatprep.subr.mxu0 0.0
    %1702 = vmatpush1.msra.mxu0 0.0
    %1703 = vmatprep.subr.mxu0 0.0
    %1704 = vmatpush1.msra.mxu0 0.0
    %1705 = vmatprep.subr.mxu0 0.0
    %1706 = vmatpush1.msra.mxu0 0.0
    %1707 = vmatprep.subr.mxu0 0.0
    %1708 = vmatpush1.msra.mxu0 0.0
    %1709 = vmatprep.subr.mxu0 0.0
    %1710 = vmatpush1.msra.mxu0 0.0
    %1711 = vmatprep.subr.mxu0 0.0
    %1712 = vmatpush1.msra.mxu0 0.0
    %1713 = vmatprep.subr.mxu0 0.0
    %1714 = vmatpush1.msra.mxu0 0.0
    %1715 = vmatprep.subr.mxu0 0.0
    %1716 = vmatpush1.msra.mxu0 0.0
    %1717 = vmatprep.subr.mxu0 0.0
    %1718 = vmatpush1.msra.mxu0 0.0
    %1719 = vmatprep.subr.mxu0 0.0
    %1720 = vmatpush1.msra.mxu0 0.0
    %1721 = vmatprep.subr.mxu0 0.0
    %1722 = vmatpush1.msra.mxu0 0.0
    %1723 = vmatprep.subr.mxu0 0.0
    %1724 = vmatpush1.msra.mxu0 0.0
    %1725 = vmatprep.subr.mxu0 0.0
    %1726 = vmatpush1.msra.mxu0 0.0
    %1727 = vmatprep.subr.mxu0 0.0
    %1728 = vmatpush1.msra.mxu0 0.0
    %1729 = vmatprep.mubr.f32.mxu0 0.0
    %1730 = vmatmul.mubr.f32.gmra.mrb[0].mxu0 %v1654
    %v1731 = vpop.f32.mrb[0].mxu0
    %v1732 = vadd.f32 0.0, %v1731
    %v1733 = vpop.f32.mrb[0].mxu0
    %1734 = vmatprep.mubr.f32.mxu0 0.0
    %1735 = vmatmul.mubr.f32.gmra.mrb[0].mxu0 %v1657
    %v1736 = vpop.f32.mrb[0].mxu0
    %v1737 = vadd.f32 0.0, %v1736
    %v1738 = vpop.f32.mrb[0].mxu0
    %1739 = vmatprep.mubr.f32.mxu0 0.0
    %1740 = vmatmul.mubr.f32.gmra.mrb[0].mxu0 %v1660
    %v1741 = vpop.f32.mrb[0].mxu0
    %v1742 = vadd.f32 0.0, %v1741
    %v1743 = vpop.f32.mrb[0].mxu0
    %1744 = vmatprep.mubr.f32.mxu0 0.0
    %1745 = vmatmul.mubr.f32.gmra.mrb[0].mxu0 %v1663
    %v1746 = vpop.f32.mrb[0].mxu0
    %v1747 = vadd.f32 0.0, %v1746
    %v1748 = vpop.f32.mrb[0].mxu0
    %1749 = vdwg.mxu0
    %1750 = vxpose.xlu0.b32.start [1/16] %v709, 128
    %1751 = vxpose.xlu0.b32.cont [2/16] 0.0, 128
    %1752 = vxpose.xlu0.b32.cont [3/16] 0.0, 128
    %1753 = vxpose.xlu0.b32.cont [4/16] 0.0, 128
    %1754 = vxpose.xlu0.b32.cont [5/16] 0.0, 128
    %1755 = vxpose.xlu0.b32.cont [6/16] 0.0, 128
    %1756 = vxpose.xlu0.b32.cont [7/16] 0.0, 128
    %1757 = vxpose.xlu0.b32.cont [8/16] 0.0, 128
    %1758 = vxpose.xlu0.b32.cont [9/16] 0.0, 128
    %1759 = vxpose.xlu0.b32.cont [10/16] 0.0, 128
    %1760 = vxpose.xlu0.b32.cont [11/16] 0.0, 128
    %1761 = vxpose.xlu0.b32.cont [12/16] 0.0, 128
    %1762 = vxpose.xlu0.b32.cont [13/16] 0.0, 128
    %1763 = vxpose.xlu0.b32.cont [14/16] 0.0, 128
    %1764 = vxpose.xlu0.b32.cont [15/16] 0.0, 128
    %1765 = vxpose.xlu0.b32.end [16/16] 0.0, 128
    %v1766 = vpop.trf.xlu0
    %v1767 = vpop.trf.xlu0
    %v1768 = vpop.trf.xlu0
    %v1769 = vpop.trf.xlu0
    %v1770 = vpop.trf.xlu0
    %v1771 = vpop.trf.xlu0
    %v1772 = vpop.trf.xlu0
    %v1773 = vpop.trf.xlu0
    %v1774 = vpop.trf.xlu0
    %v1775 = vpop.trf.xlu0
    %v1776 = vpop.trf.xlu0
    %v1777 = vpop.trf.xlu0
    %v1778 = vpop.trf.xlu0
    %v1779 = vpop.trf.xlu0
    %v1780 = vpop.trf.xlu0
    %v1781 = vpop.trf.xlu0
    %v1783 = vsel %vm749, %v1766, 0
    %v1786 = vsel %vm749, %v1767, 0
    %v1789 = vsel %vm749, %v1768, 0
    %v1792 = vsel %vm749, %v1769, 0
    %1794 = vmatprep.subr.mxu0 0.0
    %1795 = vmatpush1.msra.mxu0 %v443
    %1796 = vmatprep.subr.mxu0 0.0
    %1797 = vmatpush1.msra.mxu0 0.0
    %1798 = vmatprep.subr.mxu0 0.0
    %1799 = vmatpush1.msra.mxu0 0.0
    %1800 = vmatprep.subr.mxu0 0.0
    %1801 = vmatpush1.msra.mxu0 0.0
    %1802 = vmatprep.subr.mxu0 0.0
    %1803 = vmatpush1.msra.mxu0 0.0
    %1804 = vmatprep.subr.mxu0 0.0
    %1805 = vmatpush1.msra.mxu0 0.0
    %1806 = vmatprep.subr.mxu0 0.0
    %1807 = vmatpush1.msra.mxu0 0.0
    %1808 = vmatprep.subr.mxu0 0.0
    %1809 = vmatpush1.msra.mxu0 0.0
    %1810 = vmatprep.subr.mxu0 0.0
    %1811 = vmatpush1.msra.mxu0 0.0
    %1812 = vmatprep.subr.mxu0 0.0
    %1813 = vmatpush1.msra.mxu0 0.0
    %1814 = vmatprep.subr.mxu0 0.0
    %1815 = vmatpush1.msra.mxu0 0.0
    %1816 = vmatprep.subr.mxu0 0.0
    %1817 = vmatpush1.msra.mxu0 0.0
    %1818 = vmatprep.subr.mxu0 0.0
    %1819 = vmatpush1.msra.mxu0 0.0
    %1820 = vmatprep.subr.mxu0 0.0
    %1821 = vmatpush1.msra.mxu0 0.0
    %1822 = vmatprep.subr.mxu0 0.0
    %1823 = vmatpush1.msra.mxu0 0.0
    %1824 = vmatprep.subr.mxu0 0.0
    %1825 = vmatpush1.msra.mxu0 0.0
    %1826 = vmatprep.subr.mxu0 0.0
    %1827 = vmatpush1.msra.mxu0 0.0
    %1828 = vmatprep.subr.mxu0 0.0
    %1829 = vmatpush1.msra.mxu0 0.0
    %1830 = vmatprep.subr.mxu0 0.0
    %1831 = vmatpush1.msra.mxu0 0.0
    %1832 = vmatprep.subr.mxu0 0.0
    %1833 = vmatpush1.msra.mxu0 0.0
    %1834 = vmatprep.subr.mxu0 0.0
    %1835 = vmatpush1.msra.mxu0 0.0
    %1836 = vmatprep.subr.mxu0 0.0
    %1837 = vmatpush1.msra.mxu0 0.0
    %1838 = vmatprep.subr.mxu0 0.0
    %1839 = vmatpush1.msra.mxu0 0.0
    %1840 = vmatprep.subr.mxu0 0.0
    %1841 = vmatpush1.msra.mxu0 0.0
    %1842 = vmatprep.subr.mxu0 0.0
    %1843 = vmatpush1.msra.mxu0 0.0
    %1844 = vmatprep.subr.mxu0 0.0
    %1845 = vmatpush1.msra.mxu0 0.0
    %1846 = vmatprep.subr.mxu0 0.0
    %1847 = vmatpush1.msra.mxu0 0.0
    %1848 = vmatprep.subr.mxu0 0.0
    %1849 = vmatpush1.msra.mxu0 0.0
    %1850 = vmatprep.subr.mxu0 0.0
    %1851 = vmatpush1.msra.mxu0 0.0
    %1852 = vmatprep.subr.mxu0 0.0
    %1853 = vmatpush1.msra.mxu0 0.0
    %1854 = vmatprep.subr.mxu0 0.0
    %1855 = vmatpush1.msra.mxu0 0.0
    %1856 = vmatprep.subr.mxu0 0.0
    %1857 = vmatpush1.msra.mxu0 0.0
    %1858 = vmatprep.mubr.f32.mxu0 0.0
    %1859 = vmatmul.mubr.f32.gmra.mrb[0].mxu0 %v1783
    %v1860 = vpop.f32.mrb[0].mxu0
    %v1861 = vadd.f32 0.0, %v1860
    %v1862 = vpop.f32.mrb[0].mxu0
    %1863 = vmatprep.mubr.f32.mxu0 0.0
    %1864 = vmatmul.mubr.f32.gmra.mrb[0].mxu0 %v1786
    %v1865 = vpop.f32.mrb[0].mxu0
    %v1866 = vadd.f32 0.0, %v1865
    %v1867 = vpop.f32.mrb[0].mxu0
    %1868 = vmatprep.mubr.f32.mxu0 0.0
    %1869 = vmatmul.mubr.f32.gmra.mrb[0].mxu0 %v1789
    %v1870 = vpop.f32.mrb[0].mxu0
    %v1871 = vadd.f32 0.0, %v1870
    %v1872 = vpop.f32.mrb[0].mxu0
    %1873 = vmatprep.mubr.f32.mxu0 0.0
    %1874 = vmatmul.mubr.f32.gmra.mrb[0].mxu0 %v1792
    %v1875 = vpop.f32.mrb[0].mxu0
    %v1876 = vadd.f32 0.0, %v1875
    %v1877 = vpop.f32.mrb[0].mxu0
    %1878 = vdwg.mxu0
    %1879 = vxpose.xlu0.b32.start [1/16] %v710, 128
    %1880 = vxpose.xlu0.b32.cont [2/16] 0.0, 128
    %1881 = vxpose.xlu0.b32.cont [3/16] 0.0, 128
    %1882 = vxpose.xlu0.b32.cont [4/16] 0.0, 128
    %1883 = vxpose.xlu0.b32.cont [5/16] 0.0, 128
    %1884 = vxpose.xlu0.b32.cont [6/16] 0.0, 128
    %1885 = vxpose.xlu0.b32.cont [7/16] 0.0, 128
    %1886 = vxpose.xlu0.b32.cont [8/16] 0.0, 128
    %1887 = vxpose.xlu0.b32.cont [9/16] 0.0, 128
    %1888 = vxpose.xlu0.b32.cont [10/16] 0.0, 128
    %1889 = vxpose.xlu0.b32.cont [11/16] 0.0, 128
    %1890 = vxpose.xlu0.b32.cont [12/16] 0.0, 128
    %1891 = vxpose.xlu0.b32.cont [13/16] 0.0, 128
    %1892 = vxpose.xlu0.b32.cont [14/16] 0.0, 128
    %1893 = vxpose.xlu0.b32.cont [15/16] 0.0, 128
    %1894 = vxpose.xlu0.b32.end [16/16] 0.0, 128
    %v1895 = vpop.trf.xlu0
    %v1896 = vpop.trf.xlu0
    %v1897 = vpop.trf.xlu0
    %v1898 = vpop.trf.xlu0
    %v1899 = vpop.trf.xlu0
    %v1900 = vpop.trf.xlu0
    %v1901 = vpop.trf.xlu0
    %v1902 = vpop.trf.xlu0
    %v1903 = vpop.trf.xlu0
    %v1904 = vpop.trf.xlu0
    %v1905 = vpop.trf.xlu0
    %v1906 = vpop.trf.xlu0
    %v1907 = vpop.trf.xlu0
    %v1908 = vpop.trf.xlu0
    %v1909 = vpop.trf.xlu0
    %v1910 = vpop.trf.xlu0
    %v1912 = vsel %vm749, %v1895, 0
    %v1915 = vsel %vm749, %v1896, 0
    %v1918 = vsel %vm749, %v1897, 0
    %v1921 = vsel %vm749, %v1898, 0
    %1923 = vmatprep.subr.mxu0 0.0
    %1924 = vmatpush1.msra.mxu0 %v448
    %1925 = vmatprep.subr.mxu0 0.0
    %1926 = vmatpush1.msra.mxu0 0.0
    %1927 = vmatprep.subr.mxu0 0.0
    %1928 = vmatpush1.msra.mxu0 0.0
    %1929 = vmatprep.subr.mxu0 0.0
    %1930 = vmatpush1.msra.mxu0 0.0
    %1931 = vmatprep.subr.mxu0 0.0
    %1932 = vmatpush1.msra.mxu0 0.0
    %1933 = vmatprep.subr.mxu0 0.0
    %1934 = vmatpush1.msra.mxu0 0.0
    %1935 = vmatprep.subr.mxu0 0.0
    %1936 = vmatpush1.msra.mxu0 0.0
    %1937 = vmatprep.subr.mxu0 0.0
    %1938 = vmatpush1.msra.mxu0 0.0
    %1939 = vmatprep.subr.mxu0 0.0
    %1940 = vmatpush1.msra.mxu0 0.0
    %1941 = vmatprep.subr.mxu0 0.0
    %1942 = vmatpush1.msra.mxu0 0.0
    %1943 = vmatprep.subr.mxu0 0.0
    %1944 = vmatpush1.msra.mxu0 0.0
    %1945 = vmatprep.subr.mxu0 0.0
    %1946 = vmatpush1.msra.mxu0 0.0
    %1947 = vmatprep.subr.mxu0 0.0
    %1948 = vmatpush1.msra.mxu0 0.0
    %1949 = vmatprep.subr.mxu0 0.0
    %1950 = vmatpush1.msra.mxu0 0.0
    %1951 = vmatprep.subr.mxu0 0.0
    %1952 = vmatpush1.msra.mxu0 0.0
    %1953 = vmatprep.subr.mxu0 0.0
    %1954 = vmatpush1.msra.mxu0 0.0
    %1955 = vmatprep.subr.mxu0 0.0
    %1956 = vmatpush1.msra.mxu0 0.0
    %1957 = vmatprep.subr.mxu0 0.0
    %1958 = vmatpush1.msra.mxu0 0.0
    %1959 = vmatprep.subr.mxu0 0.0
    %1960 = vmatpush1.msra.mxu0 0.0
    %1961 = vmatprep.subr.mxu0 0.0
    %1962 = vmatpush1.msra.mxu0 0.0
    %1963 = vmatprep.subr.mxu0 0.0
    %1964 = vmatpush1.msra.mxu0 0.0
    %1965 = vmatprep.subr.mxu0 0.0
    %1966 = vmatpush1.msra.mxu0 0.0
    %1967 = vmatprep.subr.mxu0 0.0
    %1968 = vmatpush1.msra.mxu0 0.0
    %1969 = vmatprep.subr.mxu0 0.0
    %1970 = vmatpush1.msra.mxu0 0.0
    %1971 = vmatprep.subr.mxu0 0.0
    %1972 = vmatpush1.msra.mxu0 0.0
    %1973 = vmatprep.subr.mxu0 0.0
    %1974 = vmatpush1.msra.mxu0 0.0
    %1975 = vmatprep.subr.mxu0 0.0
    %1976 = vmatpush1.msra.mxu0 0.0
    %1977 = vmatprep.subr.mxu0 0.0
    %1978 = vmatpush1.msra.mxu0 0.0
    %1979 = vmatprep.subr.mxu0 0.0
    %1980 = vmatpush1.msra.mxu0 0.0
    %1981 = vmatprep.subr.mxu0 0.0
    %1982 = vmatpush1.msra.mxu0 0.0
    %1983 = vmatprep.subr.mxu0 0.0
    %1984 = vmatpush1.msra.mxu0 0.0
    %1985 = vmatprep.subr.mxu0 0.0
    %1986 = vmatpush1.msra.mxu0 0.0
    %1987 = vmatprep.mubr.f32.mxu0 0.0
    %1988 = vmatmul.mubr.f32.gmra.mrb[0].mxu0 %v1912
    %v1989 = vpop.f32.mrb[0].mxu0
    %v1990 = vadd.f32 0.0, %v1989
    %v1991 = vpop.f32.mrb[0].mxu0
    %1992 = vmatprep.mubr.f32.mxu0 0.0
    %1993 = vmatmul.mubr.f32.gmra.mrb[0].mxu0 %v1915
    %v1994 = vpop.f32.mrb[0].mxu0
    %v1995 = vadd.f32 0.0, %v1994
    %v1996 = vpop.f32.mrb[0].mxu0
    %1997 = vmatprep.mubr.f32.mxu0 0.0
    %1998 = vmatmul.mubr.f32.gmra.mrb[0].mxu0 %v1918
    %v1999 = vpop.f32.mrb[0].mxu0
    %v2000 = vadd.f32 0.0, %v1999
    %v2001 = vpop.f32.mrb[0].mxu0
    %2002 = vmatprep.mubr.f32.mxu0 0.0
    %2003 = vmatmul.mubr.f32.gmra.mrb[0].mxu0 %v1921
    %v2004 = vpop.f32.mrb[0].mxu0
    %v2005 = vadd.f32 0.0, %v2004
    %v2006 = vpop.f32.mrb[0].mxu0
    %2007 = vdwg.mxu0
    %2008 = vxpose.xlu0.b32.start [1/16] %v711, 128
    %2009 = vxpose.xlu0.b32.cont [2/16] 0.0, 128
    %2010 = vxpose.xlu0.b32.cont [3/16] 0.0, 128
    %2011 = vxpose.xlu0.b32.cont [4/16] 0.0, 128
    %2012 = vxpose.xlu0.b32.cont [5/16] 0.0, 128
    %2013 = vxpose.xlu0.b32.cont [6/16] 0.0, 128
    %2014 = vxpose.xlu0.b32.cont [7/16] 0.0, 128
    %2015 = vxpose.xlu0.b32.cont [8/16] 0.0, 128
    %2016 = vxpose.xlu0.b32.cont [9/16] 0.0, 128
    %2017 = vxpose.xlu0.b32.cont [10/16] 0.0, 128
    %2018 = vxpose.xlu0.b32.cont [11/16] 0.0, 128
    %2019 = vxpose.xlu0.b32.cont [12/16] 0.0, 128
    %2020 = vxpose.xlu0.b32.cont [13/16] 0.0, 128
    %2021 = vxpose.xlu0.b32.cont [14/16] 0.0, 128
    %2022 = vxpose.xlu0.b32.cont [15/16] 0.0, 128
    %2023 = vxpose.xlu0.b32.end [16/16] 0.0, 128
    %v2024 = vpop.trf.xlu0
    %v2025 = vpop.trf.xlu0
    %v2026 = vpop.trf.xlu0
    %v2027 = vpop.trf.xlu0
    %v2028 = vpop.trf.xlu0
    %v2029 = vpop.trf.xlu0
    %v2030 = vpop.trf.xlu0
    %v2031 = vpop.trf.xlu0
    %v2032 = vpop.trf.xlu0
    %v2033 = vpop.trf.xlu0
    %v2034 = vpop.trf.xlu0
    %v2035 = vpop.trf.xlu0
    %v2036 = vpop.trf.xlu0
    %v2037 = vpop.trf.xlu0
    %v2038 = vpop.trf.xlu0
    %v2039 = vpop.trf.xlu0
    %v2041 = vsel %vm749, %v2024, 0
    %v2044 = vsel %vm749, %v2025, 0
    %v2047 = vsel %vm749, %v2026, 0
    %v2050 = vsel %vm749, %v2027, 0
    %2052 = vmatprep.subr.mxu0 0.0
    %2053 = vmatpush1.msra.mxu0 %v453
    %2054 = vmatprep.subr.mxu0 0.0
    %2055 = vmatpush1.msra.mxu0 0.0
    %2056 = vmatprep.subr.mxu0 0.0
    %2057 = vmatpush1.msra.mxu0 0.0
    %2058 = vmatprep.subr.mxu0 0.0
    %2059 = vmatpush1.msra.mxu0 0.0
    %2060 = vmatprep.subr.mxu0 0.0
    %2061 = vmatpush1.msra.mxu0 0.0
    %2062 = vmatprep.subr.mxu0 0.0
    %2063 = vmatpush1.msra.mxu0 0.0
    %2064 = vmatprep.subr.mxu0 0.0
    %2065 = vmatpush1.msra.mxu0 0.0
    %2066 = vmatprep.subr.mxu0 0.0
    %2067 = vmatpush1.msra.mxu0 0.0
    %2068 = vmatprep.subr.mxu0 0.0
    %2069 = vmatpush1.msra.mxu0 0.0
    %2070 = vmatprep.subr.mxu0 0.0
    %2071 = vmatpush1.msra.mxu0 0.0
    %2072 = vmatprep.subr.mxu0 0.0
    %2073 = vmatpush1.msra.mxu0 0.0
    %2074 = vmatprep.subr.mxu0 0.0
    %2075 = vmatpush1.msra.mxu0 0.0
    %2076 = vmatprep.subr.mxu0 0.0
    %2077 = vmatpush1.msra.mxu0 0.0
    %2078 = vmatprep.subr.mxu0 0.0
    %2079 = vmatpush1.msra.mxu0 0.0
    %2080 = vmatprep.subr.mxu0 0.0
    %2081 = vmatpush1.msra.mxu0 0.0
    %2082 = vmatprep.subr.mxu0 0.0
    %2083 = vmatpush1.msra.mxu0 0.0
    %2084 = vmatprep.subr.mxu0 0.0
    %2085 = vmatpush1.msra.mxu0 0.0
    %2086 = vmatprep.subr.mxu0 0.0
    %2087 = vmatpush1.msra.mxu0 0.0
    %2088 = vmatprep.subr.mxu0 0.0
    %2089 = vmatpush1.msra.mxu0 0.0
    %2090 = vmatprep.subr.mxu0 0.0
    %2091 = vmatpush1.msra.mxu0 0.0
    %2092 = vmatprep.subr.mxu0 0.0
    %2093 = vmatpush1.msra.mxu0 0.0
    %2094 = vmatprep.subr.mxu0 0.0
    %2095 = vmatpush1.msra.mxu0 0.0
    %2096 = vmatprep.subr.mxu0 0.0
    %2097 = vmatpush1.msra.mxu0 0.0
    %2098 = vmatprep.subr.mxu0 0.0
    %2099 = vmatpush1.msra.mxu0 0.0
    %2100 = vmatprep.subr.mxu0 0.0
    %2101 = vmatpush1.msra.mxu0 0.0
    %2102 = vmatprep.subr.mxu0 0.0
    %2103 = vmatpush1.msra.mxu0 0.0
    %2104 = vmatprep.subr.mxu0 0.0
    %2105 = vmatpush1.msra.mxu0 0.0
    %2106 = vmatprep.subr.mxu0 0.0
    %2107 = vmatpush1.msra.mxu0 0.0
    %2108 = vmatprep.subr.mxu0 0.0
    %2109 = vmatpush1.msra.mxu0 0.0
    %2110 = vmatprep.subr.mxu0 0.0
    %2111 = vmatpush1.msra.mxu0 0.0
    %2112 = vmatprep.subr.mxu0 0.0
    %2113 = vmatpush1.msra.mxu0 0.0
    %2114 = vmatprep.subr.mxu0 0.0
    %2115 = vmatpush1.msra.mxu0 0.0
    %2116 = vmatprep.mubr.f32.mxu0 0.0
    %2117 = vmatmul.mubr.f32.gmra.mrb[0].mxu0 %v2041
    %v2118 = vpop.f32.mrb[0].mxu0
    %v2119 = vadd.f32 0.0, %v2118
    %v2120 = vpop.f32.mrb[0].mxu0
    %2121 = vmatprep.mubr.f32.mxu0 0.0
    %2122 = vmatmul.mubr.f32.gmra.mrb[0].mxu0 %v2044
    %v2123 = vpop.f32.mrb[0].mxu0
    %v2124 = vadd.f32 0.0, %v2123
    %v2125 = vpop.f32.mrb[0].mxu0
    %2126 = vmatprep.mubr.f32.mxu0 0.0
    %2127 = vmatmul.mubr.f32.gmra.mrb[0].mxu0 %v2047
    %v2128 = vpop.f32.mrb[0].mxu0
    %v2129 = vadd.f32 0.0, %v2128
    %v2130 = vpop.f32.mrb[0].mxu0
    %2131 = vmatprep.mubr.f32.mxu0 0.0
    %2132 = vmatmul.mubr.f32.gmra.mrb[0].mxu0 %v2050
    %v2133 = vpop.f32.mrb[0].mxu0
    %v2134 = vadd.f32 0.0, %v2133
    %v2135 = vpop.f32.mrb[0].mxu0
    %2136 = vdwg.mxu0
    %2137 = vxpose.xlu0.b32.start [1/16] %v712, 128
    %2138 = vxpose.xlu0.b32.cont [2/16] 0.0, 128
    %2139 = vxpose.xlu0.b32.cont [3/16] 0.0, 128
    %2140 = vxpose.xlu0.b32.cont [4/16] 0.0, 128
    %2141 = vxpose.xlu0.b32.cont [5/16] 0.0, 128
    %2142 = vxpose.xlu0.b32.cont [6/16] 0.0, 128
    %2143 = vxpose.xlu0.b32.cont [7/16] 0.0, 128
    %2144 = vxpose.xlu0.b32.cont [8/16] 0.0, 128
    %2145 = vxpose.xlu0.b32.cont [9/16] 0.0, 128
    %2146 = vxpose.xlu0.b32.cont [10/16] 0.0, 128
    %2147 = vxpose.xlu0.b32.cont [11/16] 0.0, 128
    %2148 = vxpose.xlu0.b32.cont [12/16] 0.0, 128
    %2149 = vxpose.xlu0.b32.cont [13/16] 0.0, 128
    %2150 = vxpose.xlu0.b32.cont [14/16] 0.0, 128
    %2151 = vxpose.xlu0.b32.cont [15/16] 0.0, 128
    %2152 = vxpose.xlu0.b32.end [16/16] 0.0, 128
    %v2153 = vpop.trf.xlu0
    %v2154 = vpop.trf.xlu0
    %v2155 = vpop.trf.xlu0
    %v2156 = vpop.trf.xlu0
    %v2157 = vpop.trf.xlu0
    %v2158 = vpop.trf.xlu0
    %v2159 = vpop.trf.xlu0
    %v2160 = vpop.trf.xlu0
    %v2161 = vpop.trf.xlu0
    %v2162 = vpop.trf.xlu0
    %v2163 = vpop.trf.xlu0
    %v2164 = vpop.trf.xlu0
    %v2165 = vpop.trf.xlu0
    %v2166 = vpop.trf.xlu0
    %v2167 = vpop.trf.xlu0
    %v2168 = vpop.trf.xlu0
    %v2170 = vsel %vm749, %v2153, 0
    %v2173 = vsel %vm749, %v2154, 0
    %v2176 = vsel %vm749, %v2155, 0
    %v2179 = vsel %vm749, %v2156, 0
    %2181 = vmatprep.subr.mxu0 0.0
    %2182 = vmatpush1.msra.mxu0 %v458
    %2183 = vmatprep.subr.mxu0 0.0
    %2184 = vmatpush1.msra.mxu0 0.0
    %2185 = vmatprep.subr.mxu0 0.0
    %2186 = vmatpush1.msra.mxu0 0.0
    %2187 = vmatprep.subr.mxu0 0.0
    %2188 = vmatpush1.msra.mxu0 0.0
    %2189 = vmatprep.subr.mxu0 0.0
    %2190 = vmatpush1.msra.mxu0 0.0
    %2191 = vmatprep.subr.mxu0 0.0
    %2192 = vmatpush1.msra.mxu0 0.0
    %2193 = vmatprep.subr.mxu0 0.0
    %2194 = vmatpush1.msra.mxu0 0.0
    %2195 = vmatprep.subr.mxu0 0.0
    %2196 = vmatpush1.msra.mxu0 0.0
    %2197 = vmatprep.subr.mxu0 0.0
    %2198 = vmatpush1.msra.mxu0 0.0
    %2199 = vmatprep.subr.mxu0 0.0
    %2200 = vmatpush1.msra.mxu0 0.0
    %2201 = vmatprep.subr.mxu0 0.0
    %2202 = vmatpush1.msra.mxu0 0.0
    %2203 = vmatprep.subr.mxu0 0.0
    %2204 = vmatpush1.msra.mxu0 0.0
    %2205 = vmatprep.subr.mxu0 0.0
    %2206 = vmatpush1.msra.mxu0 0.0
    %2207 = vmatprep.subr.mxu0 0.0
    %2208 = vmatpush1.msra.mxu0 0.0
    %2209 = vmatprep.subr.mxu0 0.0
    %2210 = vmatpush1.msra.mxu0 0.0
    %2211 = vmatprep.subr.mxu0 0.0
    %2212 = vmatpush1.msra.mxu0 0.0
    %2213 = vmatprep.subr.mxu0 0.0
    %2214 = vmatpush1.msra.mxu0 0.0
    %2215 = vmatprep.subr.mxu0 0.0
    %2216 = vmatpush1.msra.mxu0 0.0
    %2217 = vmatprep.subr.mxu0 0.0
    %2218 = vmatpush1.msra.mxu0 0.0
    %2219 = vmatprep.subr.mxu0 0.0
    %2220 = vmatpush1.msra.mxu0 0.0
    %2221 = vmatprep.subr.mxu0 0.0
    %2222 = vmatpush1.msra.mxu0 0.0
    %2223 = vmatprep.subr.mxu0 0.0
    %2224 = vmatpush1.msra.mxu0 0.0
    %2225 = vmatprep.subr.mxu0 0.0
    %2226 = vmatpush1.msra.mxu0 0.0
    %2227 = vmatprep.subr.mxu0 0.0
    %2228 = vmatpush1.msra.mxu0 0.0
    %2229 = vmatprep.subr.mxu0 0.0
    %2230 = vmatpush1.msra.mxu0 0.0
    %2231 = vmatprep.subr.mxu0 0.0
    %2232 = vmatpush1.msra.mxu0 0.0
    %2233 = vmatprep.subr.mxu0 0.0
    %2234 = vmatpush1.msra.mxu0 0.0
    %2235 = vmatprep.subr.mxu0 0.0
    %2236 = vmatpush1.msra.mxu0 0.0
    %2237 = vmatprep.subr.mxu0 0.0
    %2238 = vmatpush1.msra.mxu0 0.0
    %2239 = vmatprep.subr.mxu0 0.0
    %2240 = vmatpush1.msra.mxu0 0.0
    %2241 = vmatprep.subr.mxu0 0.0
    %2242 = vmatpush1.msra.mxu0 0.0
    %2243 = vmatprep.subr.mxu0 0.0
    %2244 = vmatpush1.msra.mxu0 0.0
    %2245 = vmatprep.mubr.f32.mxu0 0.0
    %2246 = vmatmul.mubr.f32.gmra.mrb[0].mxu0 %v2170
    %v2247 = vpop.f32.mrb[0].mxu0
    %v2248 = vadd.f32 0.0, %v2247
    %v2249 = vpop.f32.mrb[0].mxu0
    %2250 = vmatprep.mubr.f32.mxu0 0.0
    %2251 = vmatmul.mubr.f32.gmra.mrb[0].mxu0 %v2173
    %v2252 = vpop.f32.mrb[0].mxu0
    %v2253 = vadd.f32 0.0, %v2252
    %v2254 = vpop.f32.mrb[0].mxu0
    %2255 = vmatprep.mubr.f32.mxu0 0.0
    %2256 = vmatmul.mubr.f32.gmra.mrb[0].mxu0 %v2176
    %v2257 = vpop.f32.mrb[0].mxu0
    %v2258 = vadd.f32 0.0, %v2257
    %v2259 = vpop.f32.mrb[0].mxu0
    %2260 = vmatprep.mubr.f32.mxu0 0.0
    %2261 = vmatmul.mubr.f32.gmra.mrb[0].mxu0 %v2179
    %v2262 = vpop.f32.mrb[0].mxu0
    %v2263 = vadd.f32 0.0, %v2262
    %v2264 = vpop.f32.mrb[0].mxu0
    %2265 = vdwg.mxu0
    %2266 = vxpose.xlu0.b32.start [1/16] %v713, 128
    %2267 = vxpose.xlu0.b32.cont [2/16] 0.0, 128
    %2268 = vxpose.xlu0.b32.cont [3/16] 0.0, 128
    %2269 = vxpose.xlu0.b32.cont [4/16] 0.0, 128
    %2270 = vxpose.xlu0.b32.cont [5/16] 0.0, 128
    %2271 = vxpose.xlu0.b32.cont [6/16] 0.0, 128
    %2272 = vxpose.xlu0.b32.cont [7/16] 0.0, 128
    %2273 = vxpose.xlu0.b32.cont [8/16] 0.0, 128
    %2274 = vxpose.xlu0.b32.cont [9/16] 0.0, 128
    %2275 = vxpose.xlu0.b32.cont [10/16] 0.0, 128
    %2276 = vxpose.xlu0.b32.cont [11/16] 0.0, 128
    %2277 = vxpose.xlu0.b32.cont [12/16] 0.0, 128
    %2278 = vxpose.xlu0.b32.cont [13/16] 0.0, 128
    %2279 = vxpose.xlu0.b32.cont [14/16] 0.0, 128
    %2280 = vxpose.xlu0.b32.cont [15/16] 0.0, 128
    %2281 = vxpose.xlu0.b32.end [16/16] 0.0, 128
    %v2282 = vpop.trf.xlu0
    %v2283 = vpop.trf.xlu0
    %v2284 = vpop.trf.xlu0
    %v2285 = vpop.trf.xlu0
    %v2286 = vpop.trf.xlu0
    %v2287 = vpop.trf.xlu0
    %v2288 = vpop.trf.xlu0
    %v2289 = vpop.trf.xlu0
    %v2290 = vpop.trf.xlu0
    %v2291 = vpop.trf.xlu0
    %v2292 = vpop.trf.xlu0
    %v2293 = vpop.trf.xlu0
    %v2294 = vpop.trf.xlu0
    %v2295 = vpop.trf.xlu0
    %v2296 = vpop.trf.xlu0
    %v2297 = vpop.trf.xlu0
    %v2299 = vsel %vm749, %v2282, 0
    %v2302 = vsel %vm749, %v2283, 0
    %v2305 = vsel %vm749, %v2284, 0
    %v2308 = vsel %vm749, %v2285, 0
    %2310 = vmatprep.subr.mxu0 0.0
    %2311 = vmatpush1.msra.mxu0 %v463
    %2312 = vmatprep.subr.mxu0 0.0
    %2313 = vmatpush1.msra.mxu0 0.0
    %2314 = vmatprep.subr.mxu0 0.0
    %2315 = vmatpush1.msra.mxu0 0.0
    %2316 = vmatprep.subr.mxu0 0.0
    %2317 = vmatpush1.msra.mxu0 0.0
    %2318 = vmatprep.subr.mxu0 0.0
    %2319 = vmatpush1.msra.mxu0 0.0
    %2320 = vmatprep.subr.mxu0 0.0
    %2321 = vmatpush1.msra.mxu0 0.0
    %2322 = vmatprep.subr.mxu0 0.0
    %2323 = vmatpush1.msra.mxu0 0.0
    %2324 = vmatprep.subr.mxu0 0.0
    %2325 = vmatpush1.msra.mxu0 0.0
    %2326 = vmatprep.subr.mxu0 0.0
    %2327 = vmatpush1.msra.mxu0 0.0
    %2328 = vmatprep.subr.mxu0 0.0
    %2329 = vmatpush1.msra.mxu0 0.0
    %2330 = vmatprep.subr.mxu0 0.0
    %2331 = vmatpush1.msra.mxu0 0.0
    %2332 = vmatprep.subr.mxu0 0.0
    %2333 = vmatpush1.msra.mxu0 0.0
    %2334 = vmatprep.subr.mxu0 0.0
    %2335 = vmatpush1.msra.mxu0 0.0
    %2336 = vmatprep.subr.mxu0 0.0
    %2337 = vmatpush1.msra.mxu0 0.0
    %2338 = vmatprep.subr.mxu0 0.0
    %2339 = vmatpush1.msra.mxu0 0.0
    %2340 = vmatprep.subr.mxu0 0.0
    %2341 = vmatpush1.msra.mxu0 0.0
    %2342 = vmatprep.subr.mxu0 0.0
    %2343 = vmatpush1.msra.mxu0 0.0
    %2344 = vmatprep.subr.mxu0 0.0
    %2345 = vmatpush1.msra.mxu0 0.0
    %2346 = vmatprep.subr.mxu0 0.0
    %2347 = vmatpush1.msra.mxu0 0.0
    %2348 = vmatprep.subr.mxu0 0.0
    %2349 = vmatpush1.msra.mxu0 0.0
    %2350 = vmatprep.subr.mxu0 0.0
    %2351 = vmatpush1.msra.mxu0 0.0
    %2352 = vmatprep.subr.mxu0 0.0
    %2353 = vmatpush1.msra.mxu0 0.0
    %2354 = vmatprep.subr.mxu0 0.0
    %2355 = vmatpush1.msra.mxu0 0.0
    %2356 = vmatprep.subr.mxu0 0.0
    %2357 = vmatpush1.msra.mxu0 0.0
    %2358 = vmatprep.subr.mxu0 0.0
    %2359 = vmatpush1.msra.mxu0 0.0
    %2360 = vmatprep.subr.mxu0 0.0
    %2361 = vmatpush1.msra.mxu0 0.0
    %2362 = vmatprep.subr.mxu0 0.0
    %2363 = vmatpush1.msra.mxu0 0.0
    %2364 = vmatprep.subr.mxu0 0.0
    %2365 = vmatpush1.msra.mxu0 0.0
    %2366 = vmatprep.subr.mxu0 0.0
    %2367 = vmatpush1.msra.mxu0 0.0
    %2368 = vmatprep.subr.mxu0 0.0
    %2369 = vmatpush1.msra.mxu0 0.0
    %2370 = vmatprep.subr.mxu0 0.0
    %2371 = vmatpush1.msra.mxu0 0.0
    %2372 = vmatprep.subr.mxu0 0.0
    %2373 = vmatpush1.msra.mxu0 0.0
    %2374 = vmatprep.mubr.f32.mxu0 0.0
    %2375 = vmatmul.mubr.f32.gmra.mrb[0].mxu0 %v2299
    %v2376 = vpop.f32.mrb[0].mxu0
    %v2377 = vadd.f32 0.0, %v2376
    %v2378 = vpop.f32.mrb[0].mxu0
    %2379 = vmatprep.mubr.f32.mxu0 0.0
    %2380 = vmatmul.mubr.f32.gmra.mrb[0].mxu0 %v2302
    %v2381 = vpop.f32.mrb[0].mxu0
    %v2382 = vadd.f32 0.0, %v2381
    %v2383 = vpop.f32.mrb[0].mxu0
    %2384 = vmatprep.mubr.f32.mxu0 0.0
    %2385 = vmatmul.mubr.f32.gmra.mrb[0].mxu0 %v2305
    %v2386 = vpop.f32.mrb[0].mxu0
    %v2387 = vadd.f32 0.0, %v2386
    %v2388 = vpop.f32.mrb[0].mxu0
    %2389 = vmatprep.mubr.f32.mxu0 0.0
    %2390 = vmatmul.mubr.f32.gmra.mrb[0].mxu0 %v2308
    %v2391 = vpop.f32.mrb[0].mxu0
    %v2392 = vadd.f32 0.0, %v2391
    %v2393 = vpop.f32.mrb[0].mxu0
    %2394 = vdwg.mxu0
    %2395 = vxpose.xlu0.b32.start [1/16] %v714, 128
    %2396 = vxpose.xlu0.b32.cont [2/16] 0.0, 128
    %2397 = vxpose.xlu0.b32.cont [3/16] 0.0, 128
    %2398 = vxpose.xlu0.b32.cont [4/16] 0.0, 128
    %2399 = vxpose.xlu0.b32.cont [5/16] 0.0, 128
    %2400 = vxpose.xlu0.b32.cont [6/16] 0.0, 128
    %2401 = vxpose.xlu0.b32.cont [7/16] 0.0, 128
    %2402 = vxpose.xlu0.b32.cont [8/16] 0.0, 128
    %2403 = vxpose.xlu0.b32.cont [9/16] 0.0, 128
    %2404 = vxpose.xlu0.b32.cont [10/16] 0.0, 128
    %2405 = vxpose.xlu0.b32.cont [11/16] 0.0, 128
    %2406 = vxpose.xlu0.b32.cont [12/16] 0.0, 128
    %2407 = vxpose.xlu0.b32.cont [13/16] 0.0, 128
    %2408 = vxpose.xlu0.b32.cont [14/16] 0.0, 128
    %2409 = vxpose.xlu0.b32.cont [15/16] 0.0, 128
    %2410 = vxpose.xlu0.b32.end [16/16] 0.0, 128
    %v2411 = vpop.trf.xlu0
    %v2412 = vpop.trf.xlu0
    %v2413 = vpop.trf.xlu0
    %v2414 = vpop.trf.xlu0
    %v2415 = vpop.trf.xlu0
    %v2416 = vpop.trf.xlu0
    %v2417 = vpop.trf.xlu0
    %v2418 = vpop.trf.xlu0
    %v2419 = vpop.trf.xlu0
    %v2420 = vpop.trf.xlu0
    %v2421 = vpop.trf.xlu0
    %v2422 = vpop.trf.xlu0
    %v2423 = vpop.trf.xlu0
    %v2424 = vpop.trf.xlu0
    %v2425 = vpop.trf.xlu0
    %v2426 = vpop.trf.xlu0
    %v2428 = vsel %vm749, %v2411, 0
    %v2431 = vsel %vm749, %v2412, 0
    %v2434 = vsel %vm749, %v2413, 0
    %v2437 = vsel %vm749, %v2414, 0
    %2439 = vmatprep.subr.mxu0 0.0
    %2440 = vmatpush1.msra.mxu0 %v468
    %2441 = vmatprep.subr.mxu0 0.0
    %2442 = vmatpush1.msra.mxu0 0.0
    %2443 = vmatprep.subr.mxu0 0.0
    %2444 = vmatpush1.msra.mxu0 0.0
    %2445 = vmatprep.subr.mxu0 0.0
    %2446 = vmatpush1.msra.mxu0 0.0
    %2447 = vmatprep.subr.mxu0 0.0
    %2448 = vmatpush1.msra.mxu0 0.0
    %2449 = vmatprep.subr.mxu0 0.0
    %2450 = vmatpush1.msra.mxu0 0.0
    %2451 = vmatprep.subr.mxu0 0.0
    %2452 = vmatpush1.msra.mxu0 0.0
    %2453 = vmatprep.subr.mxu0 0.0
    %2454 = vmatpush1.msra.mxu0 0.0
    %2455 = vmatprep.subr.mxu0 0.0
    %2456 = vmatpush1.msra.mxu0 0.0
    %2457 = vmatprep.subr.mxu0 0.0
    %2458 = vmatpush1.msra.mxu0 0.0
    %2459 = vmatprep.subr.mxu0 0.0
    %2460 = vmatpush1.msra.mxu0 0.0
    %2461 = vmatprep.subr.mxu0 0.0
    %2462 = vmatpush1.msra.mxu0 0.0
    %2463 = vmatprep.subr.mxu0 0.0
    %2464 = vmatpush1.msra.mxu0 0.0
    %2465 = vmatprep.subr.mxu0 0.0
    %2466 = vmatpush1.msra.mxu0 0.0
    %2467 = vmatprep.subr.mxu0 0.0
    %2468 = vmatpush1.msra.mxu0 0.0
    %2469 = vmatprep.subr.mxu0 0.0
    %2470 = vmatpush1.msra.mxu0 0.0
    %2471 = vmatprep.subr.mxu0 0.0
    %2472 = vmatpush1.msra.mxu0 0.0
    %2473 = vmatprep.subr.mxu0 0.0
    %2474 = vmatpush1.msra.mxu0 0.0
    %2475 = vmatprep.subr.mxu0 0.0
    %2476 = vmatpush1.msra.mxu0 0.0
    %2477 = vmatprep.subr.mxu0 0.0
    %2478 = vmatpush1.msra.mxu0 0.0
    %2479 = vmatprep.subr.mxu0 0.0
    %2480 = vmatpush1.msra.mxu0 0.0
    %2481 = vmatprep.subr.mxu0 0.0
    %2482 = vmatpush1.msra.mxu0 0.0
    %2483 = vmatprep.subr.mxu0 0.0
    %2484 = vmatpush1.msra.mxu0 0.0
    %2485 = vmatprep.subr.mxu0 0.0
    %2486 = vmatpush1.msra.mxu0 0.0
    %2487 = vmatprep.subr.mxu0 0.0
    %2488 = vmatpush1.msra.mxu0 0.0
    %2489 = vmatprep.subr.mxu0 0.0
    %2490 = vmatpush1.msra.mxu0 0.0
    %2491 = vmatprep.subr.mxu0 0.0
    %2492 = vmatpush1.msra.mxu0 0.0
    %2493 = vmatprep.subr.mxu0 0.0
    %2494 = vmatpush1.msra.mxu0 0.0
    %2495 = vmatprep.subr.mxu0 0.0
    %2496 = vmatpush1.msra.mxu0 0.0
    %2497 = vmatprep.subr.mxu0 0.0
    %2498 = vmatpush1.msra.mxu0 0.0
    %2499 = vmatprep.subr.mxu0 0.0
    %2500 = vmatpush1.msra.mxu0 0.0
    %2501 = vmatprep.subr.mxu0 0.0
    %2502 = vmatpush1.msra.mxu0 0.0
    %2503 = vmatprep.mubr.f32.mxu0 0.0
    %2504 = vmatmul.mubr.f32.gmra.mrb[0].mxu0 %v2428
    %v2505 = vpop.f32.mrb[0].mxu0
    %v2506 = vadd.f32 0.0, %v2505
    %v2507 = vpop.f32.mrb[0].mxu0
    %2508 = vmatprep.mubr.f32.mxu0 0.0
    %2509 = vmatmul.mubr.f32.gmra.mrb[0].mxu0 %v2431
    %v2510 = vpop.f32.mrb[0].mxu0
    %v2511 = vadd.f32 0.0, %v2510
    %v2512 = vpop.f32.mrb[0].mxu0
    %2513 = vmatprep.mubr.f32.mxu0 0.0
    %2514 = vmatmul.mubr.f32.gmra.mrb[0].mxu0 %v2434
    %v2515 = vpop.f32.mrb[0].mxu0
    %v2516 = vadd.f32 0.0, %v2515
    %v2517 = vpop.f32.mrb[0].mxu0
    %2518 = vmatprep.mubr.f32.mxu0 0.0
    %2519 = vmatmul.mubr.f32.gmra.mrb[0].mxu0 %v2437
    %v2520 = vpop.f32.mrb[0].mxu0
    %v2521 = vadd.f32 0.0, %v2520
    %v2522 = vpop.f32.mrb[0].mxu0
    %2523 = vdwg.mxu0
    %2524 = vxpose.xlu0.b32.start [1/16] %v715, 128
    %2525 = vxpose.xlu0.b32.cont [2/16] 0.0, 128
    %2526 = vxpose.xlu0.b32.cont [3/16] 0.0, 128
    %2527 = vxpose.xlu0.b32.cont [4/16] 0.0, 128
    %2528 = vxpose.xlu0.b32.cont [5/16] 0.0, 128
    %2529 = vxpose.xlu0.b32.cont [6/16] 0.0, 128
    %2530 = vxpose.xlu0.b32.cont [7/16] 0.0, 128
    %2531 = vxpose.xlu0.b32.cont [8/16] 0.0, 128
    %2532 = vxpose.xlu0.b32.cont [9/16] 0.0, 128
    %2533 = vxpose.xlu0.b32.cont [10/16] 0.0, 128
    %2534 = vxpose.xlu0.b32.cont [11/16] 0.0, 128
    %2535 = vxpose.xlu0.b32.cont [12/16] 0.0, 128
    %2536 = vxpose.xlu0.b32.cont [13/16] 0.0, 128
    %2537 = vxpose.xlu0.b32.cont [14/16] 0.0, 128
    %2538 = vxpose.xlu0.b32.cont [15/16] 0.0, 128
    %2539 = vxpose.xlu0.b32.end [16/16] 0.0, 128
    %v2540 = vpop.trf.xlu0
    %v2541 = vpop.trf.xlu0
    %v2542 = vpop.trf.xlu0
    %v2543 = vpop.trf.xlu0
    %v2544 = vpop.trf.xlu0
    %v2545 = vpop.trf.xlu0
    %v2546 = vpop.trf.xlu0
    %v2547 = vpop.trf.xlu0
    %v2548 = vpop.trf.xlu0
    %v2549 = vpop.trf.xlu0
    %v2550 = vpop.trf.xlu0
    %v2551 = vpop.trf.xlu0
    %v2552 = vpop.trf.xlu0
    %v2553 = vpop.trf.xlu0
    %v2554 = vpop.trf.xlu0
    %v2555 = vpop.trf.xlu0
    %v2557 = vsel %vm749, %v2540, 0
    %v2560 = vsel %vm749, %v2541, 0
    %v2563 = vsel %vm749, %v2542, 0
    %v2566 = vsel %vm749, %v2543, 0
    %2568 = vmatprep.subr.mxu0 0.0
    %2569 = vmatpush1.msra.mxu0 %v473
    %2570 = vmatprep.subr.mxu0 0.0
    %2571 = vmatpush1.msra.mxu0 0.0
    %2572 = vmatprep.subr.mxu0 0.0
    %2573 = vmatpush1.msra.mxu0 0.0
    %2574 = vmatprep.subr.mxu0 0.0
    %2575 = vmatpush1.msra.mxu0 0.0
    %2576 = vmatprep.subr.mxu0 0.0
    %2577 = vmatpush1.msra.mxu0 0.0
    %2578 = vmatprep.subr.mxu0 0.0
    %2579 = vmatpush1.msra.mxu0 0.0
    %2580 = vmatprep.subr.mxu0 0.0
    %2581 = vmatpush1.msra.mxu0 0.0
    %2582 = vmatprep.subr.mxu0 0.0
    %2583 = vmatpush1.msra.mxu0 0.0
    %2584 = vmatprep.subr.mxu0 0.0
    %2585 = vmatpush1.msra.mxu0 0.0
    %2586 = vmatprep.subr.mxu0 0.0
    %2587 = vmatpush1.msra.mxu0 0.0
    %2588 = vmatprep.subr.mxu0 0.0
    %2589 = vmatpush1.msra.mxu0 0.0
    %2590 = vmatprep.subr.mxu0 0.0
    %2591 = vmatpush1.msra.mxu0 0.0
    %2592 = vmatprep.subr.mxu0 0.0
    %2593 = vmatpush1.msra.mxu0 0.0
    %2594 = vmatprep.subr.mxu0 0.0
    %2595 = vmatpush1.msra.mxu0 0.0
    %2596 = vmatprep.subr.mxu0 0.0
    %2597 = vmatpush1.msra.mxu0 0.0
    %2598 = vmatprep.subr.mxu0 0.0
    %2599 = vmatpush1.msra.mxu0 0.0
    %2600 = vmatprep.subr.mxu0 0.0
    %2601 = vmatpush1.msra.mxu0 0.0
    %2602 = vmatprep.subr.mxu0 0.0
    %2603 = vmatpush1.msra.mxu0 0.0
    %2604 = vmatprep.subr.mxu0 0.0
    %2605 = vmatpush1.msra.mxu0 0.0
    %2606 = vmatprep.subr.mxu0 0.0
    %2607 = vmatpush1.msra.mxu0 0.0
    %2608 = vmatprep.subr.mxu0 0.0
    %2609 = vmatpush1.msra.mxu0 0.0
    %2610 = vmatprep.subr.mxu0 0.0
    %2611 = vmatpush1.msra.mxu0 0.0
    %2612 = vmatprep.subr.mxu0 0.0
    %2613 = vmatpush1.msra.mxu0 0.0
    %2614 = vmatprep.subr.mxu0 0.0
    %2615 = vmatpush1.msra.mxu0 0.0
    %2616 = vmatprep.subr.mxu0 0.0
    %2617 = vmatpush1.msra.mxu0 0.0
    %2618 = vmatprep.subr.mxu0 0.0
    %2619 = vmatpush1.msra.mxu0 0.0
    %2620 = vmatprep.subr.mxu0 0.0
    %2621 = vmatpush1.msra.mxu0 0.0
    %2622 = vmatprep.subr.mxu0 0.0
    %2623 = vmatpush1.msra.mxu0 0.0
    %2624 = vmatprep.subr.mxu0 0.0
    %2625 = vmatpush1.msra.mxu0 0.0
    %2626 = vmatprep.subr.mxu0 0.0
    %2627 = vmatpush1.msra.mxu0 0.0
    %2628 = vmatprep.subr.mxu0 0.0
    %2629 = vmatpush1.msra.mxu0 0.0
    %2630 = vmatprep.subr.mxu0 0.0
    %2631 = vmatpush1.msra.mxu0 0.0
    %2632 = vmatprep.mubr.f32.mxu0 0.0
    %2633 = vmatmul.mubr.f32.gmra.mrb[0].mxu0 %v2557
    %v2634 = vpop.f32.mrb[0].mxu0
    %v2635 = vadd.f32 0.0, %v2634
    %v2636 = vpop.f32.mrb[0].mxu0
    %2637 = vmatprep.mubr.f32.mxu0 0.0
    %2638 = vmatmul.mubr.f32.gmra.mrb[0].mxu0 %v2560
    %v2639 = vpop.f32.mrb[0].mxu0
    %v2640 = vadd.f32 0.0, %v2639
    %v2641 = vpop.f32.mrb[0].mxu0
    %2642 = vmatprep.mubr.f32.mxu0 0.0
    %2643 = vmatmul.mubr.f32.gmra.mrb[0].mxu0 %v2563
    %v2644 = vpop.f32.mrb[0].mxu0
    %v2645 = vadd.f32 0.0, %v2644
    %v2646 = vpop.f32.mrb[0].mxu0
    %2647 = vmatprep.mubr.f32.mxu0 0.0
    %2648 = vmatmul.mubr.f32.gmra.mrb[0].mxu0 %v2566
    %v2649 = vpop.f32.mrb[0].mxu0
    %v2650 = vadd.f32 0.0, %v2649
    %v2651 = vpop.f32.mrb[0].mxu0
    %2652 = vdwg.mxu0
    %2653 = vxpose.xlu0.b32.start [1/16] %v716, 128
    %2654 = vxpose.xlu0.b32.cont [2/16] 0.0, 128
    %2655 = vxpose.xlu0.b32.cont [3/16] 0.0, 128
    %2656 = vxpose.xlu0.b32.cont [4/16] 0.0, 128
    %2657 = vxpose.xlu0.b32.cont [5/16] 0.0, 128
    %2658 = vxpose.xlu0.b32.cont [6/16] 0.0, 128
    %2659 = vxpose.xlu0.b32.cont [7/16] 0.0, 128
    %2660 = vxpose.xlu0.b32.cont [8/16] 0.0, 128
    %2661 = vxpose.xlu0.b32.cont [9/16] 0.0, 128
    %2662 = vxpose.xlu0.b32.cont [10/16] 0.0, 128
    %2663 = vxpose.xlu0.b32.cont [11/16] 0.0, 128
    %2664 = vxpose.xlu0.b32.cont [12/16] 0.0, 128
    %2665 = vxpose.xlu0.b32.cont [13/16] 0.0, 128
    %2666 = vxpose.xlu0.b32.cont [14/16] 0.0, 128
    %2667 = vxpose.xlu0.b32.cont [15/16] 0.0, 128
    %2668 = vxpose.xlu0.b32.end [16/16] 0.0, 128
    %v2669 = vpop.trf.xlu0
    %v2670 = vpop.trf.xlu0
    %v2671 = vpop.trf.xlu0
    %v2672 = vpop.trf.xlu0
    %v2673 = vpop.trf.xlu0
    %v2674 = vpop.trf.xlu0
    %v2675 = vpop.trf.xlu0
    %v2676 = vpop.trf.xlu0
    %v2677 = vpop.trf.xlu0
    %v2678 = vpop.trf.xlu0
    %v2679 = vpop.trf.xlu0
    %v2680 = vpop.trf.xlu0
    %v2681 = vpop.trf.xlu0
    %v2682 = vpop.trf.xlu0
    %v2683 = vpop.trf.xlu0
    %v2684 = vpop.trf.xlu0
    %v2686 = vsel %vm749, %v2669, 0
    %v2689 = vsel %vm749, %v2670, 0
    %v2692 = vsel %vm749, %v2671, 0
    %v2695 = vsel %vm749, %v2672, 0
    %2697 = vmatprep.subr.mxu0 0.0
    %2698 = vmatpush1.msra.mxu0 %v478
    %2699 = vmatprep.subr.mxu0 0.0
    %2700 = vmatpush1.msra.mxu0 0.0
    %2701 = vmatprep.subr.mxu0 0.0
    %2702 = vmatpush1.msra.mxu0 0.0
    %2703 = vmatprep.subr.mxu0 0.0
    %2704 = vmatpush1.msra.mxu0 0.0
    %2705 = vmatprep.subr.mxu0 0.0
    %2706 = vmatpush1.msra.mxu0 0.0
    %2707 = vmatprep.subr.mxu0 0.0
    %2708 = vmatpush1.msra.mxu0 0.0
    %2709 = vmatprep.subr.mxu0 0.0
    %2710 = vmatpush1.msra.mxu0 0.0
    %2711 = vmatprep.subr.mxu0 0.0
    %2712 = vmatpush1.msra.mxu0 0.0
    %2713 = vmatprep.subr.mxu0 0.0
    %2714 = vmatpush1.msra.mxu0 0.0
    %2715 = vmatprep.subr.mxu0 0.0
    %2716 = vmatpush1.msra.mxu0 0.0
    %2717 = vmatprep.subr.mxu0 0.0
    %2718 = vmatpush1.msra.mxu0 0.0
    %2719 = vmatprep.subr.mxu0 0.0
    %2720 = vmatpush1.msra.mxu0 0.0
    %2721 = vmatprep.subr.mxu0 0.0
    %2722 = vmatpush1.msra.mxu0 0.0
    %2723 = vmatprep.subr.mxu0 0.0
    %2724 = vmatpush1.msra.mxu0 0.0
    %2725 = vmatprep.subr.mxu0 0.0
    %2726 = vmatpush1.msra.mxu0 0.0
    %2727 = vmatprep.subr.mxu0 0.0
    %2728 = vmatpush1.msra.mxu0 0.0
    %2729 = vmatprep.subr.mxu0 0.0
    %2730 = vmatpush1.msra.mxu0 0.0
    %2731 = vmatprep.subr.mxu0 0.0
    %2732 = vmatpush1.msra.mxu0 0.0
    %2733 = vmatprep.subr.mxu0 0.0
    %2734 = vmatpush1.msra.mxu0 0.0
    %2735 = vmatprep.subr.mxu0 0.0
    %2736 = vmatpush1.msra.mxu0 0.0
    %2737 = vmatprep.subr.mxu0 0.0
    %2738 = vmatpush1.msra.mxu0 0.0
    %2739 = vmatprep.subr.mxu0 0.0
    %2740 = vmatpush1.msra.mxu0 0.0
    %2741 = vmatprep.subr.mxu0 0.0
    %2742 = vmatpush1.msra.mxu0 0.0
    %2743 = vmatprep.subr.mxu0 0.0
    %2744 = vmatpush1.msra.mxu0 0.0
    %2745 = vmatprep.subr.mxu0 0.0
    %2746 = vmatpush1.msra.mxu0 0.0
    %2747 = vmatprep.subr.mxu0 0.0
    %2748 = vmatpush1.msra.mxu0 0.0
    %2749 = vmatprep.subr.mxu0 0.0
    %2750 = vmatpush1.msra.mxu0 0.0
    %2751 = vmatprep.subr.mxu0 0.0
    %2752 = vmatpush1.msra.mxu0 0.0
    %2753 = vmatprep.subr.mxu0 0.0
    %2754 = vmatpush1.msra.mxu0 0.0
    %2755 = vmatprep.subr.mxu0 0.0
    %2756 = vmatpush1.msra.mxu0 0.0
    %2757 = vmatprep.subr.mxu0 0.0
    %2758 = vmatpush1.msra.mxu0 0.0
    %2759 = vmatprep.subr.mxu0 0.0
    %2760 = vmatpush1.msra.mxu0 0.0
    %2761 = vmatprep.mubr.f32.mxu0 0.0
    %2762 = vmatmul.mubr.f32.gmra.mrb[0].mxu0 %v2686
    %v2763 = vpop.f32.mrb[0].mxu0
    %v2764 = vadd.f32 0.0, %v2763
    %v2765 = vpop.f32.mrb[0].mxu0
    %2766 = vmatprep.mubr.f32.mxu0 0.0
    %2767 = vmatmul.mubr.f32.gmra.mrb[0].mxu0 %v2689
    %v2768 = vpop.f32.mrb[0].mxu0
    %v2769 = vadd.f32 0.0, %v2768
    %v2770 = vpop.f32.mrb[0].mxu0
    %2771 = vmatprep.mubr.f32.mxu0 0.0
    %2772 = vmatmul.mubr.f32.gmra.mrb[0].mxu0 %v2692
    %v2773 = vpop.f32.mrb[0].mxu0
    %v2774 = vadd.f32 0.0, %v2773
    %v2775 = vpop.f32.mrb[0].mxu0
    %2776 = vmatprep.mubr.f32.mxu0 0.0
    %2777 = vmatmul.mubr.f32.gmra.mrb[0].mxu0 %v2695
    %v2778 = vpop.f32.mrb[0].mxu0
    %v2779 = vadd.f32 0.0, %v2778
    %v2780 = vpop.f32.mrb[0].mxu0
    %2781 = vdwg.mxu0
    %v2782 = vsel %vm287, %v829, -inf
    %2783 = vmax.xlane.f32.xlu0 %v2782
    %v2784 = vpop.xlane.xlu0 %2783
    %v2785 = vsel %vm287, %v834, -inf
    %2786 = vmax.xlane.f32.xlu0 %v2785
    %v2787 = vpop.xlane.xlu0 %2786
    %v2788 = vsel %vm287, %v839, -inf
    %2789 = vmax.xlane.f32.xlu0 %v2788
    %v2790 = vpop.xlane.xlu0 %2789
    %v2791 = vsel %vm287, %v844, -inf
    %2792 = vmax.xlane.f32.xlu0 %v2791
    %v2793 = vpop.xlane.xlu0 %2792
    %v2794 = vsel %vm287, %v958, -inf
    %2795 = vmax.xlane.f32.xlu0 %v2794
    %v2796 = vpop.xlane.xlu0 %2795
    %v2797 = vsel %vm287, %v963, -inf
    %2798 = vmax.xlane.f32.xlu0 %v2797
    %v2799 = vpop.xlane.xlu0 %2798
    %v2800 = vsel %vm287, %v968, -inf
    %2801 = vmax.xlane.f32.xlu0 %v2800
    %v2802 = vpop.xlane.xlu0 %2801
    %v2803 = vsel %vm287, %v973, -inf
    %2804 = vmax.xlane.f32.xlu0 %v2803
    %v2805 = vpop.xlane.xlu0 %2804
    %v2806 = vsel %vm287, %v1087, -inf
    %2807 = vmax.xlane.f32.xlu0 %v2806
    %v2808 = vpop.xlane.xlu0 %2807
    %v2809 = vsel %vm287, %v1092, -inf
    %2810 = vmax.xlane.f32.xlu0 %v2809
    %v2811 = vpop.xlane.xlu0 %2810
    %v2812 = vsel %vm287, %v1097, -inf
    %2813 = vmax.xlane.f32.xlu0 %v2812
    %v2814 = vpop.xlane.xlu0 %2813
    %v2815 = vsel %vm287, %v1102, -inf
    %2816 = vmax.xlane.f32.xlu0 %v2815
    %v2817 = vpop.xlane.xlu0 %2816
    %v2818 = vsel %vm287, %v1216, -inf
    %2819 = vmax.xlane.f32.xlu0 %v2818
    %v2820 = vpop.xlane.xlu0 %2819
    %v2821 = vsel %vm287, %v1221, -inf
    %2822 = vmax.xlane.f32.xlu0 %v2821
    %v2823 = vpop.xlane.xlu0 %2822
    %v2824 = vsel %vm287, %v1226, -inf
    %2825 = vmax.xlane.f32.xlu0 %v2824
    %v2826 = vpop.xlane.xlu0 %2825
    %v2827 = vsel %vm287, %v1231, -inf
    %2828 = vmax.xlane.f32.xlu0 %v2827
    %v2829 = vpop.xlane.xlu0 %2828
    %v2830 = vsel %vm287, %v1345, -inf
    %2831 = vmax.xlane.f32.xlu0 %v2830
    %v2832 = vpop.xlane.xlu0 %2831
    %v2833 = vsel %vm287, %v1350, -inf
    %2834 = vmax.xlane.f32.xlu0 %v2833
    %v2835 = vpop.xlane.xlu0 %2834
    %v2836 = vsel %vm287, %v1355, -inf
    %2837 = vmax.xlane.f32.xlu0 %v2836
    %v2838 = vpop.xlane.xlu0 %2837
    %v2839 = vsel %vm287, %v1360, -inf
    %2840 = vmax.xlane.f32.xlu0 %v2839
    %v2841 = vpop.xlane.xlu0 %2840
    %v2842 = vsel %vm287, %v1474, -inf
    %2843 = vmax.xlane.f32.xlu0 %v2842
    %v2844 = vpop.xlane.xlu0 %2843
    %v2845 = vsel %vm287, %v1479, -inf
    %2846 = vmax.xlane.f32.xlu0 %v2845
    %v2847 = vpop.xlane.xlu0 %2846
    %v2848 = vsel %vm287, %v1484, -inf
    %2849 = vmax.xlane.f32.xlu0 %v2848
    %v2850 = vpop.xlane.xlu0 %2849
    %v2851 = vsel %vm287, %v1489, -inf
    %2852 = vmax.xlane.f32.xlu0 %v2851
    %v2853 = vpop.xlane.xlu0 %2852
    %v2854 = vsel %vm287, %v1603, -inf
    %2855 = vmax.xlane.f32.xlu0 %v2854
    %v2856 = vpop.xlane.xlu0 %2855
    %v2857 = vsel %vm287, %v1608, -inf
    %2858 = vmax.xlane.f32.xlu0 %v2857
    %v2859 = vpop.xlane.xlu0 %2858
    %v2860 = vsel %vm287, %v1613, -inf
    %2861 = vmax.xlane.f32.xlu0 %v2860
    %v2862 = vpop.xlane.xlu0 %2861
    %v2863 = vsel %vm287, %v1618, -inf
    %2864 = vmax.xlane.f32.xlu0 %v2863
    %v2865 = vpop.xlane.xlu0 %2864
    %v2866 = vsel %vm287, %v1732, -inf
    %2867 = vmax.xlane.f32.xlu0 %v2866
    %v2868 = vpop.xlane.xlu0 %2867
    %v2869 = vsel %vm287, %v1737, -inf
    %2870 = vmax.xlane.f32.xlu0 %v2869
    %v2871 = vpop.xlane.xlu0 %2870
    %v2872 = vsel %vm287, %v1742, -inf
    %2873 = vmax.xlane.f32.xlu0 %v2872
    %v2874 = vpop.xlane.xlu0 %2873
    %v2875 = vsel %vm287, %v1747, -inf
    %2876 = vmax.xlane.f32.xlu0 %v2875
    %v2877 = vpop.xlane.xlu0 %2876
    %v2878 = vsel %vm287, %v1861, -inf
    %2879 = vmax.xlane.f32.xlu0 %v2878
    %v2880 = vpop.xlane.xlu0 %2879
    %v2881 = vsel %vm287, %v1866, -inf
    %2882 = vmax.xlane.f32.xlu0 %v2881
    %v2883 = vpop.xlane.xlu0 %2882
    %v2884 = vsel %vm287, %v1871, -inf
    %2885 = vmax.xlane.f32.xlu0 %v2884
    %v2886 = vpop.xlane.xlu0 %2885
    %v2887 = vsel %vm287, %v1876, -inf
    %2888 = vmax.xlane.f32.xlu0 %v2887
    %v2889 = vpop.xlane.xlu0 %2888
    %v2890 = vsel %vm287, %v1990, -inf
    %2891 = vmax.xlane.f32.xlu0 %v2890
    %v2892 = vpop.xlane.xlu0 %2891
    %v2893 = vsel %vm287, %v1995, -inf
    %2894 = vmax.xlane.f32.xlu0 %v2893
    %v2895 = vpop.xlane.xlu0 %2894
    %v2896 = vsel %vm287, %v2000, -inf
    %2897 = vmax.xlane.f32.xlu0 %v2896
    %v2898 = vpop.xlane.xlu0 %2897
    %v2899 = vsel %vm287, %v2005, -inf
    %2900 = vmax.xlane.f32.xlu0 %v2899
    %v2901 = vpop.xlane.xlu0 %2900
    %v2902 = vsel %vm287, %v2119, -inf
    %2903 = vmax.xlane.f32.xlu0 %v2902
    %v2904 = vpop.xlane.xlu0 %2903
    %v2905 = vsel %vm287, %v2124, -inf
    %2906 = vmax.xlane.f32.xlu0 %v2905
    %v2907 = vpop.xlane.xlu0 %2906
    %v2908 = vsel %vm287, %v2129, -inf
    %2909 = vmax.xlane.f32.xlu0 %v2908
    %v2910 = vpop.xlane.xlu0 %2909
    %v2911 = vsel %vm287, %v2134, -inf
    %2912 = vmax.xlane.f32.xlu0 %v2911
    %v2913 = vpop.xlane.xlu0 %2912
    %v2914 = vsel %vm287, %v2248, -inf
    %2915 = vmax.xlane.f32.xlu0 %v2914
    %v2916 = vpop.xlane.xlu0 %2915
    %v2917 = vsel %vm287, %v2253, -inf
    %2918 = vmax.xlane.f32.xlu0 %v2917
    %v2919 = vpop.xlane.xlu0 %2918
    %v2920 = vsel %vm287, %v2258, -inf
    %2921 = vmax.xlane.f32.xlu0 %v2920
    %v2922 = vpop.xlane.xlu0 %2921
    %v2923 = vsel %vm287, %v2263, -inf
    %2924 = vmax.xlane.f32.xlu0 %v2923
    %v2925 = vpop.xlane.xlu0 %2924
    %v2926 = vsel %vm287, %v2377, -inf
    %2927 = vmax.xlane.f32.xlu0 %v2926
    %v2928 = vpop.xlane.xlu0 %2927
    %v2929 = vsel %vm287, %v2382, -inf
    %2930 = vmax.xlane.f32.xlu0 %v2929
    %v2931 = vpop.xlane.xlu0 %2930
    %v2932 = vsel %vm287, %v2387, -inf
    %2933 = vmax.xlane.f32.xlu0 %v2932
    %v2934 = vpop.xlane.xlu0 %2933
    %v2935 = vsel %vm287, %v2392, -inf
    %2936 = vmax.xlane.f32.xlu0 %v2935
    %v2937 = vpop.xlane.xlu0 %2936
    %v2938 = vsel %vm287, %v2506, -inf
    %2939 = vmax.xlane.f32.xlu0 %v2938
    %v2940 = vpop.xlane.xlu0 %2939
    %v2941 = vsel %vm287, %v2511, -inf
    %2942 = vmax.xlane.f32.xlu0 %v2941
    %v2943 = vpop.xlane.xlu0 %2942
    %v2944 = vsel %vm287, %v2516, -inf
    %2945 = vmax.xlane.f32.xlu0 %v2944
    %v2946 = vpop.xlane.xlu0 %2945
    %v2947 = vsel %vm287, %v2521, -inf
    %2948 = vmax.xlane.f32.xlu0 %v2947
    %v2949 = vpop.xlane.xlu0 %2948
    %v2950 = vsel %vm287, %v2635, -inf
    %2951 = vmax.xlane.f32.xlu0 %v2950
    %v2952 = vpop.xlane.xlu0 %2951
    %v2953 = vsel %vm287, %v2640, -inf
    %2954 = vmax.xlane.f32.xlu0 %v2953
    %v2955 = vpop.xlane.xlu0 %2954
    %v2956 = vsel %vm287, %v2645, -inf
    %2957 = vmax.xlane.f32.xlu0 %v2956
    %v2958 = vpop.xlane.xlu0 %2957
    %v2959 = vsel %vm287, %v2650, -inf
    %2960 = vmax.xlane.f32.xlu0 %v2959
    %v2961 = vpop.xlane.xlu0 %2960
    %v2962 = vsel %vm287, %v2764, -inf
    %2963 = vmax.xlane.f32.xlu0 %v2962
    %v2964 = vpop.xlane.xlu0 %2963
    %v2965 = vsel %vm287, %v2769, -inf
    %2966 = vmax.xlane.f32.xlu0 %v2965
    %v2967 = vpop.xlane.xlu0 %2966
    %v2968 = vsel %vm287, %v2774, -inf
    %2969 = vmax.xlane.f32.xlu0 %v2968
    %v2970 = vpop.xlane.xlu0 %2969
    %v2971 = vsel %vm287, %v2779, -inf
    %2972 = vmax.xlane.f32.xlu0 %v2971
    %v2973 = vpop.xlane.xlu0 %2972
    %v2974 = vsub.f32 %v829, %v2784
    %v2975 = vsub.f32 %v834, %v2787
    %v2976 = vsub.f32 %v839, %v2790
    %v2977 = vsub.f32 %v844, %v2793
    %v2978 = vsub.f32 %v958, %v2796
    %v2979 = vsub.f32 %v963, %v2799
    %v2980 = vsub.f32 %v968, %v2802
    %v2981 = vsub.f32 %v973, %v2805
    %v2982 = vsub.f32 %v1087, %v2808
    %v2983 = vsub.f32 %v1092, %v2811
    %v2984 = vsub.f32 %v1097, %v2814
    %v2985 = vsub.f32 %v1102, %v2817
    %v2986 = vsub.f32 %v1216, %v2820
    %v2987 = vsub.f32 %v1221, %v2823
    %v2988 = vsub.f32 %v1226, %v2826
    %v2989 = vsub.f32 %v1231, %v2829
    %v2990 = vsub.f32 %v1345, %v2832
    %v2991 = vsub.f32 %v1350, %v2835
    %v2992 = vsub.f32 %v1355, %v2838
    %v2993 = vsub.f32 %v1360, %v2841
    %v2994 = vsub.f32 %v1474, %v2844
    %v2995 = vsub.f32 %v1479, %v2847
    %v2996 = vsub.f32 %v1484, %v2850
    %v2997 = vsub.f32 %v1489, %v2853
    %v2998 = vsub.f32 %v1603, %v2856
    %v2999 = vsub.f32 %v1608, %v2859
    %v3000 = vsub.f32 %v1613, %v2862
    %v3001 = vsub.f32 %v1618, %v2865
    %v3002 = vsub.f32 %v1732, %v2868
    %v3003 = vsub.f32 %v1737, %v2871
    %v3004 = vsub.f32 %v1742, %v2874
    %v3005 = vsub.f32 %v1747, %v2877
    %v3006 = vsub.f32 %v1861, %v2880
    %v3007 = vsub.f32 %v1866, %v2883
    %v3008 = vsub.f32 %v1871, %v2886
    %v3009 = vsub.f32 %v1876, %v2889
    %v3010 = vsub.f32 %v1990, %v2892
    %v3011 = vsub.f32 %v1995, %v2895
    %v3012 = vsub.f32 %v2000, %v2898
    %v3013 = vsub.f32 %v2005, %v2901
    %v3014 = vsub.f32 %v2119, %v2904
    %v3015 = vsub.f32 %v2124, %v2907
    %v3016 = vsub.f32 %v2129, %v2910
    %v3017 = vsub.f32 %v2134, %v2913
    %v3018 = vsub.f32 %v2248, %v2916
    %v3019 = vsub.f32 %v2253, %v2919
    %v3020 = vsub.f32 %v2258, %v2922
    %v3021 = vsub.f32 %v2263, %v2925
    %v3022 = vsub.f32 %v2377, %v2928
    %v3023 = vsub.f32 %v2382, %v2931
    %v3024 = vsub.f32 %v2387, %v2934
    %v3025 = vsub.f32 %v2392, %v2937
    %v3026 = vsub.f32 %v2506, %v2940
    %v3027 = vsub.f32 %v2511, %v2943
    %v3028 = vsub.f32 %v2516, %v2946
    %v3029 = vsub.f32 %v2521, %v2949
    %v3030 = vsub.f32 %v2635, %v2952
    %v3031 = vsub.f32 %v2640, %v2955
    %v3032 = vsub.f32 %v2645, %v2958
    %v3033 = vsub.f32 %v2650, %v2961
    %v3034 = vsub.f32 %v2764, %v2964
    %v3035 = vsub.f32 %v2769, %v2967
    %v3036 = vsub.f32 %v2774, %v2970
    %v3037 = vsub.f32 %v2779, %v2973
    %v3038 = vmul.f32 %v2974, 1.442695
    %v3039 = vpow.pop %v3038
    %v3040 = vmul.f32 %v2975, 1.442695
    %v3041 = vpow.pop %v3040
    %v3042 = vmul.f32 %v2976, 1.442695
    %v3043 = vpow.pop %v3042
    %v3044 = vmul.f32 %v2977, 1.442695
    %v3045 = vpow.pop %v3044
    %v3046 = vmul.f32 %v2978, 1.442695
    %v3047 = vpow.pop %v3046
    %v3048 = vmul.f32 %v2979, 1.442695
    %v3049 = vpow.pop %v3048
    %v3050 = vmul.f32 %v2980, 1.442695
    %v3051 = vpow.pop %v3050
    %v3052 = vmul.f32 %v2981, 1.442695
    %v3053 = vpow.pop %v3052
    %v3054 = vmul.f32 %v2982, 1.442695
    %v3055 = vpow.pop %v3054
    %v3056 = vmul.f32 %v2983, 1.442695
    %v3057 = vpow.pop %v3056
    %v3058 = vmul.f32 %v2984, 1.442695
    %v3059 = vpow.pop %v3058
    %v3060 = vmul.f32 %v2985, 1.442695
    %v3061 = vpow.pop %v3060
    %v3062 = vmul.f32 %v2986, 1.442695
    %v3063 = vpow.pop %v3062
    %v3064 = vmul.f32 %v2987, 1.442695
    %v3065 = vpow.pop %v3064
    %v3066 = vmul.f32 %v2988, 1.442695
    %v3067 = vpow.pop %v3066
    %v3068 = vmul.f32 %v2989, 1.442695
    %v3069 = vpow.pop %v3068
    %v3070 = vmul.f32 %v2990, 1.442695
    %v3071 = vpow.pop %v3070
    %v3072 = vmul.f32 %v2991, 1.442695
    %v3073 = vpow.pop %v3072
    %v3074 = vmul.f32 %v2992, 1.442695
    %v3075 = vpow.pop %v3074
    %v3076 = vmul.f32 %v2993, 1.442695
    %v3077 = vpow.pop %v3076
    %v3078 = vmul.f32 %v2994, 1.442695
    %v3079 = vpow.pop %v3078
    %v3080 = vmul.f32 %v2995, 1.442695
    %v3081 = vpow.pop %v3080
    %v3082 = vmul.f32 %v2996, 1.442695
    %v3083 = vpow.pop %v3082
    %v3084 = vmul.f32 %v2997, 1.442695
    %v3085 = vpow.pop %v3084
    %v3086 = vmul.f32 %v2998, 1.442695
    %v3087 = vpow.pop %v3086
    %v3088 = vmul.f32 %v2999, 1.442695
    %v3089 = vpow.pop %v3088
    %v3090 = vmul.f32 %v3000, 1.442695
    %v3091 = vpow.pop %v3090
    %v3092 = vmul.f32 %v3001, 1.442695
    %v3093 = vpow.pop %v3092
    %v3094 = vmul.f32 %v3002, 1.442695
    %v3095 = vpow.pop %v3094
    %v3096 = vmul.f32 %v3003, 1.442695
    %v3097 = vpow.pop %v3096
    %v3098 = vmul.f32 %v3004, 1.442695
    %v3099 = vpow.pop %v3098
    %v3100 = vmul.f32 %v3005, 1.442695
    %v3101 = vpow.pop %v3100
    %v3102 = vmul.f32 %v3006, 1.442695
    %v3103 = vpow.pop %v3102
    %v3104 = vmul.f32 %v3007, 1.442695
    %v3105 = vpow.pop %v3104
    %v3106 = vmul.f32 %v3008, 1.442695
    %v3107 = vpow.pop %v3106
    %v3108 = vmul.f32 %v3009, 1.442695
    %v3109 = vpow.pop %v3108
    %v3110 = vmul.f32 %v3010, 1.442695
    %v3111 = vpow.pop %v3110
    %v3112 = vmul.f32 %v3011, 1.442695
    %v3113 = vpow.pop %v3112
    %v3114 = vmul.f32 %v3012, 1.442695
    %v3115 = vpow.pop %v3114
    %v3116 = vmul.f32 %v3013, 1.442695
    %v3117 = vpow.pop %v3116
    %v3118 = vmul.f32 %v3014, 1.442695
    %v3119 = vpow.pop %v3118
    %v3120 = vmul.f32 %v3015, 1.442695
    %v3121 = vpow.pop %v3120
    %v3122 = vmul.f32 %v3016, 1.442695
    %v3123 = vpow.pop %v3122
    %v3124 = vmul.f32 %v3017, 1.442695
    %v3125 = vpow.pop %v3124
    %v3126 = vmul.f32 %v3018, 1.442695
    %v3127 = vpow.pop %v3126
    %v3128 = vmul.f32 %v3019, 1.442695
    %v3129 = vpow.pop %v3128
    %v3130 = vmul.f32 %v3020, 1.442695
    %v3131 = vpow.pop %v3130
    %v3132 = vmul.f32 %v3021, 1.442695
    %v3133 = vpow.pop %v3132
    %v3134 = vmul.f32 %v3022, 1.442695
    %v3135 = vpow.pop %v3134
    %v3136 = vmul.f32 %v3023, 1.442695
    %v3137 = vpow.pop %v3136
    %v3138 = vmul.f32 %v3024, 1.442695
    %v3139 = vpow.pop %v3138
    %v3140 = vmul.f32 %v3025, 1.442695
    %v3141 = vpow.pop %v3140
    %v3142 = vmul.f32 %v3026, 1.442695
    %v3143 = vpow.pop %v3142
    %v3144 = vmul.f32 %v3027, 1.442695
    %v3145 = vpow.pop %v3144
    %v3146 = vmul.f32 %v3028, 1.442695
    %v3147 = vpow.pop %v3146
    %v3148 = vmul.f32 %v3029, 1.442695
    %v3149 = vpow.pop %v3148
    %v3150 = vmul.f32 %v3030, 1.442695
    %v3151 = vpow.pop %v3150
    %v3152 = vmul.f32 %v3031, 1.442695
    %v3153 = vpow.pop %v3152
    %v3154 = vmul.f32 %v3032, 1.442695
    %v3155 = vpow.pop %v3154
    %v3156 = vmul.f32 %v3033, 1.442695
    %v3157 = vpow.pop %v3156
    %v3158 = vmul.f32 %v3034, 1.442695
    %v3159 = vpow.pop %v3158
    %v3160 = vmul.f32 %v3035, 1.442695
    %v3161 = vpow.pop %v3160
    %v3162 = vmul.f32 %v3036, 1.442695
    %v3163 = vpow.pop %v3162
    %v3164 = vmul.f32 %v3037, 1.442695
    %v3165 = vpow.pop %v3164
    %v3166 = vsel %vm287, %v3039, 0.0
    %3167 = vadd.xlane.f32.xlu0 %v3166
    %v3168 = vpop.xlane.xlu0 %3167
    %v3169 = vsel %vm287, %v3041, 0.0
    %3170 = vadd.xlane.f32.xlu0 %v3169
    %v3171 = vpop.xlane.xlu0 %3170
    %v3172 = vsel %vm287, %v3043, 0.0
    %3173 = vadd.xlane.f32.xlu0 %v3172
    %v3174 = vpop.xlane.xlu0 %3173
    %v3175 = vsel %vm287, %v3045, 0.0
    %3176 = vadd.xlane.f32.xlu0 %v3175
    %v3177 = vpop.xlane.xlu0 %3176
    %v3178 = vsel %vm287, %v3047, 0.0
    %3179 = vadd.xlane.f32.xlu0 %v3178
    %v3180 = vpop.xlane.xlu0 %3179
    %v3181 = vsel %vm287, %v3049, 0.0
    %3182 = vadd.xlane.f32.xlu0 %v3181
    %v3183 = vpop.xlane.xlu0 %3182
    %v3184 = vsel %vm287, %v3051, 0.0
    %3185 = vadd.xlane.f32.xlu0 %v3184
    %v3186 = vpop.xlane.xlu0 %3185
    %v3187 = vsel %vm287, %v3053, 0.0
    %3188 = vadd.xlane.f32.xlu0 %v3187
    %v3189 = vpop.xlane.xlu0 %3188
    %v3190 = vsel %vm287, %v3055, 0.0
    %3191 = vadd.xlane.f32.xlu0 %v3190
    %v3192 = vpop.xlane.xlu0 %3191
    %v3193 = vsel %vm287, %v3057, 0.0
    %3194 = vadd.xlane.f32.xlu0 %v3193
    %v3195 = vpop.xlane.xlu0 %3194
    %v3196 = vsel %vm287, %v3059, 0.0
    %3197 = vadd.xlane.f32.xlu0 %v3196
    %v3198 = vpop.xlane.xlu0 %3197
    %v3199 = vsel %vm287, %v3061, 0.0
    %3200 = vadd.xlane.f32.xlu0 %v3199
    %v3201 = vpop.xlane.xlu0 %3200
    %v3202 = vsel %vm287, %v3063, 0.0
    %3203 = vadd.xlane.f32.xlu0 %v3202
    %v3204 = vpop.xlane.xlu0 %3203
    %v3205 = vsel %vm287, %v3065, 0.0
    %3206 = vadd.xlane.f32.xlu0 %v3205
    %v3207 = vpop.xlane.xlu0 %3206
    %v3208 = vsel %vm287, %v3067, 0.0
    %3209 = vadd.xlane.f32.xlu0 %v3208
    %v3210 = vpop.xlane.xlu0 %3209
    %v3211 = vsel %vm287, %v3069, 0.0
    %3212 = vadd.xlane.f32.xlu0 %v3211
    %v3213 = vpop.xlane.xlu0 %3212
    %v3214 = vsel %vm287, %v3071, 0.0
    %3215 = vadd.xlane.f32.xlu0 %v3214
    %v3216 = vpop.xlane.xlu0 %3215
    %v3217 = vsel %vm287, %v3073, 0.0
    %3218 = vadd.xlane.f32.xlu0 %v3217
    %v3219 = vpop.xlane.xlu0 %3218
    %v3220 = vsel %vm287, %v3075, 0.0
    %3221 = vadd.xlane.f32.xlu0 %v3220
    %v3222 = vpop.xlane.xlu0 %3221
    %v3223 = vsel %vm287, %v3077, 0.0
    %3224 = vadd.xlane.f32.xlu0 %v3223
    %v3225 = vpop.xlane.xlu0 %3224
    %v3226 = vsel %vm287, %v3079, 0.0
    %3227 = vadd.xlane.f32.xlu0 %v3226
    %v3228 = vpop.xlane.xlu0 %3227
    %v3229 = vsel %vm287, %v3081, 0.0
    %3230 = vadd.xlane.f32.xlu0 %v3229
    %v3231 = vpop.xlane.xlu0 %3230
    %v3232 = vsel %vm287, %v3083, 0.0
    %3233 = vadd.xlane.f32.xlu0 %v3232
    %v3234 = vpop.xlane.xlu0 %3233
    %v3235 = vsel %vm287, %v3085, 0.0
    %3236 = vadd.xlane.f32.xlu0 %v3235
    %v3237 = vpop.xlane.xlu0 %3236
    %v3238 = vsel %vm287, %v3087, 0.0
    %3239 = vadd.xlane.f32.xlu0 %v3238
    %v3240 = vpop.xlane.xlu0 %3239
    %v3241 = vsel %vm287, %v3089, 0.0
    %3242 = vadd.xlane.f32.xlu0 %v3241
    %v3243 = vpop.xlane.xlu0 %3242
    %v3244 = vsel %vm287, %v3091, 0.0
    %3245 = vadd.xlane.f32.xlu0 %v3244
    %v3246 = vpop.xlane.xlu0 %3245
    %v3247 = vsel %vm287, %v3093, 0.0
    %3248 = vadd.xlane.f32.xlu0 %v3247
    %v3249 = vpop.xlane.xlu0 %3248
    %v3250 = vsel %vm287, %v3095, 0.0
    %3251 = vadd.xlane.f32.xlu0 %v3250
    %v3252 = vpop.xlane.xlu0 %3251
    %v3253 = vsel %vm287, %v3097, 0.0
    %3254 = vadd.xlane.f32.xlu0 %v3253
    %v3255 = vpop.xlane.xlu0 %3254
    %v3256 = vsel %vm287, %v3099, 0.0
    %3257 = vadd.xlane.f32.xlu0 %v3256
    %v3258 = vpop.xlane.xlu0 %3257
    %v3259 = vsel %vm287, %v3101, 0.0
    %3260 = vadd.xlane.f32.xlu0 %v3259
    %v3261 = vpop.xlane.xlu0 %3260
    %v3262 = vsel %vm287, %v3103, 0.0
    %3263 = vadd.xlane.f32.xlu0 %v3262
    %v3264 = vpop.xlane.xlu0 %3263
    %v3265 = vsel %vm287, %v3105, 0.0
    %3266 = vadd.xlane.f32.xlu0 %v3265
    %v3267 = vpop.xlane.xlu0 %3266
    %v3268 = vsel %vm287, %v3107, 0.0
    %3269 = vadd.xlane.f32.xlu0 %v3268
    %v3270 = vpop.xlane.xlu0 %3269
    %v3271 = vsel %vm287, %v3109, 0.0
    %3272 = vadd.xlane.f32.xlu0 %v3271
    %v3273 = vpop.xlane.xlu0 %3272
    %v3274 = vsel %vm287, %v3111, 0.0
    %3275 = vadd.xlane.f32.xlu0 %v3274
    %v3276 = vpop.xlane.xlu0 %3275
    %v3277 = vsel %vm287, %v3113, 0.0
    %3278 = vadd.xlane.f32.xlu0 %v3277
    %v3279 = vpop.xlane.xlu0 %3278
    %v3280 = vsel %vm287, %v3115, 0.0
    %3281 = vadd.xlane.f32.xlu0 %v3280
    %v3282 = vpop.xlane.xlu0 %3281
    %v3283 = vsel %vm287, %v3117, 0.0
    %3284 = vadd.xlane.f32.xlu0 %v3283
    %v3285 = vpop.xlane.xlu0 %3284
    %v3286 = vsel %vm287, %v3119, 0.0
    %3287 = vadd.xlane.f32.xlu0 %v3286
    %v3288 = vpop.xlane.xlu0 %3287
    %v3289 = vsel %vm287, %v3121, 0.0
    %3290 = vadd.xlane.f32.xlu0 %v3289
    %v3291 = vpop.xlane.xlu0 %3290
    %v3292 = vsel %vm287, %v3123, 0.0
    %3293 = vadd.xlane.f32.xlu0 %v3292
    %v3294 = vpop.xlane.xlu0 %3293
    %v3295 = vsel %vm287, %v3125, 0.0
    %3296 = vadd.xlane.f32.xlu0 %v3295
    %v3297 = vpop.xlane.xlu0 %3296
    %v3298 = vsel %vm287, %v3127, 0.0
    %3299 = vadd.xlane.f32.xlu0 %v3298
    %v3300 = vpop.xlane.xlu0 %3299
    %v3301 = vsel %vm287, %v3129, 0.0
    %3302 = vadd.xlane.f32.xlu0 %v3301
    %v3303 = vpop.xlane.xlu0 %3302
    %v3304 = vsel %vm287, %v3131, 0.0
    %3305 = vadd.xlane.f32.xlu0 %v3304
    %v3306 = vpop.xlane.xlu0 %3305
    %v3307 = vsel %vm287, %v3133, 0.0
    %3308 = vadd.xlane.f32.xlu0 %v3307
    %v3309 = vpop.xlane.xlu0 %3308
    %v3310 = vsel %vm287, %v3135, 0.0
    %3311 = vadd.xlane.f32.xlu0 %v3310
    %v3312 = vpop.xlane.xlu0 %3311
    %v3313 = vsel %vm287, %v3137, 0.0
    %3314 = vadd.xlane.f32.xlu0 %v3313
    %v3315 = vpop.xlane.xlu0 %3314
    %v3316 = vsel %vm287, %v3139, 0.0
    %3317 = vadd.xlane.f32.xlu0 %v3316
    %v3318 = vpop.xlane.xlu0 %3317
    %v3319 = vsel %vm287, %v3141, 0.0
    %3320 = vadd.xlane.f32.xlu0 %v3319
    %v3321 = vpop.xlane.xlu0 %3320
    %v3322 = vsel %vm287, %v3143, 0.0
    %3323 = vadd.xlane.f32.xlu0 %v3322
    %v3324 = vpop.xlane.xlu0 %3323
    %v3325 = vsel %vm287, %v3145, 0.0
    %3326 = vadd.xlane.f32.xlu0 %v3325
    %v3327 = vpop.xlane.xlu0 %3326
    %v3328 = vsel %vm287, %v3147, 0.0
    %3329 = vadd.xlane.f32.xlu0 %v3328
    %v3330 = vpop.xlane.xlu0 %3329
    %v3331 = vsel %vm287, %v3149, 0.0
    %3332 = vadd.xlane.f32.xlu0 %v3331
    %v3333 = vpop.xlane.xlu0 %3332
    %v3334 = vsel %vm287, %v3151, 0.0
    %3335 = vadd.xlane.f32.xlu0 %v3334
    %v3336 = vpop.xlane.xlu0 %3335
    %v3337 = vsel %vm287, %v3153, 0.0
    %3338 = vadd.xlane.f32.xlu0 %v3337
    %v3339 = vpop.xlane.xlu0 %3338
    %v3340 = vsel %vm287, %v3155, 0.0
    %3341 = vadd.xlane.f32.xlu0 %v3340
    %v3342 = vpop.xlane.xlu0 %3341
    %v3343 = vsel %vm287, %v3157, 0.0
    %3344 = vadd.xlane.f32.xlu0 %v3343
    %v3345 = vpop.xlane.xlu0 %3344
    %v3346 = vsel %vm287, %v3159, 0.0
    %3347 = vadd.xlane.f32.xlu0 %v3346
    %v3348 = vpop.xlane.xlu0 %3347
    %v3349 = vsel %vm287, %v3161, 0.0
    %3350 = vadd.xlane.f32.xlu0 %v3349
    %v3351 = vpop.xlane.xlu0 %3350
    %v3352 = vsel %vm287, %v3163, 0.0
    %3353 = vadd.xlane.f32.xlu0 %v3352
    %v3354 = vpop.xlane.xlu0 %3353
    %v3355 = vsel %vm287, %v3165, 0.0
    %3356 = vadd.xlane.f32.xlu0 %v3355
    %v3357 = vpop.xlane.xlu0 %3356
    %v3358 = vrcp.pop %v3168
    %v3359 = vrcp.pop %v3171
    %v3360 = vrcp.pop %v3174
    %v3361 = vrcp.pop %v3177
    %v3362 = vrcp.pop %v3180
    %v3363 = vrcp.pop %v3183
    %v3364 = vrcp.pop %v3186
    %v3365 = vrcp.pop %v3189
    %v3366 = vrcp.pop %v3192
    %v3367 = vrcp.pop %v3195
    %v3368 = vrcp.pop %v3198
    %v3369 = vrcp.pop %v3201
    %v3370 = vrcp.pop %v3204
    %v3371 = vrcp.pop %v3207
    %v3372 = vrcp.pop %v3210
    %v3373 = vrcp.pop %v3213
    %v3374 = vrcp.pop %v3216
    %v3375 = vrcp.pop %v3219
    %v3376 = vrcp.pop %v3222
    %v3377 = vrcp.pop %v3225
    %v3378 = vrcp.pop %v3228
    %v3379 = vrcp.pop %v3231
    %v3380 = vrcp.pop %v3234
    %v3381 = vrcp.pop %v3237
    %v3382 = vrcp.pop %v3240
    %v3383 = vrcp.pop %v3243
    %v3384 = vrcp.pop %v3246
    %v3385 = vrcp.pop %v3249
    %v3386 = vrcp.pop %v3252
    %v3387 = vrcp.pop %v3255
    %v3388 = vrcp.pop %v3258
    %v3389 = vrcp.pop %v3261
    %v3390 = vrcp.pop %v3264
    %v3391 = vrcp.pop %v3267
    %v3392 = vrcp.pop %v3270
    %v3393 = vrcp.pop %v3273
    %v3394 = vrcp.pop %v3276
    %v3395 = vrcp.pop %v3279
    %v3396 = vrcp.pop %v3282
    %v3397 = vrcp.pop %v3285
    %v3398 = vrcp.pop %v3288
    %v3399 = vrcp.pop %v3291
    %v3400 = vrcp.pop %v3294
    %v3401 = vrcp.pop %v3297
    %v3402 = vrcp.pop %v3300
    %v3403 = vrcp.pop %v3303
    %v3404 = vrcp.pop %v3306
    %v3405 = vrcp.pop %v3309
    %v3406 = vrcp.pop %v3312
    %v3407 = vrcp.pop %v3315
    %v3408 = vrcp.pop %v3318
    %v3409 = vrcp.pop %v3321
    %v3410 = vrcp.pop %v3324
    %v3411 = vrcp.pop %v3327
    %v3412 = vrcp.pop %v3330
    %v3413 = vrcp.pop %v3333
    %v3414 = vrcp.pop %v3336
    %v3415 = vrcp.pop %v3339
    %v3416 = vrcp.pop %v3342
    %v3417 = vrcp.pop %v3345
    %v3418 = vrcp.pop %v3348
    %v3419 = vrcp.pop %v3351
    %v3420 = vrcp.pop %v3354
    %v3421 = vrcp.pop %v3357
    %v3422 = vmul.f32 %v3039, %v3358
    %v3423 = vmul.f32 %v3041, %v3359
    %v3424 = vmul.f32 %v3043, %v3360
    %v3425 = vmul.f32 %v3045, %v3361
    %v3426 = vmul.f32 %v3047, %v3362
    %v3427 = vmul.f32 %v3049, %v3363
    %v3428 = vmul.f32 %v3051, %v3364
    %v3429 = vmul.f32 %v3053, %v3365
    %v3430 = vmul.f32 %v3055, %v3366
    %v3431 = vmul.f32 %v3057, %v3367
    %v3432 = vmul.f32 %v3059, %v3368
    %v3433 = vmul.f32 %v3061, %v3369
    %v3434 = vmul.f32 %v3063, %v3370
    %v3435 = vmul.f32 %v3065, %v3371
    %v3436 = vmul.f32 %v3067, %v3372
    %v3437 = vmul.f32 %v3069, %v3373
    %v3438 = vmul.f32 %v3071, %v3374
    %v3439 = vmul.f32 %v3073, %v3375
    %v3440 = vmul.f32 %v3075, %v3376
    %v3441 = vmul.f32 %v3077, %v3377
    %v3442 = vmul.f32 %v3079, %v3378
    %v3443 = vmul.f32 %v3081, %v3379
    %v3444 = vmul.f32 %v3083, %v3380
    %v3445 = vmul.f32 %v3085, %v3381
    %v3446 = vmul.f32 %v3087, %v3382
    %v3447 = vmul.f32 %v3089, %v3383
    %v3448 = vmul.f32 %v3091, %v3384
    %v3449 = vmul.f32 %v3093, %v3385
    %v3450 = vmul.f32 %v3095, %v3386
    %v3451 = vmul.f32 %v3097, %v3387
    %v3452 = vmul.f32 %v3099, %v3388
    %v3453 = vmul.f32 %v3101, %v3389
    %v3454 = vmul.f32 %v3103, %v3390
    %v3455 = vmul.f32 %v3105, %v3391
    %v3456 = vmul.f32 %v3107, %v3392
    %v3457 = vmul.f32 %v3109, %v3393
    %v3458 = vmul.f32 %v3111, %v3394
    %v3459 = vmul.f32 %v3113, %v3395
    %v3460 = vmul.f32 %v3115, %v3396
    %v3461 = vmul.f32 %v3117, %v3397
    %v3462 = vmul.f32 %v3119, %v3398
    %v3463 = vmul.f32 %v3121, %v3399
    %v3464 = vmul.f32 %v3123, %v3400
    %v3465 = vmul.f32 %v3125, %v3401
    %v3466 = vmul.f32 %v3127, %v3402
    %v3467 = vmul.f32 %v3129, %v3403
    %v3468 = vmul.f32 %v3131, %v3404
    %v3469 = vmul.f32 %v3133, %v3405
    %v3470 = vmul.f32 %v3135, %v3406
    %v3471 = vmul.f32 %v3137, %v3407
    %v3472 = vmul.f32 %v3139, %v3408
    %v3473 = vmul.f32 %v3141, %v3409
    %v3474 = vmul.f32 %v3143, %v3410
    %v3475 = vmul.f32 %v3145, %v3411
    %v3476 = vmul.f32 %v3147, %v3412
    %v3477 = vmul.f32 %v3149, %v3413
    %v3478 = vmul.f32 %v3151, %v3414
    %v3479 = vmul.f32 %v3153, %v3415
    %v3480 = vmul.f32 %v3155, %v3416
    %v3481 = vmul.f32 %v3157, %v3417
    %v3482 = vmul.f32 %v3159, %v3418
    %v3483 = vmul.f32 %v3161, %v3419
    %v3484 = vmul.f32 %v3163, %v3420
    %v3485 = vmul.f32 %v3165, %v3421
    %v3487 = vsel %vm287, %v623, 0
    %v3490 = vsel %vm287, %v3422, 0
    %v3493 = vsel %vm287, %v3423, 0
    %v3496 = vsel %vm287, %v3424, 0
    %v3499 = vsel %vm287, %v3425, 0
    %3501 = vmatprep.subr.mxu0 0.0
    %3502 = vmatpush1.xpose.msra.mxu0 %v3490
    %3503 = vmatprep.subr.mxu0 0.0
    %3504 = vmatpush1.xpose.msra.mxu0 %v3493
    %3505 = vmatprep.subr.mxu0 0.0
    %3506 = vmatpush1.xpose.msra.mxu0 %v3496
    %3507 = vmatprep.subr.mxu0 0.0
    %3508 = vmatpush1.xpose.msra.mxu0 %v3499
    %3509 = vmatprep.subr.mxu0 0.0
    %3510 = vmatpush1.xpose.msra.mxu0 0.0
    %3511 = vmatprep.subr.mxu0 0.0
    %3512 = vmatpush1.xpose.msra.mxu0 0.0
    %3513 = vmatprep.subr.mxu0 0.0
    %3514 = vmatpush1.xpose.msra.mxu0 0.0
    %3515 = vmatprep.subr.mxu0 0.0
    %3516 = vmatpush1.xpose.msra.mxu0 0.0
    %3517 = vmatprep.subr.mxu0 0.0
    %3518 = vmatpush1.xpose.msra.mxu0 0.0
    %3519 = vmatprep.subr.mxu0 0.0
    %3520 = vmatpush1.xpose.msra.mxu0 0.0
    %3521 = vmatprep.subr.mxu0 0.0
    %3522 = vmatpush1.xpose.msra.mxu0 0.0
    %3523 = vmatprep.subr.mxu0 0.0
    %3524 = vmatpush1.xpose.msra.mxu0 0.0
    %3525 = vmatprep.subr.mxu0 0.0
    %3526 = vmatpush1.xpose.msra.mxu0 0.0
    %3527 = vmatprep.subr.mxu0 0.0
    %3528 = vmatpush1.xpose.msra.mxu0 0.0
    %3529 = vmatprep.subr.mxu0 0.0
    %3530 = vmatpush1.xpose.msra.mxu0 0.0
    %3531 = vmatprep.subr.mxu0 0.0
    %3532 = vmatpush1.xpose.msra.mxu0 0.0
    %3533 = vmatprep.subr.mxu0 0.0
    %3534 = vmatpush1.xpose.msra.mxu0 0.0
    %3535 = vmatprep.subr.mxu0 0.0
    %3536 = vmatpush1.xpose.msra.mxu0 0.0
    %3537 = vmatprep.subr.mxu0 0.0
    %3538 = vmatpush1.xpose.msra.mxu0 0.0
    %3539 = vmatprep.subr.mxu0 0.0
    %3540 = vmatpush1.xpose.msra.mxu0 0.0
    %3541 = vmatprep.subr.mxu0 0.0
    %3542 = vmatpush1.xpose.msra.mxu0 0.0
    %3543 = vmatprep.subr.mxu0 0.0
    %3544 = vmatpush1.xpose.msra.mxu0 0.0
    %3545 = vmatprep.subr.mxu0 0.0
    %3546 = vmatpush1.xpose.msra.mxu0 0.0
    %3547 = vmatprep.subr.mxu0 0.0
    %3548 = vmatpush1.xpose.msra.mxu0 0.0
    %3549 = vmatprep.subr.mxu0 0.0
    %3550 = vmatpush1.xpose.msra.mxu0 0.0
    %3551 = vmatprep.subr.mxu0 0.0
    %3552 = vmatpush1.xpose.msra.mxu0 0.0
    %3553 = vmatprep.subr.mxu0 0.0
    %3554 = vmatpush1.xpose.msra.mxu0 0.0
    %3555 = vmatprep.subr.mxu0 0.0
    %3556 = vmatpush1.xpose.msra.mxu0 0.0
    %3557 = vmatprep.subr.mxu0 0.0
    %3558 = vmatpush1.xpose.msra.mxu0 0.0
    %3559 = vmatprep.subr.mxu0 0.0
    %3560 = vmatpush1.xpose.msra.mxu0 0.0
    %3561 = vmatprep.subr.mxu0 0.0
    %3562 = vmatpush1.xpose.msra.mxu0 0.0
    %3563 = vmatprep.subr.mxu0 0.0
    %3564 = vmatpush1.xpose.msra.mxu0 0.0
    %3565 = vmatprep.mubr.f32.mxu0 0.0
    %3566 = vmatmul.mubr.f32.gmra.mrb[0].mxu0 %v3487
    %v3567 = vpop.f32.mrb[0].mxu0
    %v3568 = vadd.f32 0.0, %v3567
    %v3569 = vpop.f32.mrb[0].mxu0
    %3570 = vdwg.mxu0
    %v3572 = vsel %vm287, %v628, 0
    %v3575 = vsel %vm287, %v3426, 0
    %v3578 = vsel %vm287, %v3427, 0
    %v3581 = vsel %vm287, %v3428, 0
    %v3584 = vsel %vm287, %v3429, 0
    %3586 = vmatprep.subr.mxu0 0.0
    %3587 = vmatpush1.xpose.msra.mxu0 %v3575
    %3588 = vmatprep.subr.mxu0 0.0
    %3589 = vmatpush1.xpose.msra.mxu0 %v3578
    %3590 = vmatprep.subr.mxu0 0.0
    %3591 = vmatpush1.xpose.msra.mxu0 %v3581
    %3592 = vmatprep.subr.mxu0 0.0
    %3593 = vmatpush1.xpose.msra.mxu0 %v3584
    %3594 = vmatprep.subr.mxu0 0.0
    %3595 = vmatpush1.xpose.msra.mxu0 0.0
    %3596 = vmatprep.subr.mxu0 0.0
    %3597 = vmatpush1.xpose.msra.mxu0 0.0
    %3598 = vmatprep.subr.mxu0 0.0
    %3599 = vmatpush1.xpose.msra.mxu0 0.0
    %3600 = vmatprep.subr.mxu0 0.0
    %3601 = vmatpush1.xpose.msra.mxu0 0.0
    %3602 = vmatprep.subr.mxu0 0.0
    %3603 = vmatpush1.xpose.msra.mxu0 0.0
    %3604 = vmatprep.subr.mxu0 0.0
    %3605 = vmatpush1.xpose.msra.mxu0 0.0
    %3606 = vmatprep.subr.mxu0 0.0
    %3607 = vmatpush1.xpose.msra.mxu0 0.0
    %3608 = vmatprep.subr.mxu0 0.0
    %3609 = vmatpush1.xpose.msra.mxu0 0.0
    %3610 = vmatprep.subr.mxu0 0.0
    %3611 = vmatpush1.xpose.msra.mxu0 0.0
    %3612 = vmatprep.subr.mxu0 0.0
    %3613 = vmatpush1.xpose.msra.mxu0 0.0
    %3614 = vmatprep.subr.mxu0 0.0
    %3615 = vmatpush1.xpose.msra.mxu0 0.0
    %3616 = vmatprep.subr.mxu0 0.0
    %3617 = vmatpush1.xpose.msra.mxu0 0.0
    %3618 = vmatprep.subr.mxu0 0.0
    %3619 = vmatpush1.xpose.msra.mxu0 0.0
    %3620 = vmatprep.subr.mxu0 0.0
    %3621 = vmatpush1.xpose.msra.mxu0 0.0
    %3622 = vmatprep.subr.mxu0 0.0
    %3623 = vmatpush1.xpose.msra.mxu0 0.0
    %3624 = vmatprep.subr.mxu0 0.0
    %3625 = vmatpush1.xpose.msra.mxu0 0.0
    %3626 = vmatprep.subr.mxu0 0.0
    %3627 = vmatpush1.xpose.msra.mxu0 0.0
    %3628 = vmatprep.subr.mxu0 0.0
    %3629 = vmatpush1.xpose.msra.mxu0 0.0
    %3630 = vmatprep.subr.mxu0 0.0
    %3631 = vmatpush1.xpose.msra.mxu0 0.0
    %3632 = vmatprep.subr.mxu0 0.0
    %3633 = vmatpush1.xpose.msra.mxu0 0.0
    %3634 = vmatprep.subr.mxu0 0.0
    %3635 = vmatpush1.xpose.msra.mxu0 0.0
    %3636 = vmatprep.subr.mxu0 0.0
    %3637 = vmatpush1.xpose.msra.mxu0 0.0
    %3638 = vmatprep.subr.mxu0 0.0
    %3639 = vmatpush1.xpose.msra.mxu0 0.0
    %3640 = vmatprep.subr.mxu0 0.0
    %3641 = vmatpush1.xpose.msra.mxu0 0.0
    %3642 = vmatprep.subr.mxu0 0.0
    %3643 = vmatpush1.xpose.msra.mxu0 0.0
    %3644 = vmatprep.subr.mxu0 0.0
    %3645 = vmatpush1.xpose.msra.mxu0 0.0
    %3646 = vmatprep.subr.mxu0 0.0
    %3647 = vmatpush1.xpose.msra.mxu0 0.0
    %3648 = vmatprep.subr.mxu0 0.0
    %3649 = vmatpush1.xpose.msra.mxu0 0.0
    %3650 = vmatprep.mubr.f32.mxu0 0.0
    %3651 = vmatmul.mubr.f32.gmra.mrb[0].mxu0 %v3572
    %v3652 = vpop.f32.mrb[0].mxu0
    %v3653 = vadd.f32 0.0, %v3652
    %v3654 = vpop.f32.mrb[0].mxu0
    %3655 = vdwg.mxu0
    %v3657 = vsel %vm287, %v633, 0
    %v3660 = vsel %vm287, %v3430, 0
    %v3663 = vsel %vm287, %v3431, 0
    %v3666 = vsel %vm287, %v3432, 0
    %v3669 = vsel %vm287, %v3433, 0
    %3671 = vmatprep.subr.mxu0 0.0
    %3672 = vmatpush1.xpose.msra.mxu0 %v3660
    %3673 = vmatprep.subr.mxu0 0.0
    %3674 = vmatpush1.xpose.msra.mxu0 %v3663
    %3675 = vmatprep.subr.mxu0 0.0
    %3676 = vmatpush1.xpose.msra.mxu0 %v3666
    %3677 = vmatprep.subr.mxu0 0.0
    %3678 = vmatpush1.xpose.msra.mxu0 %v3669
    %3679 = vmatprep.subr.mxu0 0.0
    %3680 = vmatpush1.xpose.msra.mxu0 0.0
    %3681 = vmatprep.subr.mxu0 0.0
    %3682 = vmatpush1.xpose.msra.mxu0 0.0
    %3683 = vmatprep.subr.mxu0 0.0
    %3684 = vmatpush1.xpose.msra.mxu0 0.0
    %3685 = vmatprep.subr.mxu0 0.0
    %3686 = vmatpush1.xpose.msra.mxu0 0.0
    %3687 = vmatprep.subr.mxu0 0.0
    %3688 = vmatpush1.xpose.msra.mxu0 0.0
    %3689 = vmatprep.subr.mxu0 0.0
    %3690 = vmatpush1.xpose.msra.mxu0 0.0
    %3691 = vmatprep.subr.mxu0 0.0
    %3692 = vmatpush1.xpose.msra.mxu0 0.0
    %3693 = vmatprep.subr.mxu0 0.0
    %3694 = vmatpush1.xpose.msra.mxu0 0.0
    %3695 = vmatprep.subr.mxu0 0.0
    %3696 = vmatpush1.xpose.msra.mxu0 0.0
    %3697 = vmatprep.subr.mxu0 0.0
    %3698 = vmatpush1.xpose.msra.mxu0 0.0
    %3699 = vmatprep.subr.mxu0 0.0
    %3700 = vmatpush1.xpose.msra.mxu0 0.0
    %3701 = vmatprep.subr.mxu0 0.0
    %3702 = vmatpush1.xpose.msra.mxu0 0.0
    %3703 = vmatprep.subr.mxu0 0.0
    %3704 = vmatpush1.xpose.msra.mxu0 0.0
    %3705 = vmatprep.subr.mxu0 0.0
    %3706 = vmatpush1.xpose.msra.mxu0 0.0
    %3707 = vmatprep.subr.mxu0 0.0
    %3708 = vmatpush1.xpose.msra.mxu0 0.0
    %3709 = vmatprep.subr.mxu0 0.0
    %3710 = vmatpush1.xpose.msra.mxu0 0.0
    %3711 = vmatprep.subr.mxu0 0.0
    %3712 = vmatpush1.xpose.msra.mxu0 0.0
    %3713 = vmatprep.subr.mxu0 0.0
    %3714 = vmatpush1.xpose.msra.mxu0 0.0
    %3715 = vmatprep.subr.mxu0 0.0
    %3716 = vmatpush1.xpose.msra.mxu0 0.0
    %3717 = vmatprep.subr.mxu0 0.0
    %3718 = vmatpush1.xpose.msra.mxu0 0.0
    %3719 = vmatprep.subr.mxu0 0.0
    %3720 = vmatpush1.xpose.msra.mxu0 0.0
    %3721 = vmatprep.subr.mxu0 0.0
    %3722 = vmatpush1.xpose.msra.mxu0 0.0
    %3723 = vmatprep.subr.mxu0 0.0
    %3724 = vmatpush1.xpose.msra.mxu0 0.0
    %3725 = vmatprep.subr.mxu0 0.0
    %3726 = vmatpush1.xpose.msra.mxu0 0.0
    %3727 = vmatprep.subr.mxu0 0.0
    %3728 = vmatpush1.xpose.msra.mxu0 0.0
    %3729 = vmatprep.subr.mxu0 0.0
    %3730 = vmatpush1.xpose.msra.mxu0 0.0
    %3731 = vmatprep.subr.mxu0 0.0
    %3732 = vmatpush1.xpose.msra.mxu0 0.0
    %3733 = vmatprep.subr.mxu0 0.0
    %3734 = vmatpush1.xpose.msra.mxu0 0.0
    %3735 = vmatprep.mubr.f32.mxu0 0.0
    %3736 = vmatmul.mubr.f32.gmra.mrb[0].mxu0 %v3657
    %v3737 = vpop.f32.mrb[0].mxu0
    %v3738 = vadd.f32 0.0, %v3737
    %v3739 = vpop.f32.mrb[0].mxu0
    %3740 = vdwg.mxu0
    %v3742 = vsel %vm287, %v638, 0
    %v3745 = vsel %vm287, %v3434, 0
    %v3748 = vsel %vm287, %v3435, 0
    %v3751 = vsel %vm287, %v3436, 0
    %v3754 = vsel %vm287, %v3437, 0
    %3756 = vmatprep.subr.mxu0 0.0
    %3757 = vmatpush1.xpose.msra.mxu0 %v3745
    %3758 = vmatprep.subr.mxu0 0.0
    %3759 = vmatpush1.xpose.msra.mxu0 %v3748
    %3760 = vmatprep.subr.mxu0 0.0
    %3761 = vmatpush1.xpose.msra.mxu0 %v3751
    %3762 = vmatprep.subr.mxu0 0.0
    %3763 = vmatpush1.xpose.msra.mxu0 %v3754
    %3764 = vmatprep.subr.mxu0 0.0
    %3765 = vmatpush1.xpose.msra.mxu0 0.0
    %3766 = vmatprep.subr.mxu0 0.0
    %3767 = vmatpush1.xpose.msra.mxu0 0.0
    %3768 = vmatprep.subr.mxu0 0.0
    %3769 = vmatpush1.xpose.msra.mxu0 0.0
    %3770 = vmatprep.subr.mxu0 0.0
    %3771 = vmatpush1.xpose.msra.mxu0 0.0
    %3772 = vmatprep.subr.mxu0 0.0
    %3773 = vmatpush1.xpose.msra.mxu0 0.0
    %3774 = vmatprep.subr.mxu0 0.0
    %3775 = vmatpush1.xpose.msra.mxu0 0.0
    %3776 = vmatprep.subr.mxu0 0.0
    %3777 = vmatpush1.xpose.msra.mxu0 0.0
    %3778 = vmatprep.subr.mxu0 0.0
    %3779 = vmatpush1.xpose.msra.mxu0 0.0
    %3780 = vmatprep.subr.mxu0 0.0
    %3781 = vmatpush1.xpose.msra.mxu0 0.0
    %3782 = vmatprep.subr.mxu0 0.0
    %3783 = vmatpush1.xpose.msra.mxu0 0.0
    %3784 = vmatprep.subr.mxu0 0.0
    %3785 = vmatpush1.xpose.msra.mxu0 0.0
    %3786 = vmatprep.subr.mxu0 0.0
    %3787 = vmatpush1.xpose.msra.mxu0 0.0
    %3788 = vmatprep.subr.mxu0 0.0
    %3789 = vmatpush1.xpose.msra.mxu0 0.0
    %3790 = vmatprep.subr.mxu0 0.0
    %3791 = vmatpush1.xpose.msra.mxu0 0.0
    %3792 = vmatprep.subr.mxu0 0.0
    %3793 = vmatpush1.xpose.msra.mxu0 0.0
    %3794 = vmatprep.subr.mxu0 0.0
    %3795 = vmatpush1.xpose.msra.mxu0 0.0
    %3796 = vmatprep.subr.mxu0 0.0
    %3797 = vmatpush1.xpose.msra.mxu0 0.0
    %3798 = vmatprep.subr.mxu0 0.0
    %3799 = vmatpush1.xpose.msra.mxu0 0.0
    %3800 = vmatprep.subr.mxu0 0.0
    %3801 = vmatpush1.xpose.msra.mxu0 0.0
    %3802 = vmatprep.subr.mxu0 0.0
    %3803 = vmatpush1.xpose.msra.mxu0 0.0
    %3804 = vmatprep.subr.mxu0 0.0
    %3805 = vmatpush1.xpose.msra.mxu0 0.0
    %3806 = vmatprep.subr.mxu0 0.0
    %3807 = vmatpush1.xpose.msra.mxu0 0.0
    %3808 = vmatprep.subr.mxu0 0.0
    %3809 = vmatpush1.xpose.msra.mxu0 0.0
    %3810 = vmatprep.subr.mxu0 0.0
    %3811 = vmatpush1.xpose.msra.mxu0 0.0
    %3812 = vmatprep.subr.mxu0 0.0
    %3813 = vmatpush1.xpose.msra.mxu0 0.0
    %3814 = vmatprep.subr.mxu0 0.0
    %3815 = vmatpush1.xpose.msra.mxu0 0.0
    %3816 = vmatprep.subr.mxu0 0.0
    %3817 = vmatpush1.xpose.msra.mxu0 0.0
    %3818 = vmatprep.subr.mxu0 0.0
    %3819 = vmatpush1.xpose.msra.mxu0 0.0
    %3820 = vmatprep.mubr.f32.mxu0 0.0
    %3821 = vmatmul.mubr.f32.gmra.mrb[0].mxu0 %v3742
    %v3822 = vpop.f32.mrb[0].mxu0
    %v3823 = vadd.f32 0.0, %v3822
    %v3824 = vpop.f32.mrb[0].mxu0
    %3825 = vdwg.mxu0
    %v3827 = vsel %vm287, %v643, 0
    %v3830 = vsel %vm287, %v3438, 0
    %v3833 = vsel %vm287, %v3439, 0
    %v3836 = vsel %vm287, %v3440, 0
    %v3839 = vsel %vm287, %v3441, 0
    %3841 = vmatprep.subr.mxu0 0.0
    %3842 = vmatpush1.xpose.msra.mxu0 %v3830
    %3843 = vmatprep.subr.mxu0 0.0
    %3844 = vmatpush1.xpose.msra.mxu0 %v3833
    %3845 = vmatprep.subr.mxu0 0.0
    %3846 = vmatpush1.xpose.msra.mxu0 %v3836
    %3847 = vmatprep.subr.mxu0 0.0
    %3848 = vmatpush1.xpose.msra.mxu0 %v3839
    %3849 = vmatprep.subr.mxu0 0.0
    %3850 = vmatpush1.xpose.msra.mxu0 0.0
    %3851 = vmatprep.subr.mxu0 0.0
    %3852 = vmatpush1.xpose.msra.mxu0 0.0
    %3853 = vmatprep.subr.mxu0 0.0
    %3854 = vmatpush1.xpose.msra.mxu0 0.0
    %3855 = vmatprep.subr.mxu0 0.0
    %3856 = vmatpush1.xpose.msra.mxu0 0.0
    %3857 = vmatprep.subr.mxu0 0.0
    %3858 = vmatpush1.xpose.msra.mxu0 0.0
    %3859 = vmatprep.subr.mxu0 0.0
    %3860 = vmatpush1.xpose.msra.mxu0 0.0
    %3861 = vmatprep.subr.mxu0 0.0
    %3862 = vmatpush1.xpose.msra.mxu0 0.0
    %3863 = vmatprep.subr.mxu0 0.0
    %3864 = vmatpush1.xpose.msra.mxu0 0.0
    %3865 = vmatprep.subr.mxu0 0.0
    %3866 = vmatpush1.xpose.msra.mxu0 0.0
    %3867 = vmatprep.subr.mxu0 0.0
    %3868 = vmatpush1.xpose.msra.mxu0 0.0
    %3869 = vmatprep.subr.mxu0 0.0
    %3870 = vmatpush1.xpose.msra.mxu0 0.0
    %3871 = vmatprep.subr.mxu0 0.0
    %3872 = vmatpush1.xpose.msra.mxu0 0.0
    %3873 = vmatprep.subr.mxu0 0.0
    %3874 = vmatpush1.xpose.msra.mxu0 0.0
    %3875 = vmatprep.subr.mxu0 0.0
    %3876 = vmatpush1.xpose.msra.mxu0 0.0
    %3877 = vmatprep.subr.mxu0 0.0
    %3878 = vmatpush1.xpose.msra.mxu0 0.0
    %3879 = vmatprep.subr.mxu0 0.0
    %3880 = vmatpush1.xpose.msra.mxu0 0.0
    %3881 = vmatprep.subr.mxu0 0.0
    %3882 = vmatpush1.xpose.msra.mxu0 0.0
    %3883 = vmatprep.subr.mxu0 0.0
    %3884 = vmatpush1.xpose.msra.mxu0 0.0
    %3885 = vmatprep.subr.mxu0 0.0
    %3886 = vmatpush1.xpose.msra.mxu0 0.0
    %3887 = vmatprep.subr.mxu0 0.0
    %3888 = vmatpush1.xpose.msra.mxu0 0.0
    %3889 = vmatprep.subr.mxu0 0.0
    %3890 = vmatpush1.xpose.msra.mxu0 0.0
    %3891 = vmatprep.subr.mxu0 0.0
    %3892 = vmatpush1.xpose.msra.mxu0 0.0
    %3893 = vmatprep.subr.mxu0 0.0
    %3894 = vmatpush1.xpose.msra.mxu0 0.0
    %3895 = vmatprep.subr.mxu0 0.0
    %3896 = vmatpush1.xpose.msra.mxu0 0.0
    %3897 = vmatprep.subr.mxu0 0.0
    %3898 = vmatpush1.xpose.msra.mxu0 0.0
    %3899 = vmatprep.subr.mxu0 0.0
    %3900 = vmatpush1.xpose.msra.mxu0 0.0
    %3901 = vmatprep.subr.mxu0 0.0
    %3902 = vmatpush1.xpose.msra.mxu0 0.0
    %3903 = vmatprep.subr.mxu0 0.0
    %3904 = vmatpush1.xpose.msra.mxu0 0.0
    %3905 = vmatprep.mubr.f32.mxu0 0.0
    %3906 = vmatmul.mubr.f32.gmra.mrb[0].mxu0 %v3827
    %v3907 = vpop.f32.mrb[0].mxu0
    %v3908 = vadd.f32 0.0, %v3907
    %v3909 = vpop.f32.mrb[0].mxu0
    %3910 = vdwg.mxu0
    %v3912 = vsel %vm287, %v648, 0
    %v3915 = vsel %vm287, %v3442, 0
    %v3918 = vsel %vm287, %v3443, 0
    %v3921 = vsel %vm287, %v3444, 0
    %v3924 = vsel %vm287, %v3445, 0
    %3926 = vmatprep.subr.mxu0 0.0
    %3927 = vmatpush1.xpose.msra.mxu0 %v3915
    %3928 = vmatprep.subr.mxu0 0.0
    %3929 = vmatpush1.xpose.msra.mxu0 %v3918
    %3930 = vmatprep.subr.mxu0 0.0
    %3931 = vmatpush1.xpose.msra.mxu0 %v3921
    %3932 = vmatprep.subr.mxu0 0.0
    %3933 = vmatpush1.xpose.msra.mxu0 %v3924
    %3934 = vmatprep.subr.mxu0 0.0
    %3935 = vmatpush1.xpose.msra.mxu0 0.0
    %3936 = vmatprep.subr.mxu0 0.0
    %3937 = vmatpush1.xpose.msra.mxu0 0.0
    %3938 = vmatprep.subr.mxu0 0.0
    %3939 = vmatpush1.xpose.msra.mxu0 0.0
    %3940 = vmatprep.subr.mxu0 0.0
    %3941 = vmatpush1.xpose.msra.mxu0 0.0
    %3942 = vmatprep.subr.mxu0 0.0
    %3943 = vmatpush1.xpose.msra.mxu0 0.0
    %3944 = vmatprep.subr.mxu0 0.0
    %3945 = vmatpush1.xpose.msra.mxu0 0.0
    %3946 = vmatprep.subr.mxu0 0.0
    %3947 = vmatpush1.xpose.msra.mxu0 0.0
    %3948 = vmatprep.subr.mxu0 0.0
    %3949 = vmatpush1.xpose.msra.mxu0 0.0
    %3950 = vmatprep.subr.mxu0 0.0
    %3951 = vmatpush1.xpose.msra.mxu0 0.0
    %3952 = vmatprep.subr.mxu0 0.0
    %3953 = vmatpush1.xpose.msra.mxu0 0.0
    %3954 = vmatprep.subr.mxu0 0.0
    %3955 = vmatpush1.xpose.msra.mxu0 0.0
    %3956 = vmatprep.subr.mxu0 0.0
    %3957 = vmatpush1.xpose.msra.mxu0 0.0
    %3958 = vmatprep.subr.mxu0 0.0
    %3959 = vmatpush1.xpose.msra.mxu0 0.0
    %3960 = vmatprep.subr.mxu0 0.0
    %3961 = vmatpush1.xpose.msra.mxu0 0.0
    %3962 = vmatprep.subr.mxu0 0.0
    %3963 = vmatpush1.xpose.msra.mxu0 0.0
    %3964 = vmatprep.subr.mxu0 0.0
    %3965 = vmatpush1.xpose.msra.mxu0 0.0
    %3966 = vmatprep.subr.mxu0 0.0
    %3967 = vmatpush1.xpose.msra.mxu0 0.0
    %3968 = vmatprep.subr.mxu0 0.0
    %3969 = vmatpush1.xpose.msra.mxu0 0.0
    %3970 = vmatprep.subr.mxu0 0.0
    %3971 = vmatpush1.xpose.msra.mxu0 0.0
    %3972 = vmatprep.subr.mxu0 0.0
    %3973 = vmatpush1.xpose.msra.mxu0 0.0
    %3974 = vmatprep.subr.mxu0 0.0
    %3975 = vmatpush1.xpose.msra.mxu0 0.0
    %3976 = vmatprep.subr.mxu0 0.0
    %3977 = vmatpush1.xpose.msra.mxu0 0.0
    %3978 = vmatprep.subr.mxu0 0.0
    %3979 = vmatpush1.xpose.msra.mxu0 0.0
    %3980 = vmatprep.subr.mxu0 0.0
    %3981 = vmatpush1.xpose.msra.mxu0 0.0
    %3982 = vmatprep.subr.mxu0 0.0
    %3983 = vmatpush1.xpose.msra.mxu0 0.0
    %3984 = vmatprep.subr.mxu0 0.0
    %3985 = vmatpush1.xpose.msra.mxu0 0.0
    %3986 = vmatprep.subr.mxu0 0.0
    %3987 = vmatpush1.xpose.msra.mxu0 0.0
    %3988 = vmatprep.subr.mxu0 0.0
    %3989 = vmatpush1.xpose.msra.mxu0 0.0
    %3990 = vmatprep.mubr.f32.mxu0 0.0
    %3991 = vmatmul.mubr.f32.gmra.mrb[0].mxu0 %v3912
    %v3992 = vpop.f32.mrb[0].mxu0
    %v3993 = vadd.f32 0.0, %v3992
    %v3994 = vpop.f32.mrb[0].mxu0
    %3995 = vdwg.mxu0
    %v3997 = vsel %vm287, %v653, 0
    %v4000 = vsel %vm287, %v3446, 0
    %v4003 = vsel %vm287, %v3447, 0
    %v4006 = vsel %vm287, %v3448, 0
    %v4009 = vsel %vm287, %v3449, 0
    %4011 = vmatprep.subr.mxu0 0.0
    %4012 = vmatpush1.xpose.msra.mxu0 %v4000
    %4013 = vmatprep.subr.mxu0 0.0
    %4014 = vmatpush1.xpose.msra.mxu0 %v4003
    %4015 = vmatprep.subr.mxu0 0.0
    %4016 = vmatpush1.xpose.msra.mxu0 %v4006
    %4017 = vmatprep.subr.mxu0 0.0
    %4018 = vmatpush1.xpose.msra.mxu0 %v4009
    %4019 = vmatprep.subr.mxu0 0.0
    %4020 = vmatpush1.xpose.msra.mxu0 0.0
    %4021 = vmatprep.subr.mxu0 0.0
    %4022 = vmatpush1.xpose.msra.mxu0 0.0
    %4023 = vmatprep.subr.mxu0 0.0
    %4024 = vmatpush1.xpose.msra.mxu0 0.0
    %4025 = vmatprep.subr.mxu0 0.0
    %4026 = vmatpush1.xpose.msra.mxu0 0.0
    %4027 = vmatprep.subr.mxu0 0.0
    %4028 = vmatpush1.xpose.msra.mxu0 0.0
    %4029 = vmatprep.subr.mxu0 0.0
    %4030 = vmatpush1.xpose.msra.mxu0 0.0
    %4031 = vmatprep.subr.mxu0 0.0
    %4032 = vmatpush1.xpose.msra.mxu0 0.0
    %4033 = vmatprep.subr.mxu0 0.0
    %4034 = vmatpush1.xpose.msra.mxu0 0.0
    %4035 = vmatprep.subr.mxu0 0.0
    %4036 = vmatpush1.xpose.msra.mxu0 0.0
    %4037 = vmatprep.subr.mxu0 0.0
    %4038 = vmatpush1.xpose.msra.mxu0 0.0
    %4039 = vmatprep.subr.mxu0 0.0
    %4040 = vmatpush1.xpose.msra.mxu0 0.0
    %4041 = vmatprep.subr.mxu0 0.0
    %4042 = vmatpush1.xpose.msra.mxu0 0.0
    %4043 = vmatprep.subr.mxu0 0.0
    %4044 = vmatpush1.xpose.msra.mxu0 0.0
    %4045 = vmatprep.subr.mxu0 0.0
    %4046 = vmatpush1.xpose.msra.mxu0 0.0
    %4047 = vmatprep.subr.mxu0 0.0
    %4048 = vmatpush1.xpose.msra.mxu0 0.0
    %4049 = vmatprep.subr.mxu0 0.0
    %4050 = vmatpush1.xpose.msra.mxu0 0.0
    %4051 = vmatprep.subr.mxu0 0.0
    %4052 = vmatpush1.xpose.msra.mxu0 0.0
    %4053 = vmatprep.subr.mxu0 0.0
    %4054 = vmatpush1.xpose.msra.mxu0 0.0
    %4055 = vmatprep.subr.mxu0 0.0
    %4056 = vmatpush1.xpose.msra.mxu0 0.0
    %4057 = vmatprep.subr.mxu0 0.0
    %4058 = vmatpush1.xpose.msra.mxu0 0.0
    %4059 = vmatprep.subr.mxu0 0.0
    %4060 = vmatpush1.xpose.msra.mxu0 0.0
    %4061 = vmatprep.subr.mxu0 0.0
    %4062 = vmatpush1.xpose.msra.mxu0 0.0
    %4063 = vmatprep.subr.mxu0 0.0
    %4064 = vmatpush1.xpose.msra.mxu0 0.0
    %4065 = vmatprep.subr.mxu0 0.0
    %4066 = vmatpush1.xpose.msra.mxu0 0.0
    %4067 = vmatprep.subr.mxu0 0.0
    %4068 = vmatpush1.xpose.msra.mxu0 0.0
    %4069 = vmatprep.subr.mxu0 0.0
    %4070 = vmatpush1.xpose.msra.mxu0 0.0
    %4071 = vmatprep.subr.mxu0 0.0
    %4072 = vmatpush1.xpose.msra.mxu0 0.0
    %4073 = vmatprep.subr.mxu0 0.0
    %4074 = vmatpush1.xpose.msra.mxu0 0.0
    %4075 = vmatprep.mubr.f32.mxu0 0.0
    %4076 = vmatmul.mubr.f32.gmra.mrb[0].mxu0 %v3997
    %v4077 = vpop.f32.mrb[0].mxu0
    %v4078 = vadd.f32 0.0, %v4077
    %v4079 = vpop.f32.mrb[0].mxu0
    %4080 = vdwg.mxu0
    %v4082 = vsel %vm287, %v658, 0
    %v4085 = vsel %vm287, %v3450, 0
    %v4088 = vsel %vm287, %v3451, 0
    %v4091 = vsel %vm287, %v3452, 0
    %v4094 = vsel %vm287, %v3453, 0
    %4096 = vmatprep.subr.mxu0 0.0
    %4097 = vmatpush1.xpose.msra.mxu0 %v4085
    %4098 = vmatprep.subr.mxu0 0.0
    %4099 = vmatpush1.xpose.msra.mxu0 %v4088
    %4100 = vmatprep.subr.mxu0 0.0
    %4101 = vmatpush1.xpose.msra.mxu0 %v4091
    %4102 = vmatprep.subr.mxu0 0.0
    %4103 = vmatpush1.xpose.msra.mxu0 %v4094
    %4104 = vmatprep.subr.mxu0 0.0
    %4105 = vmatpush1.xpose.msra.mxu0 0.0
    %4106 = vmatprep.subr.mxu0 0.0
    %4107 = vmatpush1.xpose.msra.mxu0 0.0
    %4108 = vmatprep.subr.mxu0 0.0
    %4109 = vmatpush1.xpose.msra.mxu0 0.0
    %4110 = vmatprep.subr.mxu0 0.0
    %4111 = vmatpush1.xpose.msra.mxu0 0.0
    %4112 = vmatprep.subr.mxu0 0.0
    %4113 = vmatpush1.xpose.msra.mxu0 0.0
    %4114 = vmatprep.subr.mxu0 0.0
    %4115 = vmatpush1.xpose.msra.mxu0 0.0
    %4116 = vmatprep.subr.mxu0 0.0
    %4117 = vmatpush1.xpose.msra.mxu0 0.0
    %4118 = vmatprep.subr.mxu0 0.0
    %4119 = vmatpush1.xpose.msra.mxu0 0.0
    %4120 = vmatprep.subr.mxu0 0.0
    %4121 = vmatpush1.xpose.msra.mxu0 0.0
    %4122 = vmatprep.subr.mxu0 0.0
    %4123 = vmatpush1.xpose.msra.mxu0 0.0
    %4124 = vmatprep.subr.mxu0 0.0
    %4125 = vmatpush1.xpose.msra.mxu0 0.0
    %4126 = vmatprep.subr.mxu0 0.0
    %4127 = vmatpush1.xpose.msra.mxu0 0.0
    %4128 = vmatprep.subr.mxu0 0.0
    %4129 = vmatpush1.xpose.msra.mxu0 0.0
    %4130 = vmatprep.subr.mxu0 0.0
    %4131 = vmatpush1.xpose.msra.mxu0 0.0
    %4132 = vmatprep.subr.mxu0 0.0
    %4133 = vmatpush1.xpose.msra.mxu0 0.0
    %4134 = vmatprep.subr.mxu0 0.0
    %4135 = vmatpush1.xpose.msra.mxu0 0.0
    %4136 = vmatprep.subr.mxu0 0.0
    %4137 = vmatpush1.xpose.msra.mxu0 0.0
    %4138 = vmatprep.subr.mxu0 0.0
    %4139 = vmatpush1.xpose.msra.mxu0 0.0
    %4140 = vmatprep.subr.mxu0 0.0
    %4141 = vmatpush1.xpose.msra.mxu0 0.0
    %4142 = vmatprep.subr.mxu0 0.0
    %4143 = vmatpush1.xpose.msra.mxu0 0.0
    %4144 = vmatprep.subr.mxu0 0.0
    %4145 = vmatpush1.xpose.msra.mxu0 0.0
    %4146 = vmatprep.subr.mxu0 0.0
    %4147 = vmatpush1.xpose.msra.mxu0 0.0
    %4148 = vmatprep.subr.mxu0 0.0
    %4149 = vmatpush1.xpose.msra.mxu0 0.0
    %4150 = vmatprep.subr.mxu0 0.0
    %4151 = vmatpush1.xpose.msra.mxu0 0.0
    %4152 = vmatprep.subr.mxu0 0.0
    %4153 = vmatpush1.xpose.msra.mxu0 0.0
    %4154 = vmatprep.subr.mxu0 0.0
    %4155 = vmatpush1.xpose.msra.mxu0 0.0
    %4156 = vmatprep.subr.mxu0 0.0
    %4157 = vmatpush1.xpose.msra.mxu0 0.0
    %4158 = vmatprep.subr.mxu0 0.0
    %4159 = vmatpush1.xpose.msra.mxu0 0.0
    %4160 = vmatprep.mubr.f32.mxu0 0.0
    %4161 = vmatmul.mubr.f32.gmra.mrb[0].mxu0 %v4082
    %v4162 = vpop.f32.mrb[0].mxu0
    %v4163 = vadd.f32 0.0, %v4162
    %v4164 = vpop.f32.mrb[0].mxu0
    %4165 = vdwg.mxu0
    %v4167 = vsel %vm287, %v663, 0
    %v4170 = vsel %vm287, %v3454, 0
    %v4173 = vsel %vm287, %v3455, 0
    %v4176 = vsel %vm287, %v3456, 0
    %v4179 = vsel %vm287, %v3457, 0
    %4181 = vmatprep.subr.mxu0 0.0
    %4182 = vmatpush1.xpose.msra.mxu0 %v4170
    %4183 = vmatprep.subr.mxu0 0.0
    %4184 = vmatpush1.xpose.msra.mxu0 %v4173
    %4185 = vmatprep.subr.mxu0 0.0
    %4186 = vmatpush1.xpose.msra.mxu0 %v4176
    %4187 = vmatprep.subr.mxu0 0.0
    %4188 = vmatpush1.xpose.msra.mxu0 %v4179
    %4189 = vmatprep.subr.mxu0 0.0
    %4190 = vmatpush1.xpose.msra.mxu0 0.0
    %4191 = vmatprep.subr.mxu0 0.0
    %4192 = vmatpush1.xpose.msra.mxu0 0.0
    %4193 = vmatprep.subr.mxu0 0.0
    %4194 = vmatpush1.xpose.msra.mxu0 0.0
    %4195 = vmatprep.subr.mxu0 0.0
    %4196 = vmatpush1.xpose.msra.mxu0 0.0
    %4197 = vmatprep.subr.mxu0 0.0
    %4198 = vmatpush1.xpose.msra.mxu0 0.0
    %4199 = vmatprep.subr.mxu0 0.0
    %4200 = vmatpush1.xpose.msra.mxu0 0.0
    %4201 = vmatprep.subr.mxu0 0.0
    %4202 = vmatpush1.xpose.msra.mxu0 0.0
    %4203 = vmatprep.subr.mxu0 0.0
    %4204 = vmatpush1.xpose.msra.mxu0 0.0
    %4205 = vmatprep.subr.mxu0 0.0
    %4206 = vmatpush1.xpose.msra.mxu0 0.0
    %4207 = vmatprep.subr.mxu0 0.0
    %4208 = vmatpush1.xpose.msra.mxu0 0.0
    %4209 = vmatprep.subr.mxu0 0.0
    %4210 = vmatpush1.xpose.msra.mxu0 0.0
    %4211 = vmatprep.subr.mxu0 0.0
    %4212 = vmatpush1.xpose.msra.mxu0 0.0
    %4213 = vmatprep.subr.mxu0 0.0
    %4214 = vmatpush1.xpose.msra.mxu0 0.0
    %4215 = vmatprep.subr.mxu0 0.0
    %4216 = vmatpush1.xpose.msra.mxu0 0.0
    %4217 = vmatprep.subr.mxu0 0.0
    %4218 = vmatpush1.xpose.msra.mxu0 0.0
    %4219 = vmatprep.subr.mxu0 0.0
    %4220 = vmatpush1.xpose.msra.mxu0 0.0
    %4221 = vmatprep.subr.mxu0 0.0
    %4222 = vmatpush1.xpose.msra.mxu0 0.0
    %4223 = vmatprep.subr.mxu0 0.0
    %4224 = vmatpush1.xpose.msra.mxu0 0.0
    %4225 = vmatprep.subr.mxu0 0.0
    %4226 = vmatpush1.xpose.msra.mxu0 0.0
    %4227 = vmatprep.subr.mxu0 0.0
    %4228 = vmatpush1.xpose.msra.mxu0 0.0
    %4229 = vmatprep.subr.mxu0 0.0
    %4230 = vmatpush1.xpose.msra.mxu0 0.0
    %4231 = vmatprep.subr.mxu0 0.0
    %4232 = vmatpush1.xpose.msra.mxu0 0.0
    %4233 = vmatprep.subr.mxu0 0.0
    %4234 = vmatpush1.xpose.msra.mxu0 0.0
    %4235 = vmatprep.subr.mxu0 0.0
    %4236 = vmatpush1.xpose.msra.mxu0 0.0
    %4237 = vmatprep.subr.mxu0 0.0
    %4238 = vmatpush1.xpose.msra.mxu0 0.0
    %4239 = vmatprep.subr.mxu0 0.0
    %4240 = vmatpush1.xpose.msra.mxu0 0.0
    %4241 = vmatprep.subr.mxu0 0.0
    %4242 = vmatpush1.xpose.msra.mxu0 0.0
    %4243 = vmatprep.subr.mxu0 0.0
    %4244 = vmatpush1.xpose.msra.mxu0 0.0
    %4245 = vmatprep.mubr.f32.mxu0 0.0
    %4246 = vmatmul.mubr.f32.gmra.mrb[0].mxu0 %v4167
    %v4247 = vpop.f32.mrb[0].mxu0
    %v4248 = vadd.f32 0.0, %v4247
    %v4249 = vpop.f32.mrb[0].mxu0
    %4250 = vdwg.mxu0
    %v4252 = vsel %vm287, %v668, 0
    %v4255 = vsel %vm287, %v3458, 0
    %v4258 = vsel %vm287, %v3459, 0
    %v4261 = vsel %vm287, %v3460, 0
    %v4264 = vsel %vm287, %v3461, 0
    %4266 = vmatprep.subr.mxu0 0.0
    %4267 = vmatpush1.xpose.msra.mxu0 %v4255
    %4268 = vmatprep.subr.mxu0 0.0
    %4269 = vmatpush1.xpose.msra.mxu0 %v4258
    %4270 = vmatprep.subr.mxu0 0.0
    %4271 = vmatpush1.xpose.msra.mxu0 %v4261
    %4272 = vmatprep.subr.mxu0 0.0
    %4273 = vmatpush1.xpose.msra.mxu0 %v4264
    %4274 = vmatprep.subr.mxu0 0.0
    %4275 = vmatpush1.xpose.msra.mxu0 0.0
    %4276 = vmatprep.subr.mxu0 0.0
    %4277 = vmatpush1.xpose.msra.mxu0 0.0
    %4278 = vmatprep.subr.mxu0 0.0
    %4279 = vmatpush1.xpose.msra.mxu0 0.0
    %4280 = vmatprep.subr.mxu0 0.0
    %4281 = vmatpush1.xpose.msra.mxu0 0.0
    %4282 = vmatprep.subr.mxu0 0.0
    %4283 = vmatpush1.xpose.msra.mxu0 0.0
    %4284 = vmatprep.subr.mxu0 0.0
    %4285 = vmatpush1.xpose.msra.mxu0 0.0
    %4286 = vmatprep.subr.mxu0 0.0
    %4287 = vmatpush1.xpose.msra.mxu0 0.0
    %4288 = vmatprep.subr.mxu0 0.0
    %4289 = vmatpush1.xpose.msra.mxu0 0.0
    %4290 = vmatprep.subr.mxu0 0.0
    %4291 = vmatpush1.xpose.msra.mxu0 0.0
    %4292 = vmatprep.subr.mxu0 0.0
    %4293 = vmatpush1.xpose.msra.mxu0 0.0
    %4294 = vmatprep.subr.mxu0 0.0
    %4295 = vmatpush1.xpose.msra.mxu0 0.0
    %4296 = vmatprep.subr.mxu0 0.0
    %4297 = vmatpush1.xpose.msra.mxu0 0.0
    %4298 = vmatprep.subr.mxu0 0.0
    %4299 = vmatpush1.xpose.msra.mxu0 0.0
    %4300 = vmatprep.subr.mxu0 0.0
    %4301 = vmatpush1.xpose.msra.mxu0 0.0
    %4302 = vmatprep.subr.mxu0 0.0
    %4303 = vmatpush1.xpose.msra.mxu0 0.0
    %4304 = vmatprep.subr.mxu0 0.0
    %4305 = vmatpush1.xpose.msra.mxu0 0.0
    %4306 = vmatprep.subr.mxu0 0.0
    %4307 = vmatpush1.xpose.msra.mxu0 0.0
    %4308 = vmatprep.subr.mxu0 0.0
    %4309 = vmatpush1.xpose.msra.mxu0 0.0
    %4310 = vmatprep.subr.mxu0 0.0
    %4311 = vmatpush1.xpose.msra.mxu0 0.0
    %4312 = vmatprep.subr.mxu0 0.0
    %4313 = vmatpush1.xpose.msra.mxu0 0.0
    %4314 = vmatprep.subr.mxu0 0.0
    %4315 = vmatpush1.xpose.msra.mxu0 0.0
    %4316 = vmatprep.subr.mxu0 0.0
    %4317 = vmatpush1.xpose.msra.mxu0 0.0
    %4318 = vmatprep.subr.mxu0 0.0
    %4319 = vmatpush1.xpose.msra.mxu0 0.0
    %4320 = vmatprep.subr.mxu0 0.0
    %4321 = vmatpush1.xpose.msra.mxu0 0.0
    %4322 = vmatprep.subr.mxu0 0.0
    %4323 = vmatpush1.xpose.msra.mxu0 0.0
    %4324 = vmatprep.subr.mxu0 0.0
    %4325 = vmatpush1.xpose.msra.mxu0 0.0
    %4326 = vmatprep.subr.mxu0 0.0
    %4327 = vmatpush1.xpose.msra.mxu0 0.0
    %4328 = vmatprep.subr.mxu0 0.0
    %4329 = vmatpush1.xpose.msra.mxu0 0.0
    %4330 = vmatprep.mubr.f32.mxu0 0.0
    %4331 = vmatmul.mubr.f32.gmra.mrb[0].mxu0 %v4252
    %v4332 = vpop.f32.mrb[0].mxu0
    %v4333 = vadd.f32 0.0, %v4332
    %v4334 = vpop.f32.mrb[0].mxu0
    %4335 = vdwg.mxu0
    %v4337 = vsel %vm287, %v673, 0
    %v4340 = vsel %vm287, %v3462, 0
    %v4343 = vsel %vm287, %v3463, 0
    %v4346 = vsel %vm287, %v3464, 0
    %v4349 = vsel %vm287, %v3465, 0
    %4351 = vmatprep.subr.mxu0 0.0
    %4352 = vmatpush1.xpose.msra.mxu0 %v4340
    %4353 = vmatprep.subr.mxu0 0.0
    %4354 = vmatpush1.xpose.msra.mxu0 %v4343
    %4355 = vmatprep.subr.mxu0 0.0
    %4356 = vmatpush1.xpose.msra.mxu0 %v4346
    %4357 = vmatprep.subr.mxu0 0.0
    %4358 = vmatpush1.xpose.msra.mxu0 %v4349
    %4359 = vmatprep.subr.mxu0 0.0
    %4360 = vmatpush1.xpose.msra.mxu0 0.0
    %4361 = vmatprep.subr.mxu0 0.0
    %4362 = vmatpush1.xpose.msra.mxu0 0.0
    %4363 = vmatprep.subr.mxu0 0.0
    %4364 = vmatpush1.xpose.msra.mxu0 0.0
    %4365 = vmatprep.subr.mxu0 0.0
    %4366 = vmatpush1.xpose.msra.mxu0 0.0
    %4367 = vmatprep.subr.mxu0 0.0
    %4368 = vmatpush1.xpose.msra.mxu0 0.0
    %4369 = vmatprep.subr.mxu0 0.0
    %4370 = vmatpush1.xpose.msra.mxu0 0.0
    %4371 = vmatprep.subr.mxu0 0.0
    %4372 = vmatpush1.xpose.msra.mxu0 0.0
    %4373 = vmatprep.subr.mxu0 0.0
    %4374 = vmatpush1.xpose.msra.mxu0 0.0
    %4375 = vmatprep.subr.mxu0 0.0
    %4376 = vmatpush1.xpose.msra.mxu0 0.0
    %4377 = vmatprep.subr.mxu0 0.0
    %4378 = vmatpush1.xpose.msra.mxu0 0.0
    %4379 = vmatprep.subr.mxu0 0.0
    %4380 = vmatpush1.xpose.msra.mxu0 0.0
    %4381 = vmatprep.subr.mxu0 0.0
    %4382 = vmatpush1.xpose.msra.mxu0 0.0
    %4383 = vmatprep.subr.mxu0 0.0
    %4384 = vmatpush1.xpose.msra.mxu0 0.0
    %4385 = vmatprep.subr.mxu0 0.0
    %4386 = vmatpush1.xpose.msra.mxu0 0.0
    %4387 = vmatprep.subr.mxu0 0.0
    %4388 = vmatpush1.xpose.msra.mxu0 0.0
    %4389 = vmatprep.subr.mxu0 0.0
    %4390 = vmatpush1.xpose.msra.mxu0 0.0
    %4391 = vmatprep.subr.mxu0 0.0
    %4392 = vmatpush1.xpose.msra.mxu0 0.0
    %4393 = vmatprep.subr.mxu0 0.0
    %4394 = vmatpush1.xpose.msra.mxu0 0.0
    %4395 = vmatprep.subr.mxu0 0.0
    %4396 = vmatpush1.xpose.msra.mxu0 0.0
    %4397 = vmatprep.subr.mxu0 0.0
    %4398 = vmatpush1.xpose.msra.mxu0 0.0
    %4399 = vmatprep.subr.mxu0 0.0
    %4400 = vmatpush1.xpose.msra.mxu0 0.0
    %4401 = vmatprep.subr.mxu0 0.0
    %4402 = vmatpush1.xpose.msra.mxu0 0.0
    %4403 = vmatprep.subr.mxu0 0.0
    %4404 = vmatpush1.xpose.msra.mxu0 0.0
    %4405 = vmatprep.subr.mxu0 0.0
    %4406 = vmatpush1.xpose.msra.mxu0 0.0
    %4407 = vmatprep.subr.mxu0 0.0
    %4408 = vmatpush1.xpose.msra.mxu0 0.0
    %4409 = vmatprep.subr.mxu0 0.0
    %4410 = vmatpush1.xpose.msra.mxu0 0.0
    %4411 = vmatprep.subr.mxu0 0.0
    %4412 = vmatpush1.xpose.msra.mxu0 0.0
    %4413 = vmatprep.subr.mxu0 0.0
    %4414 = vmatpush1.xpose.msra.mxu0 0.0
    %4415 = vmatprep.mubr.f32.mxu0 0.0
    %4416 = vmatmul.mubr.f32.gmra.mrb[0].mxu0 %v4337
    %v4417 = vpop.f32.mrb[0].mxu0
    %v4418 = vadd.f32 0.0, %v4417
    %v4419 = vpop.f32.mrb[0].mxu0
    %4420 = vdwg.mxu0
    %v4422 = vsel %vm287, %v678, 0
    %v4425 = vsel %vm287, %v3466, 0
    %v4428 = vsel %vm287, %v3467, 0
    %v4431 = vsel %vm287, %v3468, 0
    %v4434 = vsel %vm287, %v3469, 0
    %4436 = vmatprep.subr.mxu0 0.0
    %4437 = vmatpush1.xpose.msra.mxu0 %v4425
    %4438 = vmatprep.subr.mxu0 0.0
    %4439 = vmatpush1.xpose.msra.mxu0 %v4428
    %4440 = vmatprep.subr.mxu0 0.0
    %4441 = vmatpush1.xpose.msra.mxu0 %v4431
    %4442 = vmatprep.subr.mxu0 0.0
    %4443 = vmatpush1.xpose.msra.mxu0 %v4434
    %4444 = vmatprep.subr.mxu0 0.0
    %4445 = vmatpush1.xpose.msra.mxu0 0.0
    %4446 = vmatprep.subr.mxu0 0.0
    %4447 = vmatpush1.xpose.msra.mxu0 0.0
    %4448 = vmatprep.subr.mxu0 0.0
    %4449 = vmatpush1.xpose.msra.mxu0 0.0
    %4450 = vmatprep.subr.mxu0 0.0
    %4451 = vmatpush1.xpose.msra.mxu0 0.0
    %4452 = vmatprep.subr.mxu0 0.0
    %4453 = vmatpush1.xpose.msra.mxu0 0.0
    %4454 = vmatprep.subr.mxu0 0.0
    %4455 = vmatpush1.xpose.msra.mxu0 0.0
    %4456 = vmatprep.subr.mxu0 0.0
    %4457 = vmatpush1.xpose.msra.mxu0 0.0
    %4458 = vmatprep.subr.mxu0 0.0
    %4459 = vmatpush1.xpose.msra.mxu0 0.0
    %4460 = vmatprep.subr.mxu0 0.0
    %4461 = vmatpush1.xpose.msra.mxu0 0.0
    %4462 = vmatprep.subr.mxu0 0.0
    %4463 = vmatpush1.xpose.msra.mxu0 0.0
    %4464 = vmatprep.subr.mxu0 0.0
    %4465 = vmatpush1.xpose.msra.mxu0 0.0
    %4466 = vmatprep.subr.mxu0 0.0
    %4467 = vmatpush1.xpose.msra.mxu0 0.0
    %4468 = vmatprep.subr.mxu0 0.0
    %4469 = vmatpush1.xpose.msra.mxu0 0.0
    %4470 = vmatprep.subr.mxu0 0.0
    %4471 = vmatpush1.xpose.msra.mxu0 0.0
    %4472 = vmatprep.subr.mxu0 0.0
    %4473 = vmatpush1.xpose.msra.mxu0 0.0
    %4474 = vmatprep.subr.mxu0 0.0
    %4475 = vmatpush1.xpose.msra.mxu0 0.0
    %4476 = vmatprep.subr.mxu0 0.0
    %4477 = vmatpush1.xpose.msra.mxu0 0.0
    %4478 = vmatprep.subr.mxu0 0.0
    %4479 = vmatpush1.xpose.msra.mxu0 0.0
    %4480 = vmatprep.subr.mxu0 0.0
    %4481 = vmatpush1.xpose.msra.mxu0 0.0
    %4482 = vmatprep.subr.mxu0 0.0
    %4483 = vmatpush1.xpose.msra.mxu0 0.0
    %4484 = vmatprep.subr.mxu0 0.0
    %4485 = vmatpush1.xpose.msra.mxu0 0.0
    %4486 = vmatprep.subr.mxu0 0.0
    %4487 = vmatpush1.xpose.msra.mxu0 0.0
    %4488 = vmatprep.subr.mxu0 0.0
    %4489 = vmatpush1.xpose.msra.mxu0 0.0
    %4490 = vmatprep.subr.mxu0 0.0
    %4491 = vmatpush1.xpose.msra.mxu0 0.0
    %4492 = vmatprep.subr.mxu0 0.0
    %4493 = vmatpush1.xpose.msra.mxu0 0.0
    %4494 = vmatprep.subr.mxu0 0.0
    %4495 = vmatpush1.xpose.msra.mxu0 0.0
    %4496 = vmatprep.subr.mxu0 0.0
    %4497 = vmatpush1.xpose.msra.mxu0 0.0
    %4498 = vmatprep.subr.mxu0 0.0
    %4499 = vmatpush1.xpose.msra.mxu0 0.0
    %4500 = vmatprep.mubr.f32.mxu0 0.0
    %4501 = vmatmul.mubr.f32.gmra.mrb[0].mxu0 %v4422
    %v4502 = vpop.f32.mrb[0].mxu0
    %v4503 = vadd.f32 0.0, %v4502
    %v4504 = vpop.f32.mrb[0].mxu0
    %4505 = vdwg.mxu0
    %v4507 = vsel %vm287, %v683, 0
    %v4510 = vsel %vm287, %v3470, 0
    %v4513 = vsel %vm287, %v3471, 0
    %v4516 = vsel %vm287, %v3472, 0
    %v4519 = vsel %vm287, %v3473, 0
    %4521 = vmatprep.subr.mxu0 0.0
    %4522 = vmatpush1.xpose.msra.mxu0 %v4510
    %4523 = vmatprep.subr.mxu0 0.0
    %4524 = vmatpush1.xpose.msra.mxu0 %v4513
    %4525 = vmatprep.subr.mxu0 0.0
    %4526 = vmatpush1.xpose.msra.mxu0 %v4516
    %4527 = vmatprep.subr.mxu0 0.0
    %4528 = vmatpush1.xpose.msra.mxu0 %v4519
    %4529 = vmatprep.subr.mxu0 0.0
    %4530 = vmatpush1.xpose.msra.mxu0 0.0
    %4531 = vmatprep.subr.mxu0 0.0
    %4532 = vmatpush1.xpose.msra.mxu0 0.0
    %4533 = vmatprep.subr.mxu0 0.0
    %4534 = vmatpush1.xpose.msra.mxu0 0.0
    %4535 = vmatprep.subr.mxu0 0.0
    %4536 = vmatpush1.xpose.msra.mxu0 0.0
    %4537 = vmatprep.subr.mxu0 0.0
    %4538 = vmatpush1.xpose.msra.mxu0 0.0
    %4539 = vmatprep.subr.mxu0 0.0
    %4540 = vmatpush1.xpose.msra.mxu0 0.0
    %4541 = vmatprep.subr.mxu0 0.0
    %4542 = vmatpush1.xpose.msra.mxu0 0.0
    %4543 = vmatprep.subr.mxu0 0.0
    %4544 = vmatpush1.xpose.msra.mxu0 0.0
    %4545 = vmatprep.subr.mxu0 0.0
    %4546 = vmatpush1.xpose.msra.mxu0 0.0
    %4547 = vmatprep.subr.mxu0 0.0
    %4548 = vmatpush1.xpose.msra.mxu0 0.0
    %4549 = vmatprep.subr.mxu0 0.0
    %4550 = vmatpush1.xpose.msra.mxu0 0.0
    %4551 = vmatprep.subr.mxu0 0.0
    %4552 = vmatpush1.xpose.msra.mxu0 0.0
    %4553 = vmatprep.subr.mxu0 0.0
    %4554 = vmatpush1.xpose.msra.mxu0 0.0
    %4555 = vmatprep.subr.mxu0 0.0
    %4556 = vmatpush1.xpose.msra.mxu0 0.0
    %4557 = vmatprep.subr.mxu0 0.0
    %4558 = vmatpush1.xpose.msra.mxu0 0.0
    %4559 = vmatprep.subr.mxu0 0.0
    %4560 = vmatpush1.xpose.msra.mxu0 0.0
    %4561 = vmatprep.subr.mxu0 0.0
    %4562 = vmatpush1.xpose.msra.mxu0 0.0
    %4563 = vmatprep.subr.mxu0 0.0
    %4564 = vmatpush1.xpose.msra.mxu0 0.0
    %4565 = vmatprep.subr.mxu0 0.0
    %4566 = vmatpush1.xpose.msra.mxu0 0.0
    %4567 = vmatprep.subr.mxu0 0.0
    %4568 = vmatpush1.xpose.msra.mxu0 0.0
    %4569 = vmatprep.subr.mxu0 0.0
    %4570 = vmatpush1.xpose.msra.mxu0 0.0
    %4571 = vmatprep.subr.mxu0 0.0
    %4572 = vmatpush1.xpose.msra.mxu0 0.0
    %4573 = vmatprep.subr.mxu0 0.0
    %4574 = vmatpush1.xpose.msra.mxu0 0.0
    %4575 = vmatprep.subr.mxu0 0.0
    %4576 = vmatpush1.xpose.msra.mxu0 0.0
    %4577 = vmatprep.subr.mxu0 0.0
    %4578 = vmatpush1.xpose.msra.mxu0 0.0
    %4579 = vmatprep.subr.mxu0 0.0
    %4580 = vmatpush1.xpose.msra.mxu0 0.0
    %4581 = vmatprep.subr.mxu0 0.0
    %4582 = vmatpush1.xpose.msra.mxu0 0.0
    %4583 = vmatprep.subr.mxu0 0.0
    %4584 = vmatpush1.xpose.msra.mxu0 0.0
    %4585 = vmatprep.mubr.f32.mxu0 0.0
    %4586 = vmatmul.mubr.f32.gmra.mrb[0].mxu0 %v4507
    %v4587 = vpop.f32.mrb[0].mxu0
    %v4588 = vadd.f32 0.0, %v4587
    %v4589 = vpop.f32.mrb[0].mxu0
    %4590 = vdwg.mxu0
    %v4592 = vsel %vm287, %v688, 0
    %v4595 = vsel %vm287, %v3474, 0
    %v4598 = vsel %vm287, %v3475, 0
    %v4601 = vsel %vm287, %v3476, 0
    %v4604 = vsel %vm287, %v3477, 0
    %4606 = vmatprep.subr.mxu0 0.0
    %4607 = vmatpush1.xpose.msra.mxu0 %v4595
    %4608 = vmatprep.subr.mxu0 0.0
    %4609 = vmatpush1.xpose.msra.mxu0 %v4598
    %4610 = vmatprep.subr.mxu0 0.0
    %4611 = vmatpush1.xpose.msra.mxu0 %v4601
    %4612 = vmatprep.subr.mxu0 0.0
    %4613 = vmatpush1.xpose.msra.mxu0 %v4604
    %4614 = vmatprep.subr.mxu0 0.0
    %4615 = vmatpush1.xpose.msra.mxu0 0.0
    %4616 = vmatprep.subr.mxu0 0.0
    %4617 = vmatpush1.xpose.msra.mxu0 0.0
    %4618 = vmatprep.subr.mxu0 0.0
    %4619 = vmatpush1.xpose.msra.mxu0 0.0
    %4620 = vmatprep.subr.mxu0 0.0
    %4621 = vmatpush1.xpose.msra.mxu0 0.0
    %4622 = vmatprep.subr.mxu0 0.0
    %4623 = vmatpush1.xpose.msra.mxu0 0.0
    %4624 = vmatprep.subr.mxu0 0.0
    %4625 = vmatpush1.xpose.msra.mxu0 0.0
    %4626 = vmatprep.subr.mxu0 0.0
    %4627 = vmatpush1.xpose.msra.mxu0 0.0
    %4628 = vmatprep.subr.mxu0 0.0
    %4629 = vmatpush1.xpose.msra.mxu0 0.0
    %4630 = vmatprep.subr.mxu0 0.0
    %4631 = vmatpush1.xpose.msra.mxu0 0.0
    %4632 = vmatprep.subr.mxu0 0.0
    %4633 = vmatpush1.xpose.msra.mxu0 0.0
    %4634 = vmatprep.subr.mxu0 0.0
    %4635 = vmatpush1.xpose.msra.mxu0 0.0
    %4636 = vmatprep.subr.mxu0 0.0
    %4637 = vmatpush1.xpose.msra.mxu0 0.0
    %4638 = vmatprep.subr.mxu0 0.0
    %4639 = vmatpush1.xpose.msra.mxu0 0.0
    %4640 = vmatprep.subr.mxu0 0.0
    %4641 = vmatpush1.xpose.msra.mxu0 0.0
    %4642 = vmatprep.subr.mxu0 0.0
    %4643 = vmatpush1.xpose.msra.mxu0 0.0
    %4644 = vmatprep.subr.mxu0 0.0
    %4645 = vmatpush1.xpose.msra.mxu0 0.0
    %4646 = vmatprep.subr.mxu0 0.0
    %4647 = vmatpush1.xpose.msra.mxu0 0.0
    %4648 = vmatprep.subr.mxu0 0.0
    %4649 = vmatpush1.xpose.msra.mxu0 0.0
    %4650 = vmatprep.subr.mxu0 0.0
    %4651 = vmatpush1.xpose.msra.mxu0 0.0
    %4652 = vmatprep.subr.mxu0 0.0
    %4653 = vmatpush1.xpose.msra.mxu0 0.0
    %4654 = vmatprep.subr.mxu0 0.0
    %4655 = vmatpush1.xpose.msra.mxu0 0.0
    %4656 = vmatprep.subr.mxu0 0.0
    %4657 = vmatpush1.xpose.msra.mxu0 0.0
    %4658 = vmatprep.subr.mxu0 0.0
    %4659 = vmatpush1.xpose.msra.mxu0 0.0
    %4660 = vmatprep.subr.mxu0 0.0
    %4661 = vmatpush1.xpose.msra.mxu0 0.0
    %4662 = vmatprep.subr.mxu0 0.0
    %4663 = vmatpush1.xpose.msra.mxu0 0.0
    %4664 = vmatprep.subr.mxu0 0.0
    %4665 = vmatpush1.xpose.msra.mxu0 0.0
    %4666 = vmatprep.subr.mxu0 0.0
    %4667 = vmatpush1.xpose.msra.mxu0 0.0
    %4668 = vmatprep.subr.mxu0 0.0
    %4669 = vmatpush1.xpose.msra.mxu0 0.0
    %4670 = vmatprep.mubr.f32.mxu0 0.0
    %4671 = vmatmul.mubr.f32.gmra.mrb[0].mxu0 %v4592
    %v4672 = vpop.f32.mrb[0].mxu0
    %v4673 = vadd.f32 0.0, %v4672
    %v4674 = vpop.f32.mrb[0].mxu0
    %4675 = vdwg.mxu0
    %v4677 = vsel %vm287, %v693, 0
    %v4680 = vsel %vm287, %v3478, 0
    %v4683 = vsel %vm287, %v3479, 0
    %v4686 = vsel %vm287, %v3480, 0
    %v4689 = vsel %vm287, %v3481, 0
    %4691 = vmatprep.subr.mxu0 0.0
    %4692 = vmatpush1.xpose.msra.mxu0 %v4680
    %4693 = vmatprep.subr.mxu0 0.0
    %4694 = vmatpush1.xpose.msra.mxu0 %v4683
    %4695 = vmatprep.subr.mxu0 0.0
    %4696 = vmatpush1.xpose.msra.mxu0 %v4686
    %4697 = vmatprep.subr.mxu0 0.0
    %4698 = vmatpush1.xpose.msra.mxu0 %v4689
    %4699 = vmatprep.subr.mxu0 0.0
    %4700 = vmatpush1.xpose.msra.mxu0 0.0
    %4701 = vmatprep.subr.mxu0 0.0
    %4702 = vmatpush1.xpose.msra.mxu0 0.0
    %4703 = vmatprep.subr.mxu0 0.0
    %4704 = vmatpush1.xpose.msra.mxu0 0.0
    %4705 = vmatprep.subr.mxu0 0.0
    %4706 = vmatpush1.xpose.msra.mxu0 0.0
    %4707 = vmatprep.subr.mxu0 0.0
    %4708 = vmatpush1.xpose.msra.mxu0 0.0
    %4709 = vmatprep.subr.mxu0 0.0
    %4710 = vmatpush1.xpose.msra.mxu0 0.0
    %4711 = vmatprep.subr.mxu0 0.0
    %4712 = vmatpush1.xpose.msra.mxu0 0.0
    %4713 = vmatprep.subr.mxu0 0.0
    %4714 = vmatpush1.xpose.msra.mxu0 0.0
    %4715 = vmatprep.subr.mxu0 0.0
    %4716 = vmatpush1.xpose.msra.mxu0 0.0
    %4717 = vmatprep.subr.mxu0 0.0
    %4718 = vmatpush1.xpose.msra.mxu0 0.0
    %4719 = vmatprep.subr.mxu0 0.0
    %4720 = vmatpush1.xpose.msra.mxu0 0.0
    %4721 = vmatprep.subr.mxu0 0.0
    %4722 = vmatpush1.xpose.msra.mxu0 0.0
    %4723 = vmatprep.subr.mxu0 0.0
    %4724 = vmatpush1.xpose.msra.mxu0 0.0
    %4725 = vmatprep.subr.mxu0 0.0
    %4726 = vmatpush1.xpose.msra.mxu0 0.0
    %4727 = vmatprep.subr.mxu0 0.0
    %4728 = vmatpush1.xpose.msra.mxu0 0.0
    %4729 = vmatprep.subr.mxu0 0.0
    %4730 = vmatpush1.xpose.msra.mxu0 0.0
    %4731 = vmatprep.subr.mxu0 0.0
    %4732 = vmatpush1.xpose.msra.mxu0 0.0
    %4733 = vmatprep.subr.mxu0 0.0
    %4734 = vmatpush1.xpose.msra.mxu0 0.0
    %4735 = vmatprep.subr.mxu0 0.0
    %4736 = vmatpush1.xpose.msra.mxu0 0.0
    %4737 = vmatprep.subr.mxu0 0.0
    %4738 = vmatpush1.xpose.msra.mxu0 0.0
    %4739 = vmatprep.subr.mxu0 0.0
    %4740 = vmatpush1.xpose.msra.mxu0 0.0
    %4741 = vmatprep.subr.mxu0 0.0
    %4742 = vmatpush1.xpose.msra.mxu0 0.0
    %4743 = vmatprep.subr.mxu0 0.0
    %4744 = vmatpush1.xpose.msra.mxu0 0.0
    %4745 = vmatprep.subr.mxu0 0.0
    %4746 = vmatpush1.xpose.msra.mxu0 0.0
    %4747 = vmatprep.subr.mxu0 0.0
    %4748 = vmatpush1.xpose.msra.mxu0 0.0
    %4749 = vmatprep.subr.mxu0 0.0
    %4750 = vmatpush1.xpose.msra.mxu0 0.0
    %4751 = vmatprep.subr.mxu0 0.0
    %4752 = vmatpush1.xpose.msra.mxu0 0.0
    %4753 = vmatprep.subr.mxu0 0.0
    %4754 = vmatpush1.xpose.msra.mxu0 0.0
    %4755 = vmatprep.mubr.f32.mxu0 0.0
    %4756 = vmatmul.mubr.f32.gmra.mrb[0].mxu0 %v4677
    %v4757 = vpop.f32.mrb[0].mxu0
    %v4758 = vadd.f32 0.0, %v4757
    %v4759 = vpop.f32.mrb[0].mxu0
    %4760 = vdwg.mxu0
    %v4762 = vsel %vm287, %v698, 0
    %v4765 = vsel %vm287, %v3482, 0
    %v4768 = vsel %vm287, %v3483, 0
    %v4771 = vsel %vm287, %v3484, 0
    %v4774 = vsel %vm287, %v3485, 0
    %4776 = vmatprep.subr.mxu0 0.0
    %4777 = vmatpush1.xpose.msra.mxu0 %v4765
    %4778 = vmatprep.subr.mxu0 0.0
    %4779 = vmatpush1.xpose.msra.mxu0 %v4768
    %4780 = vmatprep.subr.mxu0 0.0
    %4781 = vmatpush1.xpose.msra.mxu0 %v4771
    %4782 = vmatprep.subr.mxu0 0.0
    %4783 = vmatpush1.xpose.msra.mxu0 %v4774
    %4784 = vmatprep.subr.mxu0 0.0
    %4785 = vmatpush1.xpose.msra.mxu0 0.0
    %4786 = vmatprep.subr.mxu0 0.0
    %4787 = vmatpush1.xpose.msra.mxu0 0.0
    %4788 = vmatprep.subr.mxu0 0.0
    %4789 = vmatpush1.xpose.msra.mxu0 0.0
    %4790 = vmatprep.subr.mxu0 0.0
    %4791 = vmatpush1.xpose.msra.mxu0 0.0
    %4792 = vmatprep.subr.mxu0 0.0
    %4793 = vmatpush1.xpose.msra.mxu0 0.0
    %4794 = vmatprep.subr.mxu0 0.0
    %4795 = vmatpush1.xpose.msra.mxu0 0.0
    %4796 = vmatprep.subr.mxu0 0.0
    %4797 = vmatpush1.xpose.msra.mxu0 0.0
    %4798 = vmatprep.subr.mxu0 0.0
    %4799 = vmatpush1.xpose.msra.mxu0 0.0
    %4800 = vmatprep.subr.mxu0 0.0
    %4801 = vmatpush1.xpose.msra.mxu0 0.0
    %4802 = vmatprep.subr.mxu0 0.0
    %4803 = vmatpush1.xpose.msra.mxu0 0.0
    %4804 = vmatprep.subr.mxu0 0.0
    %4805 = vmatpush1.xpose.msra.mxu0 0.0
    %4806 = vmatprep.subr.mxu0 0.0
    %4807 = vmatpush1.xpose.msra.mxu0 0.0
    %4808 = vmatprep.subr.mxu0 0.0
    %4809 = vmatpush1.xpose.msra.mxu0 0.0
    %4810 = vmatprep.subr.mxu0 0.0
    %4811 = vmatpush1.xpose.msra.mxu0 0.0
    %4812 = vmatprep.subr.mxu0 0.0
    %4813 = vmatpush1.xpose.msra.mxu0 0.0
    %4814 = vmatprep.subr.mxu0 0.0
    %4815 = vmatpush1.xpose.msra.mxu0 0.0
    %4816 = vmatprep.subr.mxu0 0.0
    %4817 = vmatpush1.xpose.msra.mxu0 0.0
    %4818 = vmatprep.subr.mxu0 0.0
    %4819 = vmatpush1.xpose.msra.mxu0 0.0
    %4820 = vmatprep.subr.mxu0 0.0
    %4821 = vmatpush1.xpose.msra.mxu0 0.0
    %4822 = vmatprep.subr.mxu0 0.0
    %4823 = vmatpush1.xpose.msra.mxu0 0.0
    %4824 = vmatprep.subr.mxu0 0.0
    %4825 = vmatpush1.xpose.msra.mxu0 0.0
    %4826 = vmatprep.subr.mxu0 0.0
    %4827 = vmatpush1.xpose.msra.mxu0 0.0
    %4828 = vmatprep.subr.mxu0 0.0
    %4829 = vmatpush1.xpose.msra.mxu0 0.0
    %4830 = vmatprep.subr.mxu0 0.0
    %4831 = vmatpush1.xpose.msra.mxu0 0.0
    %4832 = vmatprep.subr.mxu0 0.0
    %4833 = vmatpush1.xpose.msra.mxu0 0.0
    %4834 = vmatprep.subr.mxu0 0.0
    %4835 = vmatpush1.xpose.msra.mxu0 0.0
    %4836 = vmatprep.subr.mxu0 0.0
    %4837 = vmatpush1.xpose.msra.mxu0 0.0
    %4838 = vmatprep.subr.mxu0 0.0
    %4839 = vmatpush1.xpose.msra.mxu0 0.0
    %4840 = vmatprep.mubr.f32.mxu0 0.0
    %4841 = vmatmul.mubr.f32.gmra.mrb[0].mxu0 %v4762
    %v4842 = vpop.f32.mrb[0].mxu0
    %v4843 = vadd.f32 0.0, %v4842
    %v4844 = vpop.f32.mrb[0].mxu0
    %4845 = vdwg.mxu0
    %v4846 = vld [vmem:[%s9] sm:$0x1]
    %v4847 = vld [vmem:[#allocation2] sm:$0x1]
    %4849 = vset.pattern.permute.xlu0 0
    %4850 = vperm.xlu0 %4849, %v4847
    %v4851 = vpop.permute.xlu0 %4850
    %v4853 = vlaneseq
    %v4854 = vshrl.u32 %v4853, 7
    %v4855 = vsub.s32 0, %v4854
    %v4856 = vrot.slane %v4851, %v4855
    %v4858 = vsel %vm287, %v4846, 0
    %v4861 = vsel %vm287, %v3568, 0
    %v4864 = vsel %vm287, %v3653, 0
    %v4867 = vsel %vm287, %v3738, 0
    %v4870 = vsel %vm287, %v3823, 0
    %v4873 = vsel %vm287, %v3908, 0
    %v4876 = vsel %vm287, %v3993, 0
    %v4879 = vsel %vm287, %v4078, 0
    %v4882 = vsel %vm287, %v4163, 0
    %v4885 = vsel %vm287, %v4248, 0
    %v4888 = vsel %vm287, %v4333, 0
    %v4891 = vsel %vm287, %v4418, 0
    %v4894 = vsel %vm287, %v4503, 0
    %v4897 = vsel %vm287, %v4588, 0
    %v4900 = vsel %vm287, %v4673, 0
    %v4903 = vsel %vm287, %v4758, 0
    %v4906 = vsel %vm287, %v4843, 0
    %4908 = vmatprep.subr.mxu0 0.0
    %4909 = vmatpush1.xpose.msra.mxu0 %v4861
    %4910 = vmatprep.subr.mxu0 0.0
    %4911 = vmatpush1.xpose.msra.mxu0 %v4864
    %4912 = vmatprep.subr.mxu0 0.0
    %4913 = vmatpush1.xpose.msra.mxu0 %v4867
    %4914 = vmatprep.subr.mxu0 0.0
    %4915 = vmatpush1.xpose.msra.mxu0 %v4870
    %4916 = vmatprep.subr.mxu0 0.0
    %4917 = vmatpush1.xpose.msra.mxu0 %v4873
    %4918 = vmatprep.subr.mxu0 0.0
    %4919 = vmatpush1.xpose.msra.mxu0 %v4876
    %4920 = vmatprep.subr.mxu0 0.0
    %4921 = vmatpush1.xpose.msra.mxu0 %v4879
    %4922 = vmatprep.subr.mxu0 0.0
    %4923 = vmatpush1.xpose.msra.mxu0 %v4882
    %4924 = vmatprep.subr.mxu0 0.0
    %4925 = vmatpush1.xpose.msra.mxu0 %v4885
    %4926 = vmatprep.subr.mxu0 0.0
    %4927 = vmatpush1.xpose.msra.mxu0 %v4888
    %4928 = vmatprep.subr.mxu0 0.0
    %4929 = vmatpush1.xpose.msra.mxu0 %v4891
    %4930 = vmatprep.subr.mxu0 0.0
    %4931 = vmatpush1.xpose.msra.mxu0 %v4894
    %4932 = vmatprep.subr.mxu0 0.0
    %4933 = vmatpush1.xpose.msra.mxu0 %v4897
    %4934 = vmatprep.subr.mxu0 0.0
    %4935 = vmatpush1.xpose.msra.mxu0 %v4900
    %4936 = vmatprep.subr.mxu0 0.0
    %4937 = vmatpush1.xpose.msra.mxu0 %v4903
    %4938 = vmatprep.subr.mxu0 0.0
    %4939 = vmatpush1.xpose.msra.mxu0 %v4906
    %4940 = vmatprep.subr.mxu0 0.0
    %4941 = vmatpush1.xpose.msra.mxu0 0.0
    %4942 = vmatprep.subr.mxu0 0.0
    %4943 = vmatpush1.xpose.msra.mxu0 0.0
    %4944 = vmatprep.subr.mxu0 0.0
    %4945 = vmatpush1.xpose.msra.mxu0 0.0
    %4946 = vmatprep.subr.mxu0 0.0
    %4947 = vmatpush1.xpose.msra.mxu0 0.0
    %4948 = vmatprep.subr.mxu0 0.0
    %4949 = vmatpush1.xpose.msra.mxu0 0.0
    %4950 = vmatprep.subr.mxu0 0.0
    %4951 = vmatpush1.xpose.msra.mxu0 0.0
    %4952 = vmatprep.subr.mxu0 0.0
    %4953 = vmatpush1.xpose.msra.mxu0 0.0
    %4954 = vmatprep.subr.mxu0 0.0
    %4955 = vmatpush1.xpose.msra.mxu0 0.0
    %4956 = vmatprep.subr.mxu0 0.0
    %4957 = vmatpush1.xpose.msra.mxu0 0.0
    %4958 = vmatprep.subr.mxu0 0.0
    %4959 = vmatpush1.xpose.msra.mxu0 0.0
    %4960 = vmatprep.subr.mxu0 0.0
    %4961 = vmatpush1.xpose.msra.mxu0 0.0
    %4962 = vmatprep.subr.mxu0 0.0
    %4963 = vmatpush1.xpose.msra.mxu0 0.0
    %4964 = vmatprep.subr.mxu0 0.0
    %4965 = vmatpush1.xpose.msra.mxu0 0.0
    %4966 = vmatprep.subr.mxu0 0.0
    %4967 = vmatpush1.xpose.msra.mxu0 0.0
    %4968 = vmatprep.subr.mxu0 0.0
    %4969 = vmatpush1.xpose.msra.mxu0 0.0
    %4970 = vmatprep.subr.mxu0 0.0
    %4971 = vmatpush1.xpose.msra.mxu0 0.0
    %4972 = vmatprep.mubr.f32.mxu0 0.0
    %4973 = vmatmul.mubr.f32.gmra.mrb[0].mxu0 %v4858
    %v4974 = vpop.f32.mrb[0].mxu0
    %v4975 = vadd.f32 %v4856, %v4974
    %v4976 = vpop.f32.mrb[0].mxu0
    %4977 = vdwg.mxu0
    %4978 = vst [vmem:[#allocation3] sm:$0x1] %v4975
    // Predicated region
    $region46: #{tpu_custom_call.1} parent=1 // pred_check
      _
    $region47: #{tpu_custom_call.1} parent=1 // pred_check_branch
      %4980 = sbr.rel (0) target = $region49
    $region48: #{tpu_custom_call.1} parent=1 // pred_region
      %s4982 = ssub.s32 16, 16
      %4983 = vsyncadd [#allocation4], %s4982
      %s4985 = sshll.u32 [#allocation3], 4
      %s4986 = int_to_ptr.vmem [resolvable:$true] %s4985
      %4988 = dma.vmem_to_hbm [thread:$0]  %s4986, 16, %s11, [#allocation4]
    $region49: #{tpu_custom_call.1} parent=1 // pred_fallthru
      _
    // Predicated region
    $region50: #{tpu_custom_call.1} parent=1 // pred_check
      _
    $region51: #{tpu_custom_call.1} parent=1 // pred_check_branch
      %4990 = sbr.rel (0) target = $region53
    $region52: #{tpu_custom_call.1} parent=1 // pred_region
      %4991 = dma.done [#allocation4], 16
    $region53: #{tpu_custom_call.1} parent=1 // pred_fallthru
      _
    %4992 = vsyncpa [#allocation4], 1

</llo_original>
